<compile_context>
chip_gen: v7x
topology: tpu7x:2x2x1
jax: 0.10.0
libtpu: 0.0.40
codegen_flags: <defaults>
</compile_context>

<pallas_src>
import jax
import jax.numpy as jnp
from jax.experimental import pallas as pl
from jax.experimental.pallas import tpu as pltpu

IN_DIM = 3072
HID_DIM = 1024
HID_HALF = HID_DIM // 2     # contraction split across the (up to) 2 TensorCores
OUT_DIM = 600               # 3 * 10 * 20
OUT_PAD = 640               # 5 * 128 -> lane-dense fc2 / output tiles
N_SPLIT = 2                 # grid points == HID halves (== v7x TC count)


def _light_kernel(x_ref, w1_ref, b1_ref, w2_ref, o_ref):
    """One HID-half of the two-layer MLP.

    x:  (B, 3072) f32      w1: (3072, 512) bf16    b1: (1, 512) f32
    w2: (512, 640) bf16    o:  (B, 640) f32 partial (pre-fc2-bias, pre-sigmoid)
    """
    h = jnp.dot(
        x_ref[...].astype(jnp.bfloat16),
        w1_ref[...],
        preferred_element_type=jnp.float32,
    ) + b1_ref[...]
    o_ref[...] = jnp.dot(
        h.astype(jnp.bfloat16),
        w2_ref[...],
        preferred_element_type=jnp.float32,
    )


@jax.jit
def light_paramter_forward(x, w1_bf16, b1, w2p_bf16, b2):
    """x: (B, 3072) f32 -> {'color': (B, 3, 10, 20) f32}.

    w1_bf16: (3072, 1024) bf16, b1: (1, 1024) f32,
    w2p_bf16: (1024, 640) bf16 (columns 600:640 zero-padded),
    b2: (1, 600) f32.
    """
    B = x.shape[0]
    partials = pl.pallas_call(
        _light_kernel,
        out_shape=jax.ShapeDtypeStruct((N_SPLIT, B, OUT_PAD), jnp.float32),
        grid=(N_SPLIT,),
        in_specs=[
            # x is fetched once (constant block index) -> single buffer.
            pl.BlockSpec((B, IN_DIM), lambda c: (0, 0),
                         pipeline_mode=pl.Buffered(1)),
            pl.BlockSpec((IN_DIM, HID_HALF), lambda c: (0, c)),   # w1 half (bf16)
            pl.BlockSpec((1, HID_HALF), lambda c: (0, c)),        # b1 half
            pl.BlockSpec((HID_HALF, OUT_PAD), lambda c: (c, 0)),  # w2 half (bf16)
        ],
        out_specs=pl.BlockSpec((None, B, OUT_PAD), lambda c: (c, 0, 0)),
        compiler_params=pltpu.CompilerParams(
            dimension_semantics=("parallel",),   # v7x: one HID half per TC
            vmem_limit_bytes=32 << 20,
        ),
    )(x, w1_bf16, b1, w2p_bf16)

    # Cross-half reduction (20 KiB) + fc2 bias + sigmoid*10 + pad-slice +
    # NCHW view; XLA fuses this into a single tiny elementwise op.
    y = partials[0, :, :OUT_DIM] + partials[1, :, :OUT_DIM] + b2
    out = jax.nn.sigmoid(y) * 10.0
    return {"color": out.reshape(B, 3, 10, 20)}


def init_params(key):
    """Deterministic init mimicking torch.nn.Linear defaults (U[-1/sqrt(fan_in), +])."""
    k1, k2, k3, k4 = jax.random.split(key, 4)
    bound1 = 1.0 / jnp.sqrt(IN_DIM)
    bound2 = 1.0 / jnp.sqrt(HID_DIM)
    # stored pre-transposed: (in, out)
    w1 = jax.random.uniform(k1, (IN_DIM, HID_DIM), jnp.float32, -bound1, bound1)
    b1 = jax.random.uniform(k2, (1, HID_DIM), jnp.float32, -bound1, bound1)
    w2 = jax.random.uniform(k3, (HID_DIM, OUT_DIM), jnp.float32, -bound2, bound2)
    b2 = jax.random.uniform(k4, (1, OUT_DIM), jnp.float32, -bound2, bound2)
    return w1, b1, w2, b2


def pack_params(w1, b1, w2, b2):
    """Pre-pack weights for the kernel: bf16 storage + lane-pad fc2 to 640."""
    w1_bf16 = w1.astype(jnp.bfloat16)
    w2p_bf16 = jnp.pad(w2, ((0, 0), (0, OUT_PAD - OUT_DIM))).astype(jnp.bfloat16)
    return w1_bf16, b1, w2p_bf16, b2


def reference_forward_quant(x, w1_bf16, b1, w2p_bf16, b2):
    """Pure-JAX reference with the same bf16 quantization points as the kernel."""
    w1 = w1_bf16.astype(jnp.float32)
    w2 = w2p_bf16[:, :OUT_DIM].astype(jnp.float32)
    xq = x.astype(jnp.bfloat16).astype(jnp.float32)
    h = xq @ w1 + b1
    hq = h.astype(jnp.bfloat16).astype(jnp.float32)
    y = hq @ w2 + b2
    return (jax.nn.sigmoid(y) * 10.0).reshape(x.shape[0], 3, 10, 20)


def reference_forward_f32(x, w1, b1, w2, b2):
    """Full-precision reference matching the original torch module."""
    y = (x @ w1 + b1) @ w2 + b2
    return (jax.nn.sigmoid(y) * 10.0).reshape(x.shape[0], 3, 10, 20)


if __name__ == "__main__":
    key = jax.random.PRNGKey(0)
    kx, kp = jax.random.split(key)

    B = 8  # small batch; sublane-aligned (block == full batch dim so any B is legal)
    x = jax.random.normal(kx, (B, IN_DIM), jnp.float32)
    w1, b1, w2, b2 = init_params(kp)
    w1_bf16, b1, w2p_bf16, b2 = pack_params(w1, b1, w2, b2)

    out = light_paramter_forward(x, w1_bf16, b1, w2p_bf16, b2)
    color = jax.block_until_ready(out["color"])
    assert color.shape == (B, 3, 10, 20), color.shape

    # Tight check vs a reference with identical bf16 quantization points.
    ref_q = reference_forward_quant(x, w1_bf16, b1, w2p_bf16, b2)
    assert jnp.allclose(color, ref_q, atol=2e-3, rtol=2e-3), "mismatch vs quantized ref"

    # Looser check vs the true f32 model (bounds bf16 quantization error).
    ref_f32 = reference_forward_f32(x, w1, b1, w2, b2)
    assert jnp.allclose(color, ref_f32, atol=5e-2, rtol=5e-2), "mismatch vs f32 ref"

    # TODO(synk): convert_to_panorama / xyz buffer / fc_dir-size-color-ambient /
    # batchnorm / conv heads are not used in LightParamter.forward(); only
    # fc -> fc2 -> sigmoid*10 -> view is implemented.
    print("KERNEL_OK")
</pallas_src>

<mosaic_0001>
module attributes {stable_mosaic.version = 11 : i64} {
  func.func @_light_kernel(%arg0: i32, %arg1: memref<8x3072xf32, #tpu.memory_space<vmem>>, %arg2: memref<3072x512xbf16, #tpu.memory_space<vmem>>, %arg3: memref<1x512xf32, #tpu.memory_space<vmem>>, %arg4: memref<512x640xbf16, #tpu.memory_space<vmem>>, %arg5: memref<1x8x640xf32, #tpu.memory_space<vmem>>) attributes {dimension_semantics = [#tpu.dimension_semantics<parallel>], iteration_bounds = array<i64: 2>, scalar_prefetch = 0 : i64, scratch_operands = 0 : i64, tpu.core_type = #tpu.core_type<tc>, window_params = [{pipeline_mode = #tpu.pipeline_mode<synchronous>, transform_indices = @transform_0, window_bounds = array<i64: 8, 3072>}, {transform_indices = @transform_1, window_bounds = array<i64: 3072, 512>}, {transform_indices = @transform_2, window_bounds = array<i64: 1, 512>}, {transform_indices = @transform_3, window_bounds = array<i64: 512, 640>}, {transform_indices = @transform_4, window_bounds = array<i64: 1, 8, 640>}]} {
    %c0 = arith.constant 0 : index
    %c0_0 = arith.constant 0 : index
    %0 = vector.load %arg1[%c0, %c0_0] : memref<8x3072xf32, #tpu.memory_space<vmem>>, vector<8x3072xf32>
    %1 = arith.truncf %0 : vector<8x3072xf32> to vector<8x3072xbf16>
    %c0_1 = arith.constant 0 : index
    %c0_2 = arith.constant 0 : index
    %2 = vector.load %arg2[%c0_1, %c0_2] : memref<3072x512xbf16, #tpu.memory_space<vmem>>, vector<3072x512xbf16>
    %cst = arith.constant dense<0.000000e+00> : vector<8x512xf32>
    %3 = tpu.matmul %1, %2, %cst {dimension_numbers = #tpu.dot_dimension_numbers<[1], [0], [0], [1], [0, 0, 1, 1], [], []>} : vector<8x3072xbf16>, vector<3072x512xbf16>, vector<8x512xf32> -> vector<8x512xf32>
    %c0_3 = arith.constant 0 : index
    %c0_4 = arith.constant 0 : index
    %4 = vector.load %arg3[%c0_3, %c0_4] : memref<1x512xf32, #tpu.memory_space<vmem>>, vector<1x512xf32>
    %5 = vector.broadcast %4 : vector<1x512xf32> to vector<8x512xf32>
    %6 = arith.addf %3, %5 : vector<8x512xf32>
    %7 = arith.truncf %6 : vector<8x512xf32> to vector<8x512xbf16>
    %c0_5 = arith.constant 0 : index
    %c0_6 = arith.constant 0 : index
    %8 = vector.load %arg4[%c0_5, %c0_6] : memref<512x640xbf16, #tpu.memory_space<vmem>>, vector<512x640xbf16>
    %cst_7 = arith.constant dense<0.000000e+00> : vector<8x640xf32>
    %9 = tpu.matmul %7, %8, %cst_7 {dimension_numbers = #tpu.dot_dimension_numbers<[1], [0], [0], [1], [0, 0, 1, 1], [], []>} : vector<8x512xbf16>, vector<512x640xbf16>, vector<8x640xf32> -> vector<8x640xf32>
    %c0_8 = arith.constant 0 : index
    %c0_9 = arith.constant 0 : index
    %c0_10 = arith.constant 0 : index
    %10 = vector.load %arg5[%c0_8, %c0_9, %c0_10] : memref<1x8x640xf32, #tpu.memory_space<vmem>>, vector<1x8x640xf32>
    %11 = vector.shape_cast %10 : vector<1x8x640xf32> to vector<8x640xf32>
    %12 = vector.shape_cast %9 : vector<8x640xf32> to vector<1x8x640xf32>
    tpu.vector_store %arg5[%c0_8, %c0_9, %c0_10], %12 {strides = array<i32>} : memref<1x8x640xf32, #tpu.memory_space<vmem>>, vector<1x8x640xf32>,
    return
  }
  func.func @transform_0(%arg0: i32) -> (i32, i32) {
    %c0_i32 = arith.constant 0 : i32
    %c0_i32_0 = arith.constant 0 : i32
    %c0_i32_1 = arith.constant 0 : i32
    return %c0_i32, %c0_i32_0 : i32, i32
  }
  func.func @transform_1(%arg0: i32) -> (i32, i32) {
    %c0_i32 = arith.constant 0 : i32
    %c0_i32_0 = arith.constant 0 : i32
    return %c0_i32, %arg0 : i32, i32
  }
  func.func @transform_2(%arg0: i32) -> (i32, i32) {
    %c0_i32 = arith.constant 0 : i32
    %c0_i32_0 = arith.constant 0 : i32
    return %c0_i32, %arg0 : i32, i32
  }
  func.func @transform_3(%arg0: i32) -> (i32, i32) {
    %c0_i32 = arith.constant 0 : i32
    %c0_i32_0 = arith.constant 0 : i32
    return %arg0, %c0_i32 : i32, i32
  }
  func.func @transform_4(%arg0: i32) -> (i32, i32, i32) {
    %c0_i32 = arith.constant 0 : i32
    %c0_i32_0 = arith.constant 0 : i32
    %c0_i32_1 = arith.constant 0 : i32
    return %arg0, %c0_i32, %c0_i32_0 : i32, i32, i32
  }
}

</mosaic_0001>

<llo_original>
// kernel: light_paramter_forward.1
$region0: #{light_paramter_forward.1}
  #allocation0 [shape = 'u32[]', space=smem, size = 0x4, offset = 0x4, fixed_abs, tag = 'smem constant byte address 0x4 - core index']
  #allocation1 [shape = 'u32[144,128]{1,0:T(1,128)}', space=vmem, size = 0x12000, scoped, tag = 'internal scratch']
  %s0 = inlined_call_operand.hbm [shape: f32[8,3072], index: 0, kind: input, shape index: {}]
  %s1 = inlined_call_operand.hbm [shape: bf16[3072,1024], index: 1, kind: input, shape index: {}]
  %s2 = inlined_call_operand.hbm [shape: f32[1,1024], index: 2, kind: input, shape index: {}]
  %s3 = inlined_call_operand.hbm [shape: bf16[1024,640], index: 3, kind: input, shape index: {}]
  %s4 = inlined_call_operand.vmem [shape: f32[2,8,640], index: 4, kind: output, shape index: {}]
  %s5 = sld [smem:[#allocation0]]
  $region65: #{light_paramter_forward.1} parent=0
    _
  %s7 = ssub.s32 1, %s5
  %s8 = scalar_select 0, %s7, %s5
  $region1: #{light_paramter_forward.1} parent=0
    #allocation2 [shape = 'u8[98304]{0}', space=vmem, size = 0x18000, scoped, tag = 'input window, operand 0, single buffered']
    #allocation3 [shape = 's32[2]{0}', space=sflag, size = 0x8, scoped, tag = 'scoped memory for light_paramter_forward.1']
    #allocation4 [shape = 'u8[6291456]{0}', space=vmem, size = 0x600000, scoped, tag = 'input window, operand 1']
    #allocation5 [shape = 's32[2]{0}', space=sflag, size = 0x8, scoped, tag = 'scoped memory for light_paramter_forward.1']
    #allocation6 [shape = 'u8[4096]{0}', space=vmem, size = 0x1000, scoped, tag = 'input window, operand 2']
    #allocation7 [shape = 'u8[1310720]{0}', space=vmem, size = 0x140000, scoped, tag = 'input window, operand 3']
    #allocation8 [shape = 's32[2]{0}', space=sflag, size = 0x8, scoped, tag = 'scoped memory for light_paramter_forward.1']
    %9 = vsyncpa [#allocation3], 0
    %10 = vsyncpa [#allocation5], 0
    %s11 = scalar_lea.sflag [#allocation5], 1
    %12 = vsyncpa %s11, 0
    %13 = vsyncpa [#allocation8], 0
    %s14 = scalar_lea.sflag [#allocation8], 1
    %15 = vsyncpa %s14, 0
    loop: start=0, step=1, limit=4
    $region2: #{light_paramter_forward.1} parent=1 // loop_pre_header
      _
    $region3: #{light_paramter_forward.1} parent=1 // loop_header
      %s17 = sphi 0, %s21
      %p18 = scmp.ge.s32.totalorder %s17, 4
      %s25 = sphi 0, %s25
      %s27 = sphi 0, %s25
      %s28 = sphi 0, %s27
      %s42 = sphi 0, %s28
      %s48 = sphi 0, %s50
      %s51 = sphi 0, %s48
      %s52 = sphi 0, %s51
      %s68 = sphi 0, %s52
      %s74 = sphi 0, %s76
      %s77 = sphi 0, %s74
      %s78 = sphi 0, %s77
      %s94 = sphi 0, %s78
      %s100 = sphi 0, %s102
      %s103 = sphi 0, %s100
      %s104 = sphi 0, %s103
      %s120 = sphi 0, %s104
      %s126 = sphi 0, %s128
      %s129 = sphi 0, %s126
      %s130 = sphi 0, %s129
      %s146 = sphi 0, %s130
    $region4: #{light_paramter_forward.1} parent=1 // loop_header_branch
      %20 = sbr.rel (%p18) target = $region8
    $region5: #{light_paramter_forward.1} parent=1 // loop_body
      %s22 = ssub.s32 %s17, 1
      %s23 = ssub.s32 %s17, 2
      %s24 = sadd.s32 %s17, 1
      %s26 = sadd.s32 %s25, 1
      %p29 = scmp.eq.s32.totalorder %s17, 1
      %p30 = scmp.ne.s32.totalorder %s25, %s27
      %p31 = scmp.eq.s32.totalorder %s17, 0
      %p32 = por %p30, %p31
      %p33 = scmp.ne.s32.totalorder %s25, %s27
      %p34 = scmp.eq.s32.totalorder %s22, 1
      %p35 = por %p33, %p34
      %p36 = scmp.ne.s32.totalorder %s27, %s28
      %p37 = scmp.eq.s32.totalorder %s22, 0
      %p38 = por %p36, %p37
      %p39 = scmp.ne.s32.totalorder %s27, %s28
      %p40 = scmp.eq.s32.totalorder %s23, 1
      %p41 = por %p39, %p40
      %p43 = scmp.ne.s32.totalorder %s28, %s42
      %p44 = scmp.eq.s32.totalorder %s23, 0
      %p45 = por %p43, %p44
      %s46 = ssub.s32 %s17, %s24
      %p47 = scmp.eq.s32.totalorder %s46, 0
      %s49 = sadd.s32 %s48, 1
      %s50 = scalar_select %p47, %s48, %s49
      %p53 = pneg %p47
      %p54 = scmp.eq.s32.totalorder %s17, 1
      %p55 = por %p53, %p54
      %p56 = scmp.ne.s32.totalorder %s48, %s51
      %p57 = scmp.eq.s32.totalorder %s17, 0
      %p58 = por %p56, %p57
      %p59 = scmp.ne.s32.totalorder %s48, %s51
      %p60 = scmp.eq.s32.totalorder %s22, 1
      %p61 = por %p59, %p60
      %p62 = scmp.ne.s32.totalorder %s51, %s52
      %p63 = scmp.eq.s32.totalorder %s22, 0
      %p64 = por %p62, %p63
      %p65 = scmp.ne.s32.totalorder %s51, %s52
      %p66 = scmp.eq.s32.totalorder %s23, 1
      %p67 = por %p65, %p66
      %p69 = scmp.ne.s32.totalorder %s52, %s68
      %p70 = scmp.eq.s32.totalorder %s23, 0
      %p71 = por %p69, %p70
      %s72 = ssub.s32 %s17, %s24
      %p73 = scmp.eq.s32.totalorder %s72, 0
      %s75 = sadd.s32 %s74, 1
      %s76 = scalar_select %p73, %s74, %s75
      %p79 = pneg %p73
      %p80 = scmp.eq.s32.totalorder %s17, 1
      %p81 = por %p79, %p80
      %p82 = scmp.ne.s32.totalorder %s74, %s77
      %p83 = scmp.eq.s32.totalorder %s17, 0
      %p84 = por %p82, %p83
      %p85 = scmp.ne.s32.totalorder %s74, %s77
      %p86 = scmp.eq.s32.totalorder %s22, 1
      %p87 = por %p85, %p86
      %p88 = scmp.ne.s32.totalorder %s77, %s78
      %p89 = scmp.eq.s32.totalorder %s22, 0
      %p90 = por %p88, %p89
      %p91 = scmp.ne.s32.totalorder %s77, %s78
      %p92 = scmp.eq.s32.totalorder %s23, 1
      %p93 = por %p91, %p92
      %p95 = scmp.ne.s32.totalorder %s78, %s94
      %p96 = scmp.eq.s32.totalorder %s23, 0
      %p97 = por %p95, %p96
      %s98 = ssub.s32 %s17, %s24
      %p99 = scmp.eq.s32.totalorder %s98, 0
      %s101 = sadd.s32 %s100, 1
      %s102 = scalar_select %p99, %s100, %s101
      %p105 = pneg %p99
      %p106 = scmp.eq.s32.totalorder %s17, 1
      %p107 = por %p105, %p106
      %p108 = scmp.ne.s32.totalorder %s100, %s103
      %p109 = scmp.eq.s32.totalorder %s17, 0
      %p110 = por %p108, %p109
      %p111 = scmp.ne.s32.totalorder %s100, %s103
      %p112 = scmp.eq.s32.totalorder %s22, 1
      %p113 = por %p111, %p112
      %p114 = scmp.ne.s32.totalorder %s103, %s104
      %p115 = scmp.eq.s32.totalorder %s22, 0
      %p116 = por %p114, %p115
      %p117 = scmp.ne.s32.totalorder %s103, %s104
      %p118 = scmp.eq.s32.totalorder %s23, 1
      %p119 = por %p117, %p118
      %p121 = scmp.ne.s32.totalorder %s104, %s120
      %p122 = scmp.eq.s32.totalorder %s23, 0
      %p123 = por %p121, %p122
      %s124 = ssub.s32 %s17, %s24
      %p125 = scmp.eq.s32.totalorder %s124, 0
      %s127 = sadd.s32 %s126, 1
      %s128 = scalar_select %p125, %s126, %s127
      %p131 = pneg %p125
      %p132 = scmp.eq.s32.totalorder %s17, 1
      %p133 = por %p131, %p132
      %p134 = scmp.ne.s32.totalorder %s126, %s129
      %p135 = scmp.eq.s32.totalorder %s17, 0
      %p136 = por %p134, %p135
      %p137 = scmp.ne.s32.totalorder %s126, %s129
      %p138 = scmp.eq.s32.totalorder %s22, 1
      %p139 = por %p137, %p138
      %p140 = scmp.ne.s32.totalorder %s129, %s130
      %p141 = scmp.eq.s32.totalorder %s22, 0
      %p142 = por %p140, %p141
      %p143 = scmp.ne.s32.totalorder %s129, %s130
      %p144 = scmp.eq.s32.totalorder %s23, 1
      %p145 = por %p143, %p144
      %p147 = scmp.ne.s32.totalorder %s130, %s146
      %p148 = scmp.eq.s32.totalorder %s23, 0
      %p149 = por %p147, %p148
      %p150 = scmp.le.s32.totalorder 1, %s17
      %p151 = scmp.lt.s32.totalorder %s17, 3
      %p152 = pnand %p150, %p151
      %p153 = pneg %p152
      // Predicated region
      $region9: #{light_paramter_forward.1} parent=5 // pred_check
        _
      $region10: #{light_paramter_forward.1} parent=5 // pred_check_branch
        %155 = sbr.rel (%p152) target = $region12
      $region11: #{light_paramter_forward.1} parent=5 // pred_region
        %s156 = ssub.s32 %s17, 1
        // Predicated region
        $region13: #{light_paramter_forward.1} parent=11 // pred_check
          %p157 = pneg %p38
        $region14: #{light_paramter_forward.1} parent=11 // pred_check_branch
          %159 = sbr.rel (%p157) target = $region16
        $region15: #{light_paramter_forward.1} parent=11 // pred_region
          %s161 = ssub.s32 3072, 3072
          %162 = vsyncadd [#allocation3], %s161
          %s164 = sshll.u32 [#allocation2], 4
          %s165 = int_to_ptr.vmem [resolvable:$true] %s164
          %167 = dma.hbm_to_vmem [thread:$0]  %s0, 3072, %s165, [#allocation3]
        $region16: #{light_paramter_forward.1} parent=11 // pred_fallthru
          _
      $region12: #{light_paramter_forward.1} parent=5 // pred_fallthru
        _
      %p168 = scmp.lt.s32.totalorder %s17, 2
      // Predicated region
      $region17: #{light_paramter_forward.1} parent=5 // pred_check
        %p169 = pneg %p168
      $region18: #{light_paramter_forward.1} parent=5 // pred_check_branch
        %171 = sbr.rel (%p169) target = $region20
      $region19: #{light_paramter_forward.1} parent=5 // pred_region
        // Predicated region
        $region21: #{light_paramter_forward.1} parent=19 // pred_check
          %p172 = pneg %p58
        $region22: #{light_paramter_forward.1} parent=19 // pred_check_branch
          %174 = sbr.rel (%p172) target = $region24
        $region23: #{light_paramter_forward.1} parent=19 // pred_region
          %s175 = sand.u32 %s17, 1
          %s176 = scalar_lea.sflag [#allocation5], %s175
          %s177 = sand.u32 %s48, 1
          %s178 = smul.addr %s177, 6144
          %s179 = scalar_lea.vmem [#allocation4], %s178
          %s180 = smul.u32 4, %s17
          %s182 = ssub.s32 98304, 98304
          %183 = vsyncadd %s176, %s182
          %s184 = smul.addr %s180, 64
          %s185 = scalar_lea.hbm %s1, %s184
          %s186 = sshll.u32 %s179, 4
          %s187 = int_to_ptr.vmem [resolvable:$true] %s186
          %192 = dma.hbm_to_vmem [thread:$0]  %s185, 98304, %s187, %s176, 512, 256, 16
        $region24: #{light_paramter_forward.1} parent=19 // pred_fallthru
          _
        // Predicated region
        $region25: #{light_paramter_forward.1} parent=19 // pred_check
          %p193 = pneg %p84
        $region26: #{light_paramter_forward.1} parent=19 // pred_check_branch
          %195 = sbr.rel (%p193) target = $region28
        $region27: #{light_paramter_forward.1} parent=19 // pred_region
          %s196 = sand.u32 %s17, 1
          %s197 = scalar_lea.sflag [#allocation5], %s196
          %s198 = sand.u32 %s74, 1
          %s199 = smul.addr %s198, 4
          %s200 = scalar_lea.vmem [#allocation6], %s199
          %s201 = smul.u32 4, %s17
          %s203 = ssub.s32 64, 64
          %204 = vsyncadd %s197, %s203
          %s205 = smul.addr %s201, 16
          %s206 = scalar_lea.hbm %s2, %s205
          %s208 = sshll.u32 %s200, 4
          %s209 = int_to_ptr.vmem [resolvable:$true] %s208
          %211 = dma.hbm_to_vmem [thread:$0]  %s206, 64, %s209, %s197
        $region28: #{light_paramter_forward.1} parent=19 // pred_fallthru
          _
        // Predicated region
        $region29: #{light_paramter_forward.1} parent=19 // pred_check
          %p212 = pneg %p110
        $region30: #{light_paramter_forward.1} parent=19 // pred_check_branch
          %214 = sbr.rel (%p212) target = $region32
        $region31: #{light_paramter_forward.1} parent=19 // pred_region
          %s215 = sand.u32 %s100, 1
          %s216 = scalar_lea.sflag [#allocation8], %s215
          %s217 = sand.u32 %s100, 1
          %s218 = smul.addr %s217, 1280
          %s219 = scalar_lea.vmem [#allocation7], %s218
          %s220 = smul.u32 64, %s17
          %s222 = ssub.s32 20480, 20480
          %223 = vsyncadd %s216, %s222
          %s224 = smul.addr %s220, 5
          %s225 = smul.addr %s224, 64
          %s226 = scalar_lea.hbm %s3, %s225
          %s227 = sshll.u32 %s219, 4
          %s228 = int_to_ptr.vmem [resolvable:$true] %s227
          %233 = dma.hbm_to_vmem [thread:$0]  %s226, 20480, %s228, %s216, 320, 320, 20
        $region32: #{light_paramter_forward.1} parent=19 // pred_fallthru
          _
      $region20: #{light_paramter_forward.1} parent=5 // pred_fallthru
        _
      %p234 = scmp.le.s32.totalorder 1, %s17
      %p235 = scmp.lt.s32.totalorder %s17, 3
      %p236 = pnand %p234, %p235
      %p237 = pneg %p236
      // Predicated region
      $region33: #{light_paramter_forward.1} parent=5 // pred_check
        _
      $region34: #{light_paramter_forward.1} parent=5 // pred_check_branch
        %239 = sbr.rel (%p236) target = $region36
      $region35: #{light_paramter_forward.1} parent=5 // pred_region
        %s240 = ssub.s32 %s17, 1
        // Predicated region
        $region37: #{light_paramter_forward.1} parent=35 // pred_check
          %p241 = pneg %p38
        $region38: #{light_paramter_forward.1} parent=35 // pred_check_branch
          %243 = sbr.rel (%p241) target = $region40
        $region39: #{light_paramter_forward.1} parent=35 // pred_region
          %244 = dma.done [#allocation3], 3072
        $region40: #{light_paramter_forward.1} parent=35 // pred_fallthru
          _
        %s245 = sand.u32 %s22, 1
        %s246 = scalar_lea.sflag [#allocation5], %s245
        %s247 = sand.u32 %s51, 1
        %s248 = smul.addr %s247, 6144
        %s249 = scalar_lea.vmem [#allocation4], %s248
        // Predicated region
        $region41: #{light_paramter_forward.1} parent=35 // pred_check
          %p250 = pneg %p64
        $region42: #{light_paramter_forward.1} parent=35 // pred_check_branch
          %252 = sbr.rel (%p250) target = $region44
        $region43: #{light_paramter_forward.1} parent=35 // pred_region
          %253 = dma.done %s246, 98304
        $region44: #{light_paramter_forward.1} parent=35 // pred_fallthru
          _
        %s254 = sand.u32 %s22, 1
        %s255 = scalar_lea.sflag [#allocation5], %s254
        %s256 = sand.u32 %s77, 1
        %s257 = smul.addr %s256, 4
        %s258 = scalar_lea.vmem [#allocation6], %s257
        // Predicated region
        $region45: #{light_paramter_forward.1} parent=35 // pred_check
          %p259 = pneg %p90
        $region46: #{light_paramter_forward.1} parent=35 // pred_check_branch
          %261 = sbr.rel (%p259) target = $region48
        $region47: #{light_paramter_forward.1} parent=35 // pred_region
          %262 = dma.done %s255, 64
        $region48: #{light_paramter_forward.1} parent=35 // pred_fallthru
          _
        %s263 = sand.u32 %s103, 1
        %s264 = scalar_lea.sflag [#allocation8], %s263
        %s265 = sand.u32 %s103, 1
        %s266 = smul.addr %s265, 1280
        %s267 = scalar_lea.vmem [#allocation7], %s266
        // Predicated region
        $region49: #{light_paramter_forward.1} parent=35 // pred_check
          %p268 = pneg %p116
        $region50: #{light_paramter_forward.1} parent=35 // pred_check_branch
          %270 = sbr.rel (%p268) target = $region52
        $region51: #{light_paramter_forward.1} parent=35 // pred_region
          %271 = dma.done %s264, 20480
        $region52: #{light_paramter_forward.1} parent=35 // pred_fallthru
          _
        %p272 = pneg %p38
        %p273 = pneg %p35
        %s274 = sand.u32 %s22, 1
        %s275 = scalar_lea.sflag [#allocation5], %s274
        %s276 = sand.u32 %s51, 1
        %s277 = smul.addr %s276, 6144
        %s278 = scalar_lea.vmem [#allocation4], %s277
        %p279 = pneg %p64
        %p280 = pneg %p61
        %s281 = sand.u32 %s22, 1
        %s282 = scalar_lea.sflag [#allocation5], %s281
        %s283 = sand.u32 %s77, 1
        %s284 = smul.addr %s283, 4
        %s285 = scalar_lea.vmem [#allocation6], %s284
        %p286 = pneg %p90
        %p287 = pneg %p87
        %s288 = sand.u32 %s103, 1
        %s289 = scalar_lea.sflag [#allocation8], %s288
        %s290 = sand.u32 %s103, 1
        %s291 = smul.addr %s290, 1280
        %s292 = scalar_lea.vmem [#allocation7], %s291
        %p293 = pneg %p116
        %p294 = pneg %p113
        %p295 = pneg %p142
        %p296 = pneg %p139
        %p297 = scmp.lt.s32.totalorder %s22, 1
        %s298 = scalar_select %p297, %s22, 1
        %s299 = smul.addr %s298, 5
        %s300 = smul.addr %s299, 8
        %s301 = scalar_lea.vmem %s4, %s300
        %s302 = smul.u32 4, %s22
        %s303 = smul.u32 4, %s22
        %s304 = smul.u32 64, %s22
        %p305 = scmp.lt.s32.totalorder %s22, 1
        %s306 = scalar_select %p305, %s22, 1
        %s307 = smul.addr %s306, 5
        %s308 = smul.addr %s307, 8
        %s309 = scalar_lea.vmem %s4, %s308
        %v311 = vld [vmem:[#allocation2] sm:$0xff]
        %v312 = vld [vmem:[#allocation2 + $0x8] sm:$0xff]
        %v313 = vld [vmem:[#allocation2 + $0x10] sm:$0xff]
        %v314 = vld [vmem:[#allocation2 + $0x18] sm:$0xff]
        %v315 = vld [vmem:[#allocation2 + $0x20] sm:$0xff]
        %v316 = vld [vmem:[#allocation2 + $0x28] sm:$0xff]
        %v317 = vld [vmem:[#allocation2 + $0x30] sm:$0xff]
        %v318 = vld [vmem:[#allocation2 + $0x38] sm:$0xff]
        %v319 = vld [vmem:[#allocation2 + $0x40] sm:$0xff]
        %v320 = vld [vmem:[#allocation2 + $0x48] sm:$0xff]
        %v321 = vld [vmem:[#allocation2 + $0x50] sm:$0xff]
        %v322 = vld [vmem:[#allocation2 + $0x58] sm:$0xff]
        %v323 = vld [vmem:[#allocation2 + $0x60] sm:$0xff]
        %v324 = vld [vmem:[#allocation2 + $0x68] sm:$0xff]
        %v325 = vld [vmem:[#allocation2 + $0x70] sm:$0xff]
        %v326 = vld [vmem:[#allocation2 + $0x78] sm:$0xff]
        %v327 = vld [vmem:[#allocation2 + $0x80] sm:$0xff]
        %v328 = vld [vmem:[#allocation2 + $0x88] sm:$0xff]
        %v329 = vld [vmem:[#allocation2 + $0x90] sm:$0xff]
        %v330 = vld [vmem:[#allocation2 + $0x98] sm:$0xff]
        %v331 = vld [vmem:[#allocation2 + $0xa0] sm:$0xff]
        %v332 = vld [vmem:[#allocation2 + $0xa8] sm:$0xff]
        %v333 = vld [vmem:[#allocation2 + $0xb0] sm:$0xff]
        %v334 = vld [vmem:[#allocation2 + $0xb8] sm:$0xff]
        %v335 = vpack.c.bf16 %v311, %v311
        %v336 = vpack.c.bf16 %v312, %v312
        %v337 = vpack.c.bf16 %v313, %v313
        %v338 = vpack.c.bf16 %v314, %v314
        %v339 = vpack.c.bf16 %v315, %v315
        %v340 = vpack.c.bf16 %v316, %v316
        %v341 = vpack.c.bf16 %v317, %v317
        %v342 = vpack.c.bf16 %v318, %v318
        %v343 = vpack.c.bf16 %v319, %v319
        %v344 = vpack.c.bf16 %v320, %v320
        %v345 = vpack.c.bf16 %v321, %v321
        %v346 = vpack.c.bf16 %v322, %v322
        %v347 = vpack.c.bf16 %v323, %v323
        %v348 = vpack.c.bf16 %v324, %v324
        %v349 = vpack.c.bf16 %v325, %v325
        %v350 = vpack.c.bf16 %v326, %v326
        %v351 = vpack.c.bf16 %v327, %v327
        %v352 = vpack.c.bf16 %v328, %v328
        %v353 = vpack.c.bf16 %v329, %v329
        %v354 = vpack.c.bf16 %v330, %v330
        %v355 = vpack.c.bf16 %v331, %v331
        %v356 = vpack.c.bf16 %v332, %v332
        %v357 = vpack.c.bf16 %v333, %v333
        %v358 = vpack.c.bf16 %v334, %v334
        %v359 = vld [vmem:[%s249] sm:$0xff]
        %v360 = vld [vmem:[%s249 + $0x8] sm:$0xff]
        %v361 = vld [vmem:[%s249 + $0x10] sm:$0xff]
        %v362 = vld [vmem:[%s249 + $0x18] sm:$0xff]
        %v363 = vld [vmem:[%s249 + $0x20] sm:$0xff]
        %v364 = vld [vmem:[%s249 + $0x28] sm:$0xff]
        %v365 = vld [vmem:[%s249 + $0x30] sm:$0xff]
        %v366 = vld [vmem:[%s249 + $0x38] sm:$0xff]
        %v367 = vld [vmem:[%s249 + $0x40] sm:$0xff]
        %v368 = vld [vmem:[%s249 + $0x48] sm:$0xff]
        %v369 = vld [vmem:[%s249 + $0x50] sm:$0xff]
        %v370 = vld [vmem:[%s249 + $0x58] sm:$0xff]
        %v371 = vld [vmem:[%s249 + $0x60] sm:$0xff]
        %v372 = vld [vmem:[%s249 + $0x68] sm:$0xff]
        %v373 = vld [vmem:[%s249 + $0x70] sm:$0xff]
        %v374 = vld [vmem:[%s249 + $0x78] sm:$0xff]
        %v375 = vld [vmem:[%s249 + $0x80] sm:$0xff]
        %v376 = vld [vmem:[%s249 + $0x88] sm:$0xff]
        %v377 = vld [vmem:[%s249 + $0x90] sm:$0xff]
        %v378 = vld [vmem:[%s249 + $0x98] sm:$0xff]
        %v379 = vld [vmem:[%s249 + $0xa0] sm:$0xff]
        %v380 = vld [vmem:[%s249 + $0xa8] sm:$0xff]
        %v381 = vld [vmem:[%s249 + $0xb0] sm:$0xff]
        %v382 = vld [vmem:[%s249 + $0xb8] sm:$0xff]
        %v383 = vld [vmem:[%s249 + $0xc0] sm:$0xff]
        %v384 = vld [vmem:[%s249 + $0xc8] sm:$0xff]
        %v385 = vld [vmem:[%s249 + $0xd0] sm:$0xff]
        %v386 = vld [vmem:[%s249 + $0xd8] sm:$0xff]
        %v387 = vld [vmem:[%s249 + $0xe0] sm:$0xff]
        %v388 = vld [vmem:[%s249 + $0xe8] sm:$0xff]
        %v389 = vld [vmem:[%s249 + $0xf0] sm:$0xff]
        %v390 = vld [vmem:[%s249 + $0xf8] sm:$0xff]
        %v391 = vld [vmem:[%s249 + $0x100] sm:$0xff]
        %v392 = vld [vmem:[%s249 + $0x108] sm:$0xff]
        %v393 = vld [vmem:[%s249 + $0x110] sm:$0xff]
        %v394 = vld [vmem:[%s249 + $0x118] sm:$0xff]
        %v395 = vld [vmem:[%s249 + $0x120] sm:$0xff]
        %v396 = vld [vmem:[%s249 + $0x128] sm:$0xff]
        %v397 = vld [vmem:[%s249 + $0x130] sm:$0xff]
        %v398 = vld [vmem:[%s249 + $0x138] sm:$0xff]
        %v399 = vld [vmem:[%s249 + $0x140] sm:$0xff]
        %v400 = vld [vmem:[%s249 + $0x148] sm:$0xff]
        %v401 = vld [vmem:[%s249 + $0x150] sm:$0xff]
        %v402 = vld [vmem:[%s249 + $0x158] sm:$0xff]
        %v403 = vld [vmem:[%s249 + $0x160] sm:$0xff]
        %v404 = vld [vmem:[%s249 + $0x168] sm:$0xff]
        %v405 = vld [vmem:[%s249 + $0x170] sm:$0xff]
        %v406 = vld [vmem:[%s249 + $0x178] sm:$0xff]
        %v407 = vld [vmem:[%s249 + $0x180] sm:$0xff]
        %v408 = vld [vmem:[%s249 + $0x188] sm:$0xff]
        %v409 = vld [vmem:[%s249 + $0x190] sm:$0xff]
        %v410 = vld [vmem:[%s249 + $0x198] sm:$0xff]
        %v411 = vld [vmem:[%s249 + $0x1a0] sm:$0xff]
        %v412 = vld [vmem:[%s249 + $0x1a8] sm:$0xff]
        %v413 = vld [vmem:[%s249 + $0x1b0] sm:$0xff]
        %v414 = vld [vmem:[%s249 + $0x1b8] sm:$0xff]
        %v415 = vld [vmem:[%s249 + $0x1c0] sm:$0xff]
        %v416 = vld [vmem:[%s249 + $0x1c8] sm:$0xff]
        %v417 = vld [vmem:[%s249 + $0x1d0] sm:$0xff]
        %v418 = vld [vmem:[%s249 + $0x1d8] sm:$0xff]
        %v419 = vld [vmem:[%s249 + $0x1e0] sm:$0xff]
        %v420 = vld [vmem:[%s249 + $0x1e8] sm:$0xff]
        %v421 = vld [vmem:[%s249 + $0x1f0] sm:$0xff]
        %v422 = vld [vmem:[%s249 + $0x1f8] sm:$0xff]
        %v423 = vld [vmem:[%s249 + $0x200] sm:$0xff]
        %v424 = vld [vmem:[%s249 + $0x208] sm:$0xff]
        %v425 = vld [vmem:[%s249 + $0x210] sm:$0xff]
        %v426 = vld [vmem:[%s249 + $0x218] sm:$0xff]
        %v427 = vld [vmem:[%s249 + $0x220] sm:$0xff]
        %v428 = vld [vmem:[%s249 + $0x228] sm:$0xff]
        %v429 = vld [vmem:[%s249 + $0x230] sm:$0xff]
        %v430 = vld [vmem:[%s249 + $0x238] sm:$0xff]
        %v431 = vld [vmem:[%s249 + $0x240] sm:$0xff]
        %v432 = vld [vmem:[%s249 + $0x248] sm:$0xff]
        %v433 = vld [vmem:[%s249 + $0x250] sm:$0xff]
        %v434 = vld [vmem:[%s249 + $0x258] sm:$0xff]
        %v435 = vld [vmem:[%s249 + $0x260] sm:$0xff]
        %v436 = vld [vmem:[%s249 + $0x268] sm:$0xff]
        %v437 = vld [vmem:[%s249 + $0x270] sm:$0xff]
        %v438 = vld [vmem:[%s249 + $0x278] sm:$0xff]
        %v439 = vld [vmem:[%s249 + $0x280] sm:$0xff]
        %v440 = vld [vmem:[%s249 + $0x288] sm:$0xff]
        %v441 = vld [vmem:[%s249 + $0x290] sm:$0xff]
        %v442 = vld [vmem:[%s249 + $0x298] sm:$0xff]
        %v443 = vld [vmem:[%s249 + $0x2a0] sm:$0xff]
        %v444 = vld [vmem:[%s249 + $0x2a8] sm:$0xff]
        %v445 = vld [vmem:[%s249 + $0x2b0] sm:$0xff]
        %v446 = vld [vmem:[%s249 + $0x2b8] sm:$0xff]
        %v447 = vld [vmem:[%s249 + $0x2c0] sm:$0xff]
        %v448 = vld [vmem:[%s249 + $0x2c8] sm:$0xff]
        %v449 = vld [vmem:[%s249 + $0x2d0] sm:$0xff]
        %v450 = vld [vmem:[%s249 + $0x2d8] sm:$0xff]
        %v451 = vld [vmem:[%s249 + $0x2e0] sm:$0xff]
        %v452 = vld [vmem:[%s249 + $0x2e8] sm:$0xff]
        %v453 = vld [vmem:[%s249 + $0x2f0] sm:$0xff]
        %v454 = vld [vmem:[%s249 + $0x2f8] sm:$0xff]
        %v455 = vld [vmem:[%s249 + $0x300] sm:$0xff]
        %v456 = vld [vmem:[%s249 + $0x308] sm:$0xff]
        %v457 = vld [vmem:[%s249 + $0x310] sm:$0xff]
        %v458 = vld [vmem:[%s249 + $0x318] sm:$0xff]
        %v459 = vld [vmem:[%s249 + $0x320] sm:$0xff]
        %v460 = vld [vmem:[%s249 + $0x328] sm:$0xff]
        %v461 = vld [vmem:[%s249 + $0x330] sm:$0xff]
        %v462 = vld [vmem:[%s249 + $0x338] sm:$0xff]
        %v463 = vld [vmem:[%s249 + $0x340] sm:$0xff]
        %v464 = vld [vmem:[%s249 + $0x348] sm:$0xff]
        %v465 = vld [vmem:[%s249 + $0x350] sm:$0xff]
        %v466 = vld [vmem:[%s249 + $0x358] sm:$0xff]
        %v467 = vld [vmem:[%s249 + $0x360] sm:$0xff]
        %v468 = vld [vmem:[%s249 + $0x368] sm:$0xff]
        %v469 = vld [vmem:[%s249 + $0x370] sm:$0xff]
        %v470 = vld [vmem:[%s249 + $0x378] sm:$0xff]
        %v471 = vld [vmem:[%s249 + $0x380] sm:$0xff]
        %v472 = vld [vmem:[%s249 + $0x388] sm:$0xff]
        %v473 = vld [vmem:[%s249 + $0x390] sm:$0xff]
        %v474 = vld [vmem:[%s249 + $0x398] sm:$0xff]
        %v475 = vld [vmem:[%s249 + $0x3a0] sm:$0xff]
        %v476 = vld [vmem:[%s249 + $0x3a8] sm:$0xff]
        %v477 = vld [vmem:[%s249 + $0x3b0] sm:$0xff]
        %v478 = vld [vmem:[%s249 + $0x3b8] sm:$0xff]
        %v479 = vld [vmem:[%s249 + $0x3c0] sm:$0xff]
        %v480 = vld [vmem:[%s249 + $0x3c8] sm:$0xff]
        %v481 = vld [vmem:[%s249 + $0x3d0] sm:$0xff]
        %v482 = vld [vmem:[%s249 + $0x3d8] sm:$0xff]
        %v483 = vld [vmem:[%s249 + $0x3e0] sm:$0xff]
        %v484 = vld [vmem:[%s249 + $0x3e8] sm:$0xff]
        %v485 = vld [vmem:[%s249 + $0x3f0] sm:$0xff]
        %v486 = vld [vmem:[%s249 + $0x3f8] sm:$0xff]
        %v487 = vld [vmem:[%s249 + $0x400] sm:$0xff]
        %v488 = vld [vmem:[%s249 + $0x408] sm:$0xff]
        %v489 = vld [vmem:[%s249 + $0x410] sm:$0xff]
        %v490 = vld [vmem:[%s249 + $0x418] sm:$0xff]
        %v491 = vld [vmem:[%s249 + $0x420] sm:$0xff]
        %v492 = vld [vmem:[%s249 + $0x428] sm:$0xff]
        %v493 = vld [vmem:[%s249 + $0x430] sm:$0xff]
        %v494 = vld [vmem:[%s249 + $0x438] sm:$0xff]
        %v495 = vld [vmem:[%s249 + $0x440] sm:$0xff]
        %v496 = vld [vmem:[%s249 + $0x448] sm:$0xff]
        %v497 = vld [vmem:[%s249 + $0x450] sm:$0xff]
        %v498 = vld [vmem:[%s249 + $0x458] sm:$0xff]
        %v499 = vld [vmem:[%s249 + $0x460] sm:$0xff]
        %v500 = vld [vmem:[%s249 + $0x468] sm:$0xff]
        %v501 = vld [vmem:[%s249 + $0x470] sm:$0xff]
        %v502 = vld [vmem:[%s249 + $0x478] sm:$0xff]
        %v503 = vld [vmem:[%s249 + $0x480] sm:$0xff]
        %v504 = vld [vmem:[%s249 + $0x488] sm:$0xff]
        %v505 = vld [vmem:[%s249 + $0x490] sm:$0xff]
        %v506 = vld [vmem:[%s249 + $0x498] sm:$0xff]
        %v507 = vld [vmem:[%s249 + $0x4a0] sm:$0xff]
        %v508 = vld [vmem:[%s249 + $0x4a8] sm:$0xff]
        %v509 = vld [vmem:[%s249 + $0x4b0] sm:$0xff]
        %v510 = vld [vmem:[%s249 + $0x4b8] sm:$0xff]
        %v511 = vld [vmem:[%s249 + $0x4c0] sm:$0xff]
        %v512 = vld [vmem:[%s249 + $0x4c8] sm:$0xff]
        %v513 = vld [vmem:[%s249 + $0x4d0] sm:$0xff]
        %v514 = vld [vmem:[%s249 + $0x4d8] sm:$0xff]
        %v515 = vld [vmem:[%s249 + $0x4e0] sm:$0xff]
        %v516 = vld [vmem:[%s249 + $0x4e8] sm:$0xff]
        %v517 = vld [vmem:[%s249 + $0x4f0] sm:$0xff]
        %v518 = vld [vmem:[%s249 + $0x4f8] sm:$0xff]
        %v519 = vld [vmem:[%s249 + $0x500] sm:$0xff]
        %v520 = vld [vmem:[%s249 + $0x508] sm:$0xff]
        %v521 = vld [vmem:[%s249 + $0x510] sm:$0xff]
        %v522 = vld [vmem:[%s249 + $0x518] sm:$0xff]
        %v523 = vld [vmem:[%s249 + $0x520] sm:$0xff]
        %v524 = vld [vmem:[%s249 + $0x528] sm:$0xff]
        %v525 = vld [vmem:[%s249 + $0x530] sm:$0xff]
        %v526 = vld [vmem:[%s249 + $0x538] sm:$0xff]
        %v527 = vld [vmem:[%s249 + $0x540] sm:$0xff]
        %v528 = vld [vmem:[%s249 + $0x548] sm:$0xff]
        %v529 = vld [vmem:[%s249 + $0x550] sm:$0xff]
        %v530 = vld [vmem:[%s249 + $0x558] sm:$0xff]
        %v531 = vld [vmem:[%s249 + $0x560] sm:$0xff]
        %v532 = vld [vmem:[%s249 + $0x568] sm:$0xff]
        %v533 = vld [vmem:[%s249 + $0x570] sm:$0xff]
        %v534 = vld [vmem:[%s249 + $0x578] sm:$0xff]
        %v535 = vld [vmem:[%s249 + $0x580] sm:$0xff]
        %v536 = vld [vmem:[%s249 + $0x588] sm:$0xff]
        %v537 = vld [vmem:[%s249 + $0x590] sm:$0xff]
        %v538 = vld [vmem:[%s249 + $0x598] sm:$0xff]
        %v539 = vld [vmem:[%s249 + $0x5a0] sm:$0xff]
        %v540 = vld [vmem:[%s249 + $0x5a8] sm:$0xff]
        %v541 = vld [vmem:[%s249 + $0x5b0] sm:$0xff]
        %v542 = vld [vmem:[%s249 + $0x5b8] sm:$0xff]
        %v543 = vld [vmem:[%s249 + $0x5c0] sm:$0xff]
        %v544 = vld [vmem:[%s249 + $0x5c8] sm:$0xff]
        %v545 = vld [vmem:[%s249 + $0x5d0] sm:$0xff]
        %v546 = vld [vmem:[%s249 + $0x5d8] sm:$0xff]
        %v547 = vld [vmem:[%s249 + $0x5e0] sm:$0xff]
        %v548 = vld [vmem:[%s249 + $0x5e8] sm:$0xff]
        %v549 = vld [vmem:[%s249 + $0x5f0] sm:$0xff]
        %v550 = vld [vmem:[%s249 + $0x5f8] sm:$0xff]
        %v551 = vld [vmem:[%s249 + $0x600] sm:$0xff]
        %v552 = vld [vmem:[%s249 + $0x608] sm:$0xff]
        %v553 = vld [vmem:[%s249 + $0x610] sm:$0xff]
        %v554 = vld [vmem:[%s249 + $0x618] sm:$0xff]
        %v555 = vld [vmem:[%s249 + $0x620] sm:$0xff]
        %v556 = vld [vmem:[%s249 + $0x628] sm:$0xff]
        %v557 = vld [vmem:[%s249 + $0x630] sm:$0xff]
        %v558 = vld [vmem:[%s249 + $0x638] sm:$0xff]
        %v559 = vld [vmem:[%s249 + $0x640] sm:$0xff]
        %v560 = vld [vmem:[%s249 + $0x648] sm:$0xff]
        %v561 = vld [vmem:[%s249 + $0x650] sm:$0xff]
        %v562 = vld [vmem:[%s249 + $0x658] sm:$0xff]
        %v563 = vld [vmem:[%s249 + $0x660] sm:$0xff]
        %v564 = vld [vmem:[%s249 + $0x668] sm:$0xff]
        %v565 = vld [vmem:[%s249 + $0x670] sm:$0xff]
        %v566 = vld [vmem:[%s249 + $0x678] sm:$0xff]
        %v567 = vld [vmem:[%s249 + $0x680] sm:$0xff]
        %v568 = vld [vmem:[%s249 + $0x688] sm:$0xff]
        %v569 = vld [vmem:[%s249 + $0x690] sm:$0xff]
        %v570 = vld [vmem:[%s249 + $0x698] sm:$0xff]
        %v571 = vld [vmem:[%s249 + $0x6a0] sm:$0xff]
        %v572 = vld [vmem:[%s249 + $0x6a8] sm:$0xff]
        %v573 = vld [vmem:[%s249 + $0x6b0] sm:$0xff]
        %v574 = vld [vmem:[%s249 + $0x6b8] sm:$0xff]
        %v575 = vld [vmem:[%s249 + $0x6c0] sm:$0xff]
        %v576 = vld [vmem:[%s249 + $0x6c8] sm:$0xff]
        %v577 = vld [vmem:[%s249 + $0x6d0] sm:$0xff]
        %v578 = vld [vmem:[%s249 + $0x6d8] sm:$0xff]
        %v579 = vld [vmem:[%s249 + $0x6e0] sm:$0xff]
        %v580 = vld [vmem:[%s249 + $0x6e8] sm:$0xff]
        %v581 = vld [vmem:[%s249 + $0x6f0] sm:$0xff]
        %v582 = vld [vmem:[%s249 + $0x6f8] sm:$0xff]
        %v583 = vld [vmem:[%s249 + $0x700] sm:$0xff]
        %v584 = vld [vmem:[%s249 + $0x708] sm:$0xff]
        %v585 = vld [vmem:[%s249 + $0x710] sm:$0xff]
        %v586 = vld [vmem:[%s249 + $0x718] sm:$0xff]
        %v587 = vld [vmem:[%s249 + $0x720] sm:$0xff]
        %v588 = vld [vmem:[%s249 + $0x728] sm:$0xff]
        %v589 = vld [vmem:[%s249 + $0x730] sm:$0xff]
        %v590 = vld [vmem:[%s249 + $0x738] sm:$0xff]
        %v591 = vld [vmem:[%s249 + $0x740] sm:$0xff]
        %v592 = vld [vmem:[%s249 + $0x748] sm:$0xff]
        %v593 = vld [vmem:[%s249 + $0x750] sm:$0xff]
        %v594 = vld [vmem:[%s249 + $0x758] sm:$0xff]
        %v595 = vld [vmem:[%s249 + $0x760] sm:$0xff]
        %v596 = vld [vmem:[%s249 + $0x768] sm:$0xff]
        %v597 = vld [vmem:[%s249 + $0x770] sm:$0xff]
        %v598 = vld [vmem:[%s249 + $0x778] sm:$0xff]
        %v599 = vld [vmem:[%s249 + $0x780] sm:$0xff]
        %v600 = vld [vmem:[%s249 + $0x788] sm:$0xff]
        %v601 = vld [vmem:[%s249 + $0x790] sm:$0xff]
        %v602 = vld [vmem:[%s249 + $0x798] sm:$0xff]
        %v603 = vld [vmem:[%s249 + $0x7a0] sm:$0xff]
        %v604 = vld [vmem:[%s249 + $0x7a8] sm:$0xff]
        %v605 = vld [vmem:[%s249 + $0x7b0] sm:$0xff]
        %v606 = vld [vmem:[%s249 + $0x7b8] sm:$0xff]
        %v607 = vld [vmem:[%s249 + $0x7c0] sm:$0xff]
        %v608 = vld [vmem:[%s249 + $0x7c8] sm:$0xff]
        %v609 = vld [vmem:[%s249 + $0x7d0] sm:$0xff]
        %v610 = vld [vmem:[%s249 + $0x7d8] sm:$0xff]
        %v611 = vld [vmem:[%s249 + $0x7e0] sm:$0xff]
        %v612 = vld [vmem:[%s249 + $0x7e8] sm:$0xff]
        %v613 = vld [vmem:[%s249 + $0x7f0] sm:$0xff]
        %v614 = vld [vmem:[%s249 + $0x7f8] sm:$0xff]
        %v615 = vld [vmem:[%s249 + $0x800] sm:$0xff]
        %v616 = vld [vmem:[%s249 + $0x808] sm:$0xff]
        %v617 = vld [vmem:[%s249 + $0x810] sm:$0xff]
        %v618 = vld [vmem:[%s249 + $0x818] sm:$0xff]
        %v619 = vld [vmem:[%s249 + $0x820] sm:$0xff]
        %v620 = vld [vmem:[%s249 + $0x828] sm:$0xff]
        %v621 = vld [vmem:[%s249 + $0x830] sm:$0xff]
        %v622 = vld [vmem:[%s249 + $0x838] sm:$0xff]
        %v623 = vld [vmem:[%s249 + $0x840] sm:$0xff]
        %v624 = vld [vmem:[%s249 + $0x848] sm:$0xff]
        %v625 = vld [vmem:[%s249 + $0x850] sm:$0xff]
        %v626 = vld [vmem:[%s249 + $0x858] sm:$0xff]
        %v627 = vld [vmem:[%s249 + $0x860] sm:$0xff]
        %v628 = vld [vmem:[%s249 + $0x868] sm:$0xff]
        %v629 = vld [vmem:[%s249 + $0x870] sm:$0xff]
        %v630 = vld [vmem:[%s249 + $0x878] sm:$0xff]
        %v631 = vld [vmem:[%s249 + $0x880] sm:$0xff]
        %v632 = vld [vmem:[%s249 + $0x888] sm:$0xff]
        %v633 = vld [vmem:[%s249 + $0x890] sm:$0xff]
        %v634 = vld [vmem:[%s249 + $0x898] sm:$0xff]
        %v635 = vld [vmem:[%s249 + $0x8a0] sm:$0xff]
        %v636 = vld [vmem:[%s249 + $0x8a8] sm:$0xff]
        %v637 = vld [vmem:[%s249 + $0x8b0] sm:$0xff]
        %v638 = vld [vmem:[%s249 + $0x8b8] sm:$0xff]
        %v639 = vld [vmem:[%s249 + $0x8c0] sm:$0xff]
        %v640 = vld [vmem:[%s249 + $0x8c8] sm:$0xff]
        %v641 = vld [vmem:[%s249 + $0x8d0] sm:$0xff]
        %v642 = vld [vmem:[%s249 + $0x8d8] sm:$0xff]
        %v643 = vld [vmem:[%s249 + $0x8e0] sm:$0xff]
        %v644 = vld [vmem:[%s249 + $0x8e8] sm:$0xff]
        %v645 = vld [vmem:[%s249 + $0x8f0] sm:$0xff]
        %v646 = vld [vmem:[%s249 + $0x8f8] sm:$0xff]
        %v647 = vld [vmem:[%s249 + $0x900] sm:$0xff]
        %v648 = vld [vmem:[%s249 + $0x908] sm:$0xff]
        %v649 = vld [vmem:[%s249 + $0x910] sm:$0xff]
        %v650 = vld [vmem:[%s249 + $0x918] sm:$0xff]
        %v651 = vld [vmem:[%s249 + $0x920] sm:$0xff]
        %v652 = vld [vmem:[%s249 + $0x928] sm:$0xff]
        %v653 = vld [vmem:[%s249 + $0x930] sm:$0xff]
        %v654 = vld [vmem:[%s249 + $0x938] sm:$0xff]
        %v655 = vld [vmem:[%s249 + $0x940] sm:$0xff]
        %v656 = vld [vmem:[%s249 + $0x948] sm:$0xff]
        %v657 = vld [vmem:[%s249 + $0x950] sm:$0xff]
        %v658 = vld [vmem:[%s249 + $0x958] sm:$0xff]
        %v659 = vld [vmem:[%s249 + $0x960] sm:$0xff]
        %v660 = vld [vmem:[%s249 + $0x968] sm:$0xff]
        %v661 = vld [vmem:[%s249 + $0x970] sm:$0xff]
        %v662 = vld [vmem:[%s249 + $0x978] sm:$0xff]
        %v663 = vld [vmem:[%s249 + $0x980] sm:$0xff]
        %v664 = vld [vmem:[%s249 + $0x988] sm:$0xff]
        %v665 = vld [vmem:[%s249 + $0x990] sm:$0xff]
        %v666 = vld [vmem:[%s249 + $0x998] sm:$0xff]
        %v667 = vld [vmem:[%s249 + $0x9a0] sm:$0xff]
        %v668 = vld [vmem:[%s249 + $0x9a8] sm:$0xff]
        %v669 = vld [vmem:[%s249 + $0x9b0] sm:$0xff]
        %v670 = vld [vmem:[%s249 + $0x9b8] sm:$0xff]
        %v671 = vld [vmem:[%s249 + $0x9c0] sm:$0xff]
        %v672 = vld [vmem:[%s249 + $0x9c8] sm:$0xff]
        %v673 = vld [vmem:[%s249 + $0x9d0] sm:$0xff]
        %v674 = vld [vmem:[%s249 + $0x9d8] sm:$0xff]
        %v675 = vld [vmem:[%s249 + $0x9e0] sm:$0xff]
        %v676 = vld [vmem:[%s249 + $0x9e8] sm:$0xff]
        %v677 = vld [vmem:[%s249 + $0x9f0] sm:$0xff]
        %v678 = vld [vmem:[%s249 + $0x9f8] sm:$0xff]
        %v679 = vld [vmem:[%s249 + $0xa00] sm:$0xff]
        %v680 = vld [vmem:[%s249 + $0xa08] sm:$0xff]
        %v681 = vld [vmem:[%s249 + $0xa10] sm:$0xff]
        %v682 = vld [vmem:[%s249 + $0xa18] sm:$0xff]
        %v683 = vld [vmem:[%s249 + $0xa20] sm:$0xff]
        %v684 = vld [vmem:[%s249 + $0xa28] sm:$0xff]
        %v685 = vld [vmem:[%s249 + $0xa30] sm:$0xff]
        %v686 = vld [vmem:[%s249 + $0xa38] sm:$0xff]
        %v687 = vld [vmem:[%s249 + $0xa40] sm:$0xff]
        %v688 = vld [vmem:[%s249 + $0xa48] sm:$0xff]
        %v689 = vld [vmem:[%s249 + $0xa50] sm:$0xff]
        %v690 = vld [vmem:[%s249 + $0xa58] sm:$0xff]
        %v691 = vld [vmem:[%s249 + $0xa60] sm:$0xff]
        %v692 = vld [vmem:[%s249 + $0xa68] sm:$0xff]
        %v693 = vld [vmem:[%s249 + $0xa70] sm:$0xff]
        %v694 = vld [vmem:[%s249 + $0xa78] sm:$0xff]
        %v695 = vld [vmem:[%s249 + $0xa80] sm:$0xff]
        %v696 = vld [vmem:[%s249 + $0xa88] sm:$0xff]
        %v697 = vld [vmem:[%s249 + $0xa90] sm:$0xff]
        %v698 = vld [vmem:[%s249 + $0xa98] sm:$0xff]
        %v699 = vld [vmem:[%s249 + $0xaa0] sm:$0xff]
        %v700 = vld [vmem:[%s249 + $0xaa8] sm:$0xff]
        %v701 = vld [vmem:[%s249 + $0xab0] sm:$0xff]
        %v702 = vld [vmem:[%s249 + $0xab8] sm:$0xff]
        %v703 = vld [vmem:[%s249 + $0xac0] sm:$0xff]
        %v704 = vld [vmem:[%s249 + $0xac8] sm:$0xff]
        %v705 = vld [vmem:[%s249 + $0xad0] sm:$0xff]
        %v706 = vld [vmem:[%s249 + $0xad8] sm:$0xff]
        %v707 = vld [vmem:[%s249 + $0xae0] sm:$0xff]
        %v708 = vld [vmem:[%s249 + $0xae8] sm:$0xff]
        %v709 = vld [vmem:[%s249 + $0xaf0] sm:$0xff]
        %v710 = vld [vmem:[%s249 + $0xaf8] sm:$0xff]
        %v711 = vld [vmem:[%s249 + $0xb00] sm:$0xff]
        %v712 = vld [vmem:[%s249 + $0xb08] sm:$0xff]
        %v713 = vld [vmem:[%s249 + $0xb10] sm:$0xff]
        %v714 = vld [vmem:[%s249 + $0xb18] sm:$0xff]
        %v715 = vld [vmem:[%s249 + $0xb20] sm:$0xff]
        %v716 = vld [vmem:[%s249 + $0xb28] sm:$0xff]
        %v717 = vld [vmem:[%s249 + $0xb30] sm:$0xff]
        %v718 = vld [vmem:[%s249 + $0xb38] sm:$0xff]
        %v719 = vld [vmem:[%s249 + $0xb40] sm:$0xff]
        %v720 = vld [vmem:[%s249 + $0xb48] sm:$0xff]
        %v721 = vld [vmem:[%s249 + $0xb50] sm:$0xff]
        %v722 = vld [vmem:[%s249 + $0xb58] sm:$0xff]
        %v723 = vld [vmem:[%s249 + $0xb60] sm:$0xff]
        %v724 = vld [vmem:[%s249 + $0xb68] sm:$0xff]
        %v725 = vld [vmem:[%s249 + $0xb70] sm:$0xff]
        %v726 = vld [vmem:[%s249 + $0xb78] sm:$0xff]
        %v727 = vld [vmem:[%s249 + $0xb80] sm:$0xff]
        %v728 = vld [vmem:[%s249 + $0xb88] sm:$0xff]
        %v729 = vld [vmem:[%s249 + $0xb90] sm:$0xff]
        %v730 = vld [vmem:[%s249 + $0xb98] sm:$0xff]
        %v731 = vld [vmem:[%s249 + $0xba0] sm:$0xff]
        %v732 = vld [vmem:[%s249 + $0xba8] sm:$0xff]
        %v733 = vld [vmem:[%s249 + $0xbb0] sm:$0xff]
        %v734 = vld [vmem:[%s249 + $0xbb8] sm:$0xff]
        %v735 = vld [vmem:[%s249 + $0xbc0] sm:$0xff]
        %v736 = vld [vmem:[%s249 + $0xbc8] sm:$0xff]
        %v737 = vld [vmem:[%s249 + $0xbd0] sm:$0xff]
        %v738 = vld [vmem:[%s249 + $0xbd8] sm:$0xff]
        %v739 = vld [vmem:[%s249 + $0xbe0] sm:$0xff]
        %v740 = vld [vmem:[%s249 + $0xbe8] sm:$0xff]
        %v741 = vld [vmem:[%s249 + $0xbf0] sm:$0xff]
        %v742 = vld [vmem:[%s249 + $0xbf8] sm:$0xff]
        %v743 = vld [vmem:[%s249 + $0xc00] sm:$0xff]
        %v744 = vld [vmem:[%s249 + $0xc08] sm:$0xff]
        %v745 = vld [vmem:[%s249 + $0xc10] sm:$0xff]
        %v746 = vld [vmem:[%s249 + $0xc18] sm:$0xff]
        %v747 = vld [vmem:[%s249 + $0xc20] sm:$0xff]
        %v748 = vld [vmem:[%s249 + $0xc28] sm:$0xff]
        %v749 = vld [vmem:[%s249 + $0xc30] sm:$0xff]
        %v750 = vld [vmem:[%s249 + $0xc38] sm:$0xff]
        %v751 = vld [vmem:[%s249 + $0xc40] sm:$0xff]
        %v752 = vld [vmem:[%s249 + $0xc48] sm:$0xff]
        %v753 = vld [vmem:[%s249 + $0xc50] sm:$0xff]
        %v754 = vld [vmem:[%s249 + $0xc58] sm:$0xff]
        %v755 = vld [vmem:[%s249 + $0xc60] sm:$0xff]
        %v756 = vld [vmem:[%s249 + $0xc68] sm:$0xff]
        %v757 = vld [vmem:[%s249 + $0xc70] sm:$0xff]
        %v758 = vld [vmem:[%s249 + $0xc78] sm:$0xff]
        %v759 = vld [vmem:[%s249 + $0xc80] sm:$0xff]
        %v760 = vld [vmem:[%s249 + $0xc88] sm:$0xff]
        %v761 = vld [vmem:[%s249 + $0xc90] sm:$0xff]
        %v762 = vld [vmem:[%s249 + $0xc98] sm:$0xff]
        %v763 = vld [vmem:[%s249 + $0xca0] sm:$0xff]
        %v764 = vld [vmem:[%s249 + $0xca8] sm:$0xff]
        %v765 = vld [vmem:[%s249 + $0xcb0] sm:$0xff]
        %v766 = vld [vmem:[%s249 + $0xcb8] sm:$0xff]
        %v767 = vld [vmem:[%s249 + $0xcc0] sm:$0xff]
        %v768 = vld [vmem:[%s249 + $0xcc8] sm:$0xff]
        %v769 = vld [vmem:[%s249 + $0xcd0] sm:$0xff]
        %v770 = vld [vmem:[%s249 + $0xcd8] sm:$0xff]
        %v771 = vld [vmem:[%s249 + $0xce0] sm:$0xff]
        %v772 = vld [vmem:[%s249 + $0xce8] sm:$0xff]
        %v773 = vld [vmem:[%s249 + $0xcf0] sm:$0xff]
        %v774 = vld [vmem:[%s249 + $0xcf8] sm:$0xff]
        %v775 = vld [vmem:[%s249 + $0xd00] sm:$0xff]
        %v776 = vld [vmem:[%s249 + $0xd08] sm:$0xff]
        %v777 = vld [vmem:[%s249 + $0xd10] sm:$0xff]
        %v778 = vld [vmem:[%s249 + $0xd18] sm:$0xff]
        %v779 = vld [vmem:[%s249 + $0xd20] sm:$0xff]
        %v780 = vld [vmem:[%s249 + $0xd28] sm:$0xff]
        %v781 = vld [vmem:[%s249 + $0xd30] sm:$0xff]
        %v782 = vld [vmem:[%s249 + $0xd38] sm:$0xff]
        %v783 = vld [vmem:[%s249 + $0xd40] sm:$0xff]
        %v784 = vld [vmem:[%s249 + $0xd48] sm:$0xff]
        %v785 = vld [vmem:[%s249 + $0xd50] sm:$0xff]
        %v786 = vld [vmem:[%s249 + $0xd58] sm:$0xff]
        %v787 = vld [vmem:[%s249 + $0xd60] sm:$0xff]
        %v788 = vld [vmem:[%s249 + $0xd68] sm:$0xff]
        %v789 = vld [vmem:[%s249 + $0xd70] sm:$0xff]
        %v790 = vld [vmem:[%s249 + $0xd78] sm:$0xff]
        %v791 = vld [vmem:[%s249 + $0xd80] sm:$0xff]
        %v792 = vld [vmem:[%s249 + $0xd88] sm:$0xff]
        %v793 = vld [vmem:[%s249 + $0xd90] sm:$0xff]
        %v794 = vld [vmem:[%s249 + $0xd98] sm:$0xff]
        %v795 = vld [vmem:[%s249 + $0xda0] sm:$0xff]
        %v796 = vld [vmem:[%s249 + $0xda8] sm:$0xff]
        %v797 = vld [vmem:[%s249 + $0xdb0] sm:$0xff]
        %v798 = vld [vmem:[%s249 + $0xdb8] sm:$0xff]
        %v799 = vld [vmem:[%s249 + $0xdc0] sm:$0xff]
        %v800 = vld [vmem:[%s249 + $0xdc8] sm:$0xff]
        %v801 = vld [vmem:[%s249 + $0xdd0] sm:$0xff]
        %v802 = vld [vmem:[%s249 + $0xdd8] sm:$0xff]
        %v803 = vld [vmem:[%s249 + $0xde0] sm:$0xff]
        %v804 = vld [vmem:[%s249 + $0xde8] sm:$0xff]
        %v805 = vld [vmem:[%s249 + $0xdf0] sm:$0xff]
        %v806 = vld [vmem:[%s249 + $0xdf8] sm:$0xff]
        %v807 = vld [vmem:[%s249 + $0xe00] sm:$0xff]
        %v808 = vld [vmem:[%s249 + $0xe08] sm:$0xff]
        %v809 = vld [vmem:[%s249 + $0xe10] sm:$0xff]
        %v810 = vld [vmem:[%s249 + $0xe18] sm:$0xff]
        %v811 = vld [vmem:[%s249 + $0xe20] sm:$0xff]
        %v812 = vld [vmem:[%s249 + $0xe28] sm:$0xff]
        %v813 = vld [vmem:[%s249 + $0xe30] sm:$0xff]
        %v814 = vld [vmem:[%s249 + $0xe38] sm:$0xff]
        %v815 = vld [vmem:[%s249 + $0xe40] sm:$0xff]
        %v816 = vld [vmem:[%s249 + $0xe48] sm:$0xff]
        %v817 = vld [vmem:[%s249 + $0xe50] sm:$0xff]
        %v818 = vld [vmem:[%s249 + $0xe58] sm:$0xff]
        %v819 = vld [vmem:[%s249 + $0xe60] sm:$0xff]
        %v820 = vld [vmem:[%s249 + $0xe68] sm:$0xff]
        %v821 = vld [vmem:[%s249 + $0xe70] sm:$0xff]
        %v822 = vld [vmem:[%s249 + $0xe78] sm:$0xff]
        %v823 = vld [vmem:[%s249 + $0xe80] sm:$0xff]
        %v824 = vld [vmem:[%s249 + $0xe88] sm:$0xff]
        %v825 = vld [vmem:[%s249 + $0xe90] sm:$0xff]
        %v826 = vld [vmem:[%s249 + $0xe98] sm:$0xff]
        %v827 = vld [vmem:[%s249 + $0xea0] sm:$0xff]
        %v828 = vld [vmem:[%s249 + $0xea8] sm:$0xff]
        %v829 = vld [vmem:[%s249 + $0xeb0] sm:$0xff]
        %v830 = vld [vmem:[%s249 + $0xeb8] sm:$0xff]
        %v831 = vld [vmem:[%s249 + $0xec0] sm:$0xff]
        %v832 = vld [vmem:[%s249 + $0xec8] sm:$0xff]
        %v833 = vld [vmem:[%s249 + $0xed0] sm:$0xff]
        %v834 = vld [vmem:[%s249 + $0xed8] sm:$0xff]
        %v835 = vld [vmem:[%s249 + $0xee0] sm:$0xff]
        %v836 = vld [vmem:[%s249 + $0xee8] sm:$0xff]
        %v837 = vld [vmem:[%s249 + $0xef0] sm:$0xff]
        %v838 = vld [vmem:[%s249 + $0xef8] sm:$0xff]
        %v839 = vld [vmem:[%s249 + $0xf00] sm:$0xff]
        %v840 = vld [vmem:[%s249 + $0xf08] sm:$0xff]
        %v841 = vld [vmem:[%s249 + $0xf10] sm:$0xff]
        %v842 = vld [vmem:[%s249 + $0xf18] sm:$0xff]
        %v843 = vld [vmem:[%s249 + $0xf20] sm:$0xff]
        %v844 = vld [vmem:[%s249 + $0xf28] sm:$0xff]
        %v845 = vld [vmem:[%s249 + $0xf30] sm:$0xff]
        %v846 = vld [vmem:[%s249 + $0xf38] sm:$0xff]
        %v847 = vld [vmem:[%s249 + $0xf40] sm:$0xff]
        %v848 = vld [vmem:[%s249 + $0xf48] sm:$0xff]
        %v849 = vld [vmem:[%s249 + $0xf50] sm:$0xff]
        %v850 = vld [vmem:[%s249 + $0xf58] sm:$0xff]
        %v851 = vld [vmem:[%s249 + $0xf60] sm:$0xff]
        %v852 = vld [vmem:[%s249 + $0xf68] sm:$0xff]
        %v853 = vld [vmem:[%s249 + $0xf70] sm:$0xff]
        %v854 = vld [vmem:[%s249 + $0xf78] sm:$0xff]
        %v855 = vld [vmem:[%s249 + $0xf80] sm:$0xff]
        %v856 = vld [vmem:[%s249 + $0xf88] sm:$0xff]
        %v857 = vld [vmem:[%s249 + $0xf90] sm:$0xff]
        %v858 = vld [vmem:[%s249 + $0xf98] sm:$0xff]
        %v859 = vld [vmem:[%s249 + $0xfa0] sm:$0xff]
        %v860 = vld [vmem:[%s249 + $0xfa8] sm:$0xff]
        %v861 = vld [vmem:[%s249 + $0xfb0] sm:$0xff]
        %v862 = vld [vmem:[%s249 + $0xfb8] sm:$0xff]
        %v863 = vld [vmem:[%s249 + $0xfc0] sm:$0xff]
        %v864 = vld [vmem:[%s249 + $0xfc8] sm:$0xff]
        %v865 = vld [vmem:[%s249 + $0xfd0] sm:$0xff]
        %v866 = vld [vmem:[%s249 + $0xfd8] sm:$0xff]
        %v867 = vld [vmem:[%s249 + $0xfe0] sm:$0xff]
        %v868 = vld [vmem:[%s249 + $0xfe8] sm:$0xff]
        %v869 = vld [vmem:[%s249 + $0xff0] sm:$0xff]
        %v870 = vld [vmem:[%s249 + $0xff8] sm:$0xff]
        %v871 = vld [vmem:[%s249 + $0x1000] sm:$0xff]
        %v872 = vld [vmem:[%s249 + $0x1008] sm:$0xff]
        %v873 = vld [vmem:[%s249 + $0x1010] sm:$0xff]
        %v874 = vld [vmem:[%s249 + $0x1018] sm:$0xff]
        %v875 = vld [vmem:[%s249 + $0x1020] sm:$0xff]
        %v876 = vld [vmem:[%s249 + $0x1028] sm:$0xff]
        %v877 = vld [vmem:[%s249 + $0x1030] sm:$0xff]
        %v878 = vld [vmem:[%s249 + $0x1038] sm:$0xff]
        %v879 = vld [vmem:[%s249 + $0x1040] sm:$0xff]
        %v880 = vld [vmem:[%s249 + $0x1048] sm:$0xff]
        %v881 = vld [vmem:[%s249 + $0x1050] sm:$0xff]
        %v882 = vld [vmem:[%s249 + $0x1058] sm:$0xff]
        %v883 = vld [vmem:[%s249 + $0x1060] sm:$0xff]
        %v884 = vld [vmem:[%s249 + $0x1068] sm:$0xff]
        %v885 = vld [vmem:[%s249 + $0x1070] sm:$0xff]
        %v886 = vld [vmem:[%s249 + $0x1078] sm:$0xff]
        %v887 = vld [vmem:[%s249 + $0x1080] sm:$0xff]
        %v888 = vld [vmem:[%s249 + $0x1088] sm:$0xff]
        %v889 = vld [vmem:[%s249 + $0x1090] sm:$0xff]
        %v890 = vld [vmem:[%s249 + $0x1098] sm:$0xff]
        %v891 = vld [vmem:[%s249 + $0x10a0] sm:$0xff]
        %v892 = vld [vmem:[%s249 + $0x10a8] sm:$0xff]
        %v893 = vld [vmem:[%s249 + $0x10b0] sm:$0xff]
        %v894 = vld [vmem:[%s249 + $0x10b8] sm:$0xff]
        %v895 = vld [vmem:[%s249 + $0x10c0] sm:$0xff]
        %v896 = vld [vmem:[%s249 + $0x10c8] sm:$0xff]
        %v897 = vld [vmem:[%s249 + $0x10d0] sm:$0xff]
        %v898 = vld [vmem:[%s249 + $0x10d8] sm:$0xff]
        %v899 = vld [vmem:[%s249 + $0x10e0] sm:$0xff]
        %v900 = vld [vmem:[%s249 + $0x10e8] sm:$0xff]
        %v901 = vld [vmem:[%s249 + $0x10f0] sm:$0xff]
        %v902 = vld [vmem:[%s249 + $0x10f8] sm:$0xff]
        %v903 = vld [vmem:[%s249 + $0x1100] sm:$0xff]
        %v904 = vld [vmem:[%s249 + $0x1108] sm:$0xff]
        %v905 = vld [vmem:[%s249 + $0x1110] sm:$0xff]
        %v906 = vld [vmem:[%s249 + $0x1118] sm:$0xff]
        %v907 = vld [vmem:[%s249 + $0x1120] sm:$0xff]
        %v908 = vld [vmem:[%s249 + $0x1128] sm:$0xff]
        %v909 = vld [vmem:[%s249 + $0x1130] sm:$0xff]
        %v910 = vld [vmem:[%s249 + $0x1138] sm:$0xff]
        %v911 = vld [vmem:[%s249 + $0x1140] sm:$0xff]
        %v912 = vld [vmem:[%s249 + $0x1148] sm:$0xff]
        %v913 = vld [vmem:[%s249 + $0x1150] sm:$0xff]
        %v914 = vld [vmem:[%s249 + $0x1158] sm:$0xff]
        %v915 = vld [vmem:[%s249 + $0x1160] sm:$0xff]
        %v916 = vld [vmem:[%s249 + $0x1168] sm:$0xff]
        %v917 = vld [vmem:[%s249 + $0x1170] sm:$0xff]
        %v918 = vld [vmem:[%s249 + $0x1178] sm:$0xff]
        %v919 = vld [vmem:[%s249 + $0x1180] sm:$0xff]
        %v920 = vld [vmem:[%s249 + $0x1188] sm:$0xff]
        %v921 = vld [vmem:[%s249 + $0x1190] sm:$0xff]
        %v922 = vld [vmem:[%s249 + $0x1198] sm:$0xff]
        %v923 = vld [vmem:[%s249 + $0x11a0] sm:$0xff]
        %v924 = vld [vmem:[%s249 + $0x11a8] sm:$0xff]
        %v925 = vld [vmem:[%s249 + $0x11b0] sm:$0xff]
        %v926 = vld [vmem:[%s249 + $0x11b8] sm:$0xff]
        %v927 = vld [vmem:[%s249 + $0x11c0] sm:$0xff]
        %v928 = vld [vmem:[%s249 + $0x11c8] sm:$0xff]
        %v929 = vld [vmem:[%s249 + $0x11d0] sm:$0xff]
        %v930 = vld [vmem:[%s249 + $0x11d8] sm:$0xff]
        %v931 = vld [vmem:[%s249 + $0x11e0] sm:$0xff]
        %v932 = vld [vmem:[%s249 + $0x11e8] sm:$0xff]
        %v933 = vld [vmem:[%s249 + $0x11f0] sm:$0xff]
        %v934 = vld [vmem:[%s249 + $0x11f8] sm:$0xff]
        %v935 = vld [vmem:[%s249 + $0x1200] sm:$0xff]
        %v936 = vld [vmem:[%s249 + $0x1208] sm:$0xff]
        %v937 = vld [vmem:[%s249 + $0x1210] sm:$0xff]
        %v938 = vld [vmem:[%s249 + $0x1218] sm:$0xff]
        %v939 = vld [vmem:[%s249 + $0x1220] sm:$0xff]
        %v940 = vld [vmem:[%s249 + $0x1228] sm:$0xff]
        %v941 = vld [vmem:[%s249 + $0x1230] sm:$0xff]
        %v942 = vld [vmem:[%s249 + $0x1238] sm:$0xff]
        %v943 = vld [vmem:[%s249 + $0x1240] sm:$0xff]
        %v944 = vld [vmem:[%s249 + $0x1248] sm:$0xff]
        %v945 = vld [vmem:[%s249 + $0x1250] sm:$0xff]
        %v946 = vld [vmem:[%s249 + $0x1258] sm:$0xff]
        %v947 = vld [vmem:[%s249 + $0x1260] sm:$0xff]
        %v948 = vld [vmem:[%s249 + $0x1268] sm:$0xff]
        %v949 = vld [vmem:[%s249 + $0x1270] sm:$0xff]
        %v950 = vld [vmem:[%s249 + $0x1278] sm:$0xff]
        %v951 = vld [vmem:[%s249 + $0x1280] sm:$0xff]
        %v952 = vld [vmem:[%s249 + $0x1288] sm:$0xff]
        %v953 = vld [vmem:[%s249 + $0x1290] sm:$0xff]
        %v954 = vld [vmem:[%s249 + $0x1298] sm:$0xff]
        %v955 = vld [vmem:[%s249 + $0x12a0] sm:$0xff]
        %v956 = vld [vmem:[%s249 + $0x12a8] sm:$0xff]
        %v957 = vld [vmem:[%s249 + $0x12b0] sm:$0xff]
        %v958 = vld [vmem:[%s249 + $0x12b8] sm:$0xff]
        %v959 = vld [vmem:[%s249 + $0x12c0] sm:$0xff]
        %v960 = vld [vmem:[%s249 + $0x12c8] sm:$0xff]
        %v961 = vld [vmem:[%s249 + $0x12d0] sm:$0xff]
        %v962 = vld [vmem:[%s249 + $0x12d8] sm:$0xff]
        %v963 = vld [vmem:[%s249 + $0x12e0] sm:$0xff]
        %v964 = vld [vmem:[%s249 + $0x12e8] sm:$0xff]
        %v965 = vld [vmem:[%s249 + $0x12f0] sm:$0xff]
        %v966 = vld [vmem:[%s249 + $0x12f8] sm:$0xff]
        %v967 = vld [vmem:[%s249 + $0x1300] sm:$0xff]
        %v968 = vld [vmem:[%s249 + $0x1308] sm:$0xff]
        %v969 = vld [vmem:[%s249 + $0x1310] sm:$0xff]
        %v970 = vld [vmem:[%s249 + $0x1318] sm:$0xff]
        %v971 = vld [vmem:[%s249 + $0x1320] sm:$0xff]
        %v972 = vld [vmem:[%s249 + $0x1328] sm:$0xff]
        %v973 = vld [vmem:[%s249 + $0x1330] sm:$0xff]
        %v974 = vld [vmem:[%s249 + $0x1338] sm:$0xff]
        %v975 = vld [vmem:[%s249 + $0x1340] sm:$0xff]
        %v976 = vld [vmem:[%s249 + $0x1348] sm:$0xff]
        %v977 = vld [vmem:[%s249 + $0x1350] sm:$0xff]
        %v978 = vld [vmem:[%s249 + $0x1358] sm:$0xff]
        %v979 = vld [vmem:[%s249 + $0x1360] sm:$0xff]
        %v980 = vld [vmem:[%s249 + $0x1368] sm:$0xff]
        %v981 = vld [vmem:[%s249 + $0x1370] sm:$0xff]
        %v982 = vld [vmem:[%s249 + $0x1378] sm:$0xff]
        %v983 = vld [vmem:[%s249 + $0x1380] sm:$0xff]
        %v984 = vld [vmem:[%s249 + $0x1388] sm:$0xff]
        %v985 = vld [vmem:[%s249 + $0x1390] sm:$0xff]
        %v986 = vld [vmem:[%s249 + $0x1398] sm:$0xff]
        %v987 = vld [vmem:[%s249 + $0x13a0] sm:$0xff]
        %v988 = vld [vmem:[%s249 + $0x13a8] sm:$0xff]
        %v989 = vld [vmem:[%s249 + $0x13b0] sm:$0xff]
        %v990 = vld [vmem:[%s249 + $0x13b8] sm:$0xff]
        %v991 = vld [vmem:[%s249 + $0x13c0] sm:$0xff]
        %v992 = vld [vmem:[%s249 + $0x13c8] sm:$0xff]
        %v993 = vld [vmem:[%s249 + $0x13d0] sm:$0xff]
        %v994 = vld [vmem:[%s249 + $0x13d8] sm:$0xff]
        %v995 = vld [vmem:[%s249 + $0x13e0] sm:$0xff]
        %v996 = vld [vmem:[%s249 + $0x13e8] sm:$0xff]
        %v997 = vld [vmem:[%s249 + $0x13f0] sm:$0xff]
        %v998 = vld [vmem:[%s249 + $0x13f8] sm:$0xff]
        %v999 = vld [vmem:[%s249 + $0x1400] sm:$0xff]
        %v1000 = vld [vmem:[%s249 + $0x1408] sm:$0xff]
        %v1001 = vld [vmem:[%s249 + $0x1410] sm:$0xff]
        %v1002 = vld [vmem:[%s249 + $0x1418] sm:$0xff]
        %v1003 = vld [vmem:[%s249 + $0x1420] sm:$0xff]
        %v1004 = vld [vmem:[%s249 + $0x1428] sm:$0xff]
        %v1005 = vld [vmem:[%s249 + $0x1430] sm:$0xff]
        %v1006 = vld [vmem:[%s249 + $0x1438] sm:$0xff]
        %v1007 = vld [vmem:[%s249 + $0x1440] sm:$0xff]
        %v1008 = vld [vmem:[%s249 + $0x1448] sm:$0xff]
        %v1009 = vld [vmem:[%s249 + $0x1450] sm:$0xff]
        %v1010 = vld [vmem:[%s249 + $0x1458] sm:$0xff]
        %v1011 = vld [vmem:[%s249 + $0x1460] sm:$0xff]
        %v1012 = vld [vmem:[%s249 + $0x1468] sm:$0xff]
        %v1013 = vld [vmem:[%s249 + $0x1470] sm:$0xff]
        %v1014 = vld [vmem:[%s249 + $0x1478] sm:$0xff]
        %v1015 = vld [vmem:[%s249 + $0x1480] sm:$0xff]
        %v1016 = vld [vmem:[%s249 + $0x1488] sm:$0xff]
        %v1017 = vld [vmem:[%s249 + $0x1490] sm:$0xff]
        %v1018 = vld [vmem:[%s249 + $0x1498] sm:$0xff]
        %v1019 = vld [vmem:[%s249 + $0x14a0] sm:$0xff]
        %v1020 = vld [vmem:[%s249 + $0x14a8] sm:$0xff]
        %v1021 = vld [vmem:[%s249 + $0x14b0] sm:$0xff]
        %v1022 = vld [vmem:[%s249 + $0x14b8] sm:$0xff]
        %v1023 = vld [vmem:[%s249 + $0x14c0] sm:$0xff]
        %v1024 = vld [vmem:[%s249 + $0x14c8] sm:$0xff]
        %v1025 = vld [vmem:[%s249 + $0x14d0] sm:$0xff]
        %v1026 = vld [vmem:[%s249 + $0x14d8] sm:$0xff]
        %v1027 = vld [vmem:[%s249 + $0x14e0] sm:$0xff]
        %v1028 = vld [vmem:[%s249 + $0x14e8] sm:$0xff]
        %v1029 = vld [vmem:[%s249 + $0x14f0] sm:$0xff]
        %v1030 = vld [vmem:[%s249 + $0x14f8] sm:$0xff]
        %v1031 = vld [vmem:[%s249 + $0x1500] sm:$0xff]
        %v1032 = vld [vmem:[%s249 + $0x1508] sm:$0xff]
        %v1033 = vld [vmem:[%s249 + $0x1510] sm:$0xff]
        %v1034 = vld [vmem:[%s249 + $0x1518] sm:$0xff]
        %v1035 = vld [vmem:[%s249 + $0x1520] sm:$0xff]
        %v1036 = vld [vmem:[%s249 + $0x1528] sm:$0xff]
        %v1037 = vld [vmem:[%s249 + $0x1530] sm:$0xff]
        %v1038 = vld [vmem:[%s249 + $0x1538] sm:$0xff]
        %v1039 = vld [vmem:[%s249 + $0x1540] sm:$0xff]
        %v1040 = vld [vmem:[%s249 + $0x1548] sm:$0xff]
        %v1041 = vld [vmem:[%s249 + $0x1550] sm:$0xff]
        %v1042 = vld [vmem:[%s249 + $0x1558] sm:$0xff]
        %v1043 = vld [vmem:[%s249 + $0x1560] sm:$0xff]
        %v1044 = vld [vmem:[%s249 + $0x1568] sm:$0xff]
        %v1045 = vld [vmem:[%s249 + $0x1570] sm:$0xff]
        %v1046 = vld [vmem:[%s249 + $0x1578] sm:$0xff]
        %v1047 = vld [vmem:[%s249 + $0x1580] sm:$0xff]
        %v1048 = vld [vmem:[%s249 + $0x1588] sm:$0xff]
        %v1049 = vld [vmem:[%s249 + $0x1590] sm:$0xff]
        %v1050 = vld [vmem:[%s249 + $0x1598] sm:$0xff]
        %v1051 = vld [vmem:[%s249 + $0x15a0] sm:$0xff]
        %v1052 = vld [vmem:[%s249 + $0x15a8] sm:$0xff]
        %v1053 = vld [vmem:[%s249 + $0x15b0] sm:$0xff]
        %v1054 = vld [vmem:[%s249 + $0x15b8] sm:$0xff]
        %v1055 = vld [vmem:[%s249 + $0x15c0] sm:$0xff]
        %v1056 = vld [vmem:[%s249 + $0x15c8] sm:$0xff]
        %v1057 = vld [vmem:[%s249 + $0x15d0] sm:$0xff]
        %v1058 = vld [vmem:[%s249 + $0x15d8] sm:$0xff]
        %v1059 = vld [vmem:[%s249 + $0x15e0] sm:$0xff]
        %v1060 = vld [vmem:[%s249 + $0x15e8] sm:$0xff]
        %v1061 = vld [vmem:[%s249 + $0x15f0] sm:$0xff]
        %v1062 = vld [vmem:[%s249 + $0x15f8] sm:$0xff]
        %v1063 = vld [vmem:[%s249 + $0x1600] sm:$0xff]
        %v1064 = vld [vmem:[%s249 + $0x1608] sm:$0xff]
        %v1065 = vld [vmem:[%s249 + $0x1610] sm:$0xff]
        %v1066 = vld [vmem:[%s249 + $0x1618] sm:$0xff]
        %v1067 = vld [vmem:[%s249 + $0x1620] sm:$0xff]
        %v1068 = vld [vmem:[%s249 + $0x1628] sm:$0xff]
        %v1069 = vld [vmem:[%s249 + $0x1630] sm:$0xff]
        %v1070 = vld [vmem:[%s249 + $0x1638] sm:$0xff]
        %v1071 = vld [vmem:[%s249 + $0x1640] sm:$0xff]
        %v1072 = vld [vmem:[%s249 + $0x1648] sm:$0xff]
        %v1073 = vld [vmem:[%s249 + $0x1650] sm:$0xff]
        %v1074 = vld [vmem:[%s249 + $0x1658] sm:$0xff]
        %v1075 = vld [vmem:[%s249 + $0x1660] sm:$0xff]
        %v1076 = vld [vmem:[%s249 + $0x1668] sm:$0xff]
        %v1077 = vld [vmem:[%s249 + $0x1670] sm:$0xff]
        %v1078 = vld [vmem:[%s249 + $0x1678] sm:$0xff]
        %v1079 = vld [vmem:[%s249 + $0x1680] sm:$0xff]
        %v1080 = vld [vmem:[%s249 + $0x1688] sm:$0xff]
        %v1081 = vld [vmem:[%s249 + $0x1690] sm:$0xff]
        %v1082 = vld [vmem:[%s249 + $0x1698] sm:$0xff]
        %v1083 = vld [vmem:[%s249 + $0x16a0] sm:$0xff]
        %v1084 = vld [vmem:[%s249 + $0x16a8] sm:$0xff]
        %v1085 = vld [vmem:[%s249 + $0x16b0] sm:$0xff]
        %v1086 = vld [vmem:[%s249 + $0x16b8] sm:$0xff]
        %v1087 = vld [vmem:[%s249 + $0x16c0] sm:$0xff]
        %v1088 = vld [vmem:[%s249 + $0x16c8] sm:$0xff]
        %v1089 = vld [vmem:[%s249 + $0x16d0] sm:$0xff]
        %v1090 = vld [vmem:[%s249 + $0x16d8] sm:$0xff]
        %v1091 = vld [vmem:[%s249 + $0x16e0] sm:$0xff]
        %v1092 = vld [vmem:[%s249 + $0x16e8] sm:$0xff]
        %v1093 = vld [vmem:[%s249 + $0x16f0] sm:$0xff]
        %v1094 = vld [vmem:[%s249 + $0x16f8] sm:$0xff]
        %v1095 = vld [vmem:[%s249 + $0x1700] sm:$0xff]
        %v1096 = vld [vmem:[%s249 + $0x1708] sm:$0xff]
        %v1097 = vld [vmem:[%s249 + $0x1710] sm:$0xff]
        %v1098 = vld [vmem:[%s249 + $0x1718] sm:$0xff]
        %v1099 = vld [vmem:[%s249 + $0x1720] sm:$0xff]
        %v1100 = vld [vmem:[%s249 + $0x1728] sm:$0xff]
        %v1101 = vld [vmem:[%s249 + $0x1730] sm:$0xff]
        %v1102 = vld [vmem:[%s249 + $0x1738] sm:$0xff]
        %v1103 = vld [vmem:[%s249 + $0x1740] sm:$0xff]
        %v1104 = vld [vmem:[%s249 + $0x1748] sm:$0xff]
        %v1105 = vld [vmem:[%s249 + $0x1750] sm:$0xff]
        %v1106 = vld [vmem:[%s249 + $0x1758] sm:$0xff]
        %v1107 = vld [vmem:[%s249 + $0x1760] sm:$0xff]
        %v1108 = vld [vmem:[%s249 + $0x1768] sm:$0xff]
        %v1109 = vld [vmem:[%s249 + $0x1770] sm:$0xff]
        %v1110 = vld [vmem:[%s249 + $0x1778] sm:$0xff]
        %v1111 = vld [vmem:[%s249 + $0x1780] sm:$0xff]
        %v1112 = vld [vmem:[%s249 + $0x1788] sm:$0xff]
        %v1113 = vld [vmem:[%s249 + $0x1790] sm:$0xff]
        %v1114 = vld [vmem:[%s249 + $0x1798] sm:$0xff]
        %v1115 = vld [vmem:[%s249 + $0x17a0] sm:$0xff]
        %v1116 = vld [vmem:[%s249 + $0x17a8] sm:$0xff]
        %v1117 = vld [vmem:[%s249 + $0x17b0] sm:$0xff]
        %v1118 = vld [vmem:[%s249 + $0x17b8] sm:$0xff]
        %v1119 = vld [vmem:[%s249 + $0x17c0] sm:$0xff]
        %v1120 = vld [vmem:[%s249 + $0x17c8] sm:$0xff]
        %v1121 = vld [vmem:[%s249 + $0x17d0] sm:$0xff]
        %v1122 = vld [vmem:[%s249 + $0x17d8] sm:$0xff]
        %v1123 = vld [vmem:[%s249 + $0x17e0] sm:$0xff]
        %v1124 = vld [vmem:[%s249 + $0x17e8] sm:$0xff]
        %v1125 = vld [vmem:[%s249 + $0x17f0] sm:$0xff]
        %v1126 = vld [vmem:[%s249 + $0x17f8] sm:$0xff]
        %v1127 = vld [vmem:[%s258] sm:$0xf]
        %v1129 = vlaneseq
        %v1130 = vshrl.u32 %v1129, 7
        %v1131 = vsub.s32 0, %v1130
        %v1132 = vrot.slane %v1127, %v1131
        %v1133 = vlaneseq
        %v1134 = vshrl.u32 %v1133, 7
        %v1135 = vsub.s32 1, %v1134
        %v1136 = vrot.slane %v1127, %v1135
        %v1137 = vlaneseq
        %v1138 = vshrl.u32 %v1137, 7
        %v1139 = vsub.s32 2, %v1138
        %v1140 = vrot.slane %v1127, %v1139
        %v1141 = vlaneseq
        %v1142 = vshrl.u32 %v1141, 7
        %v1143 = vsub.s32 3, %v1142
        %v1144 = vrot.slane %v1127, %v1143
        %v1917 = vunpack.c.l.b16 %v359
        %v1918 = vunpack.c.h.b16 %v359
        %v1919 = vunpack.c.l.b16 %v360
        %v1920 = vunpack.c.h.b16 %v360
        %v1921 = vunpack.c.l.b16 %v361
        %v1922 = vunpack.c.h.b16 %v361
        %v1923 = vunpack.c.l.b16 %v362
        %v1924 = vunpack.c.h.b16 %v362
        %v1925 = vunpack.c.l.b16 %v363
        %v1926 = vunpack.c.h.b16 %v363
        %v1927 = vunpack.c.l.b16 %v364
        %v1928 = vunpack.c.h.b16 %v364
        %v1929 = vunpack.c.l.b16 %v365
        %v1930 = vunpack.c.h.b16 %v365
        %v1931 = vunpack.c.l.b16 %v366
        %v1932 = vunpack.c.h.b16 %v366
        %v1933 = vunpack.c.l.b16 %v367
        %v1934 = vunpack.c.h.b16 %v367
        %v1935 = vunpack.c.l.b16 %v368
        %v1936 = vunpack.c.h.b16 %v368
        %v1937 = vunpack.c.l.b16 %v369
        %v1938 = vunpack.c.h.b16 %v369
        %v1939 = vunpack.c.l.b16 %v370
        %v1940 = vunpack.c.h.b16 %v370
        %v1941 = vunpack.c.l.b16 %v371
        %v1942 = vunpack.c.h.b16 %v371
        %v1943 = vunpack.c.l.b16 %v372
        %v1944 = vunpack.c.h.b16 %v372
        %v1945 = vunpack.c.l.b16 %v373
        %v1946 = vunpack.c.h.b16 %v373
        %v1947 = vunpack.c.l.b16 %v374
        %v1948 = vunpack.c.h.b16 %v374
        %v1949 = vunpack.c.l.b16 %v375
        %v1950 = vunpack.c.h.b16 %v375
        %v1951 = vunpack.c.l.b16 %v376
        %v1952 = vunpack.c.h.b16 %v376
        %v1953 = vunpack.c.l.b16 %v377
        %v1954 = vunpack.c.h.b16 %v377
        %v1955 = vunpack.c.l.b16 %v378
        %v1956 = vunpack.c.h.b16 %v378
        %v1957 = vunpack.c.l.b16 %v379
        %v1958 = vunpack.c.h.b16 %v379
        %v1959 = vunpack.c.l.b16 %v380
        %v1960 = vunpack.c.h.b16 %v380
        %v1961 = vunpack.c.l.b16 %v381
        %v1962 = vunpack.c.h.b16 %v381
        %v1963 = vunpack.c.l.b16 %v382
        %v1964 = vunpack.c.h.b16 %v382
        %v1965 = vunpack.c.l.b16 %v383
        %v1966 = vunpack.c.h.b16 %v383
        %v1967 = vunpack.c.l.b16 %v384
        %v1968 = vunpack.c.h.b16 %v384
        %v1969 = vunpack.c.l.b16 %v385
        %v1970 = vunpack.c.h.b16 %v385
        %v1971 = vunpack.c.l.b16 %v386
        %v1972 = vunpack.c.h.b16 %v386
        %v1973 = vunpack.c.l.b16 %v387
        %v1974 = vunpack.c.h.b16 %v387
        %v1975 = vunpack.c.l.b16 %v388
        %v1976 = vunpack.c.h.b16 %v388
        %v1977 = vunpack.c.l.b16 %v389
        %v1978 = vunpack.c.h.b16 %v389
        %v1979 = vunpack.c.l.b16 %v390
        %v1980 = vunpack.c.h.b16 %v390
        %v1981 = vunpack.c.l.b16 %v391
        %v1982 = vunpack.c.h.b16 %v391
        %v1983 = vunpack.c.l.b16 %v392
        %v1984 = vunpack.c.h.b16 %v392
        %v1985 = vunpack.c.l.b16 %v393
        %v1986 = vunpack.c.h.b16 %v393
        %v1987 = vunpack.c.l.b16 %v394
        %v1988 = vunpack.c.h.b16 %v394
        %v1989 = vunpack.c.l.b16 %v395
        %v1990 = vunpack.c.h.b16 %v395
        %v1991 = vunpack.c.l.b16 %v396
        %v1992 = vunpack.c.h.b16 %v396
        %v1993 = vunpack.c.l.b16 %v397
        %v1994 = vunpack.c.h.b16 %v397
        %v1995 = vunpack.c.l.b16 %v398
        %v1996 = vunpack.c.h.b16 %v398
        %v1997 = vunpack.c.l.b16 %v399
        %v1998 = vunpack.c.h.b16 %v399
        %v1999 = vunpack.c.l.b16 %v400
        %v2000 = vunpack.c.h.b16 %v400
        %v2001 = vunpack.c.l.b16 %v401
        %v2002 = vunpack.c.h.b16 %v401
        %v2003 = vunpack.c.l.b16 %v402
        %v2004 = vunpack.c.h.b16 %v402
        %v2005 = vunpack.c.l.b16 %v403
        %v2006 = vunpack.c.h.b16 %v403
        %v2007 = vunpack.c.l.b16 %v404
        %v2008 = vunpack.c.h.b16 %v404
        %v2009 = vunpack.c.l.b16 %v405
        %v2010 = vunpack.c.h.b16 %v405
        %v2011 = vunpack.c.l.b16 %v406
        %v2012 = vunpack.c.h.b16 %v406
        %v2013 = vunpack.c.l.b16 %v407
        %v2014 = vunpack.c.h.b16 %v407
        %v2015 = vunpack.c.l.b16 %v408
        %v2016 = vunpack.c.h.b16 %v408
        %v2017 = vunpack.c.l.b16 %v409
        %v2018 = vunpack.c.h.b16 %v409
        %v2019 = vunpack.c.l.b16 %v410
        %v2020 = vunpack.c.h.b16 %v410
        %v2021 = vunpack.c.l.b16 %v411
        %v2022 = vunpack.c.h.b16 %v411
        %v2023 = vunpack.c.l.b16 %v412
        %v2024 = vunpack.c.h.b16 %v412
        %v2025 = vunpack.c.l.b16 %v413
        %v2026 = vunpack.c.h.b16 %v413
        %v2027 = vunpack.c.l.b16 %v414
        %v2028 = vunpack.c.h.b16 %v414
        %v2029 = vunpack.c.l.b16 %v415
        %v2030 = vunpack.c.h.b16 %v415
        %v2031 = vunpack.c.l.b16 %v416
        %v2032 = vunpack.c.h.b16 %v416
        %v2033 = vunpack.c.l.b16 %v417
        %v2034 = vunpack.c.h.b16 %v417
        %v2035 = vunpack.c.l.b16 %v418
        %v2036 = vunpack.c.h.b16 %v418
        %v2037 = vunpack.c.l.b16 %v419
        %v2038 = vunpack.c.h.b16 %v419
        %v2039 = vunpack.c.l.b16 %v420
        %v2040 = vunpack.c.h.b16 %v420
        %v2041 = vunpack.c.l.b16 %v421
        %v2042 = vunpack.c.h.b16 %v421
        %v2043 = vunpack.c.l.b16 %v422
        %v2044 = vunpack.c.h.b16 %v422
        %v2045 = vunpack.c.l.b16 %v423
        %v2046 = vunpack.c.h.b16 %v423
        %v2047 = vunpack.c.l.b16 %v424
        %v2048 = vunpack.c.h.b16 %v424
        %v2049 = vunpack.c.l.b16 %v425
        %v2050 = vunpack.c.h.b16 %v425
        %v2051 = vunpack.c.l.b16 %v426
        %v2052 = vunpack.c.h.b16 %v426
        %v2053 = vunpack.c.l.b16 %v427
        %v2054 = vunpack.c.h.b16 %v427
        %v2055 = vunpack.c.l.b16 %v428
        %v2056 = vunpack.c.h.b16 %v428
        %v2057 = vunpack.c.l.b16 %v429
        %v2058 = vunpack.c.h.b16 %v429
        %v2059 = vunpack.c.l.b16 %v430
        %v2060 = vunpack.c.h.b16 %v430
        %v2061 = vunpack.c.l.b16 %v431
        %v2062 = vunpack.c.h.b16 %v431
        %v2063 = vunpack.c.l.b16 %v432
        %v2064 = vunpack.c.h.b16 %v432
        %v2065 = vunpack.c.l.b16 %v433
        %v2066 = vunpack.c.h.b16 %v433
        %v2067 = vunpack.c.l.b16 %v434
        %v2068 = vunpack.c.h.b16 %v434
        %v2069 = vunpack.c.l.b16 %v435
        %v2070 = vunpack.c.h.b16 %v435
        %v2071 = vunpack.c.l.b16 %v436
        %v2072 = vunpack.c.h.b16 %v436
        %v2073 = vunpack.c.l.b16 %v437
        %v2074 = vunpack.c.h.b16 %v437
        %v2075 = vunpack.c.l.b16 %v438
        %v2076 = vunpack.c.h.b16 %v438
        %v2077 = vunpack.c.l.b16 %v439
        %v2078 = vunpack.c.h.b16 %v439
        %v2079 = vunpack.c.l.b16 %v440
        %v2080 = vunpack.c.h.b16 %v440
        %v2081 = vunpack.c.l.b16 %v441
        %v2082 = vunpack.c.h.b16 %v441
        %v2083 = vunpack.c.l.b16 %v442
        %v2084 = vunpack.c.h.b16 %v442
        %v2085 = vunpack.c.l.b16 %v443
        %v2086 = vunpack.c.h.b16 %v443
        %v2087 = vunpack.c.l.b16 %v444
        %v2088 = vunpack.c.h.b16 %v444
        %v2089 = vunpack.c.l.b16 %v445
        %v2090 = vunpack.c.h.b16 %v445
        %v2091 = vunpack.c.l.b16 %v446
        %v2092 = vunpack.c.h.b16 %v446
        %v2093 = vunpack.c.l.b16 %v447
        %v2094 = vunpack.c.h.b16 %v447
        %v2095 = vunpack.c.l.b16 %v448
        %v2096 = vunpack.c.h.b16 %v448
        %v2097 = vunpack.c.l.b16 %v449
        %v2098 = vunpack.c.h.b16 %v449
        %v2099 = vunpack.c.l.b16 %v450
        %v2100 = vunpack.c.h.b16 %v450
        %v2101 = vunpack.c.l.b16 %v451
        %v2102 = vunpack.c.h.b16 %v451
        %v2103 = vunpack.c.l.b16 %v452
        %v2104 = vunpack.c.h.b16 %v452
        %v2105 = vunpack.c.l.b16 %v453
        %v2106 = vunpack.c.h.b16 %v453
        %v2107 = vunpack.c.l.b16 %v454
        %v2108 = vunpack.c.h.b16 %v454
        %v2109 = vunpack.c.l.b16 %v455
        %v2110 = vunpack.c.h.b16 %v455
        %v2111 = vunpack.c.l.b16 %v456
        %v2112 = vunpack.c.h.b16 %v456
        %v2113 = vunpack.c.l.b16 %v457
        %v2114 = vunpack.c.h.b16 %v457
        %v2115 = vunpack.c.l.b16 %v458
        %v2116 = vunpack.c.h.b16 %v458
        %v2117 = vunpack.c.l.b16 %v459
        %v2118 = vunpack.c.h.b16 %v459
        %v2119 = vunpack.c.l.b16 %v460
        %v2120 = vunpack.c.h.b16 %v460
        %v2121 = vunpack.c.l.b16 %v461
        %v2122 = vunpack.c.h.b16 %v461
        %v2123 = vunpack.c.l.b16 %v462
        %v2124 = vunpack.c.h.b16 %v462
        %v2125 = vunpack.c.l.b16 %v463
        %v2126 = vunpack.c.h.b16 %v463
        %v2127 = vunpack.c.l.b16 %v464
        %v2128 = vunpack.c.h.b16 %v464
        %v2129 = vunpack.c.l.b16 %v465
        %v2130 = vunpack.c.h.b16 %v465
        %v2131 = vunpack.c.l.b16 %v466
        %v2132 = vunpack.c.h.b16 %v466
        %v2133 = vunpack.c.l.b16 %v467
        %v2134 = vunpack.c.h.b16 %v467
        %v2135 = vunpack.c.l.b16 %v468
        %v2136 = vunpack.c.h.b16 %v468
        %v2137 = vunpack.c.l.b16 %v469
        %v2138 = vunpack.c.h.b16 %v469
        %v2139 = vunpack.c.l.b16 %v470
        %v2140 = vunpack.c.h.b16 %v470
        %v2141 = vunpack.c.l.b16 %v471
        %v2142 = vunpack.c.h.b16 %v471
        %v2143 = vunpack.c.l.b16 %v472
        %v2144 = vunpack.c.h.b16 %v472
        %v2145 = vunpack.c.l.b16 %v473
        %v2146 = vunpack.c.h.b16 %v473
        %v2147 = vunpack.c.l.b16 %v474
        %v2148 = vunpack.c.h.b16 %v474
        %v2149 = vunpack.c.l.b16 %v475
        %v2150 = vunpack.c.h.b16 %v475
        %v2151 = vunpack.c.l.b16 %v476
        %v2152 = vunpack.c.h.b16 %v476
        %v2153 = vunpack.c.l.b16 %v477
        %v2154 = vunpack.c.h.b16 %v477
        %v2155 = vunpack.c.l.b16 %v478
        %v2156 = vunpack.c.h.b16 %v478
        %v2157 = vunpack.c.l.b16 %v479
        %v2158 = vunpack.c.h.b16 %v479
        %v2159 = vunpack.c.l.b16 %v480
        %v2160 = vunpack.c.h.b16 %v480
        %v2161 = vunpack.c.l.b16 %v481
        %v2162 = vunpack.c.h.b16 %v481
        %v2163 = vunpack.c.l.b16 %v482
        %v2164 = vunpack.c.h.b16 %v482
        %v2165 = vunpack.c.l.b16 %v483
        %v2166 = vunpack.c.h.b16 %v483
        %v2167 = vunpack.c.l.b16 %v484
        %v2168 = vunpack.c.h.b16 %v484
        %v2169 = vunpack.c.l.b16 %v485
        %v2170 = vunpack.c.h.b16 %v485
        %v2171 = vunpack.c.l.b16 %v486
        %v2172 = vunpack.c.h.b16 %v486
        %v2173 = vunpack.c.l.b16 %v487
        %v2174 = vunpack.c.h.b16 %v487
        %v2175 = vunpack.c.l.b16 %v488
        %v2176 = vunpack.c.h.b16 %v488
        %v2177 = vunpack.c.l.b16 %v489
        %v2178 = vunpack.c.h.b16 %v489
        %v2179 = vunpack.c.l.b16 %v490
        %v2180 = vunpack.c.h.b16 %v490
        %v2181 = vunpack.c.l.b16 %v491
        %v2182 = vunpack.c.h.b16 %v491
        %v2183 = vunpack.c.l.b16 %v492
        %v2184 = vunpack.c.h.b16 %v492
        %v2185 = vunpack.c.l.b16 %v493
        %v2186 = vunpack.c.h.b16 %v493
        %v2187 = vunpack.c.l.b16 %v494
        %v2188 = vunpack.c.h.b16 %v494
        %v2189 = vunpack.c.l.b16 %v495
        %v2190 = vunpack.c.h.b16 %v495
        %v2191 = vunpack.c.l.b16 %v496
        %v2192 = vunpack.c.h.b16 %v496
        %v2193 = vunpack.c.l.b16 %v497
        %v2194 = vunpack.c.h.b16 %v497
        %v2195 = vunpack.c.l.b16 %v498
        %v2196 = vunpack.c.h.b16 %v498
        %v2197 = vunpack.c.l.b16 %v499
        %v2198 = vunpack.c.h.b16 %v499
        %v2199 = vunpack.c.l.b16 %v500
        %v2200 = vunpack.c.h.b16 %v500
        %v2201 = vunpack.c.l.b16 %v501
        %v2202 = vunpack.c.h.b16 %v501
        %v2203 = vunpack.c.l.b16 %v502
        %v2204 = vunpack.c.h.b16 %v502
        %v2205 = vunpack.c.l.b16 %v503
        %v2206 = vunpack.c.h.b16 %v503
        %v2207 = vunpack.c.l.b16 %v504
        %v2208 = vunpack.c.h.b16 %v504
        %v2209 = vunpack.c.l.b16 %v505
        %v2210 = vunpack.c.h.b16 %v505
        %v2211 = vunpack.c.l.b16 %v506
        %v2212 = vunpack.c.h.b16 %v506
        %v2213 = vunpack.c.l.b16 %v507
        %v2214 = vunpack.c.h.b16 %v507
        %v2215 = vunpack.c.l.b16 %v508
        %v2216 = vunpack.c.h.b16 %v508
        %v2217 = vunpack.c.l.b16 %v509
        %v2218 = vunpack.c.h.b16 %v509
        %v2219 = vunpack.c.l.b16 %v510
        %v2220 = vunpack.c.h.b16 %v510
        %v2221 = vunpack.c.l.b16 %v511
        %v2222 = vunpack.c.h.b16 %v511
        %v2223 = vunpack.c.l.b16 %v512
        %v2224 = vunpack.c.h.b16 %v512
        %v2225 = vunpack.c.l.b16 %v513
        %v2226 = vunpack.c.h.b16 %v513
        %v2227 = vunpack.c.l.b16 %v514
        %v2228 = vunpack.c.h.b16 %v514
        %v2229 = vunpack.c.l.b16 %v515
        %v2230 = vunpack.c.h.b16 %v515
        %v2231 = vunpack.c.l.b16 %v516
        %v2232 = vunpack.c.h.b16 %v516
        %v2233 = vunpack.c.l.b16 %v517
        %v2234 = vunpack.c.h.b16 %v517
        %v2235 = vunpack.c.l.b16 %v518
        %v2236 = vunpack.c.h.b16 %v518
        %v2237 = vunpack.c.l.b16 %v519
        %v2238 = vunpack.c.h.b16 %v519
        %v2239 = vunpack.c.l.b16 %v520
        %v2240 = vunpack.c.h.b16 %v520
        %v2241 = vunpack.c.l.b16 %v521
        %v2242 = vunpack.c.h.b16 %v521
        %v2243 = vunpack.c.l.b16 %v522
        %v2244 = vunpack.c.h.b16 %v522
        %v2245 = vunpack.c.l.b16 %v523
        %v2246 = vunpack.c.h.b16 %v523
        %v2247 = vunpack.c.l.b16 %v524
        %v2248 = vunpack.c.h.b16 %v524
        %v2249 = vunpack.c.l.b16 %v525
        %v2250 = vunpack.c.h.b16 %v525
        %v2251 = vunpack.c.l.b16 %v526
        %v2252 = vunpack.c.h.b16 %v526
        %v2253 = vunpack.c.l.b16 %v527
        %v2254 = vunpack.c.h.b16 %v527
        %v2255 = vunpack.c.l.b16 %v528
        %v2256 = vunpack.c.h.b16 %v528
        %v2257 = vunpack.c.l.b16 %v529
        %v2258 = vunpack.c.h.b16 %v529
        %v2259 = vunpack.c.l.b16 %v530
        %v2260 = vunpack.c.h.b16 %v530
        %v2261 = vunpack.c.l.b16 %v531
        %v2262 = vunpack.c.h.b16 %v531
        %v2263 = vunpack.c.l.b16 %v532
        %v2264 = vunpack.c.h.b16 %v532
        %v2265 = vunpack.c.l.b16 %v533
        %v2266 = vunpack.c.h.b16 %v533
        %v2267 = vunpack.c.l.b16 %v534
        %v2268 = vunpack.c.h.b16 %v534
        %v2269 = vunpack.c.l.b16 %v535
        %v2270 = vunpack.c.h.b16 %v535
        %v2271 = vunpack.c.l.b16 %v536
        %v2272 = vunpack.c.h.b16 %v536
        %v2273 = vunpack.c.l.b16 %v537
        %v2274 = vunpack.c.h.b16 %v537
        %v2275 = vunpack.c.l.b16 %v538
        %v2276 = vunpack.c.h.b16 %v538
        %v2277 = vunpack.c.l.b16 %v539
        %v2278 = vunpack.c.h.b16 %v539
        %v2279 = vunpack.c.l.b16 %v540
        %v2280 = vunpack.c.h.b16 %v540
        %v2281 = vunpack.c.l.b16 %v541
        %v2282 = vunpack.c.h.b16 %v541
        %v2283 = vunpack.c.l.b16 %v542
        %v2284 = vunpack.c.h.b16 %v542
        %v2285 = vunpack.c.l.b16 %v543
        %v2286 = vunpack.c.h.b16 %v543
        %v2287 = vunpack.c.l.b16 %v544
        %v2288 = vunpack.c.h.b16 %v544
        %v2289 = vunpack.c.l.b16 %v545
        %v2290 = vunpack.c.h.b16 %v545
        %v2291 = vunpack.c.l.b16 %v546
        %v2292 = vunpack.c.h.b16 %v546
        %v2293 = vunpack.c.l.b16 %v547
        %v2294 = vunpack.c.h.b16 %v547
        %v2295 = vunpack.c.l.b16 %v548
        %v2296 = vunpack.c.h.b16 %v548
        %v2297 = vunpack.c.l.b16 %v549
        %v2298 = vunpack.c.h.b16 %v549
        %v2299 = vunpack.c.l.b16 %v550
        %v2300 = vunpack.c.h.b16 %v550
        %v2301 = vunpack.c.l.b16 %v551
        %v2302 = vunpack.c.h.b16 %v551
        %v2303 = vunpack.c.l.b16 %v552
        %v2304 = vunpack.c.h.b16 %v552
        %v2305 = vunpack.c.l.b16 %v553
        %v2306 = vunpack.c.h.b16 %v553
        %v2307 = vunpack.c.l.b16 %v554
        %v2308 = vunpack.c.h.b16 %v554
        %v2309 = vunpack.c.l.b16 %v555
        %v2310 = vunpack.c.h.b16 %v555
        %v2311 = vunpack.c.l.b16 %v556
        %v2312 = vunpack.c.h.b16 %v556
        %v2313 = vunpack.c.l.b16 %v557
        %v2314 = vunpack.c.h.b16 %v557
        %v2315 = vunpack.c.l.b16 %v558
        %v2316 = vunpack.c.h.b16 %v558
        %v2317 = vunpack.c.l.b16 %v559
        %v2318 = vunpack.c.h.b16 %v559
        %v2319 = vunpack.c.l.b16 %v560
        %v2320 = vunpack.c.h.b16 %v560
        %v2321 = vunpack.c.l.b16 %v561
        %v2322 = vunpack.c.h.b16 %v561
        %v2323 = vunpack.c.l.b16 %v562
        %v2324 = vunpack.c.h.b16 %v562
        %v2325 = vunpack.c.l.b16 %v563
        %v2326 = vunpack.c.h.b16 %v563
        %v2327 = vunpack.c.l.b16 %v564
        %v2328 = vunpack.c.h.b16 %v564
        %v2329 = vunpack.c.l.b16 %v565
        %v2330 = vunpack.c.h.b16 %v565
        %v2331 = vunpack.c.l.b16 %v566
        %v2332 = vunpack.c.h.b16 %v566
        %v2333 = vunpack.c.l.b16 %v567
        %v2334 = vunpack.c.h.b16 %v567
        %v2335 = vunpack.c.l.b16 %v568
        %v2336 = vunpack.c.h.b16 %v568
        %v2337 = vunpack.c.l.b16 %v569
        %v2338 = vunpack.c.h.b16 %v569
        %v2339 = vunpack.c.l.b16 %v570
        %v2340 = vunpack.c.h.b16 %v570
        %v2341 = vunpack.c.l.b16 %v571
        %v2342 = vunpack.c.h.b16 %v571
        %v2343 = vunpack.c.l.b16 %v572
        %v2344 = vunpack.c.h.b16 %v572
        %v2345 = vunpack.c.l.b16 %v573
        %v2346 = vunpack.c.h.b16 %v573
        %v2347 = vunpack.c.l.b16 %v574
        %v2348 = vunpack.c.h.b16 %v574
        %v2349 = vunpack.c.l.b16 %v575
        %v2350 = vunpack.c.h.b16 %v575
        %v2351 = vunpack.c.l.b16 %v576
        %v2352 = vunpack.c.h.b16 %v576
        %v2353 = vunpack.c.l.b16 %v577
        %v2354 = vunpack.c.h.b16 %v577
        %v2355 = vunpack.c.l.b16 %v578
        %v2356 = vunpack.c.h.b16 %v578
        %v2357 = vunpack.c.l.b16 %v579
        %v2358 = vunpack.c.h.b16 %v579
        %v2359 = vunpack.c.l.b16 %v580
        %v2360 = vunpack.c.h.b16 %v580
        %v2361 = vunpack.c.l.b16 %v581
        %v2362 = vunpack.c.h.b16 %v581
        %v2363 = vunpack.c.l.b16 %v582
        %v2364 = vunpack.c.h.b16 %v582
        %v2365 = vunpack.c.l.b16 %v583
        %v2366 = vunpack.c.h.b16 %v583
        %v2367 = vunpack.c.l.b16 %v584
        %v2368 = vunpack.c.h.b16 %v584
        %v2369 = vunpack.c.l.b16 %v585
        %v2370 = vunpack.c.h.b16 %v585
        %v2371 = vunpack.c.l.b16 %v586
        %v2372 = vunpack.c.h.b16 %v586
        %v2373 = vunpack.c.l.b16 %v587
        %v2374 = vunpack.c.h.b16 %v587
        %v2375 = vunpack.c.l.b16 %v588
        %v2376 = vunpack.c.h.b16 %v588
        %v2377 = vunpack.c.l.b16 %v589
        %v2378 = vunpack.c.h.b16 %v589
        %v2379 = vunpack.c.l.b16 %v590
        %v2380 = vunpack.c.h.b16 %v590
        %v2381 = vunpack.c.l.b16 %v591
        %v2382 = vunpack.c.h.b16 %v591
        %v2383 = vunpack.c.l.b16 %v592
        %v2384 = vunpack.c.h.b16 %v592
        %v2385 = vunpack.c.l.b16 %v593
        %v2386 = vunpack.c.h.b16 %v593
        %v2387 = vunpack.c.l.b16 %v594
        %v2388 = vunpack.c.h.b16 %v594
        %v2389 = vunpack.c.l.b16 %v595
        %v2390 = vunpack.c.h.b16 %v595
        %v2391 = vunpack.c.l.b16 %v596
        %v2392 = vunpack.c.h.b16 %v596
        %v2393 = vunpack.c.l.b16 %v597
        %v2394 = vunpack.c.h.b16 %v597
        %v2395 = vunpack.c.l.b16 %v598
        %v2396 = vunpack.c.h.b16 %v598
        %v2397 = vunpack.c.l.b16 %v599
        %v2398 = vunpack.c.h.b16 %v599
        %v2399 = vunpack.c.l.b16 %v600
        %v2400 = vunpack.c.h.b16 %v600
        %v2401 = vunpack.c.l.b16 %v601
        %v2402 = vunpack.c.h.b16 %v601
        %v2403 = vunpack.c.l.b16 %v602
        %v2404 = vunpack.c.h.b16 %v602
        %v2405 = vunpack.c.l.b16 %v603
        %v2406 = vunpack.c.h.b16 %v603
        %v2407 = vunpack.c.l.b16 %v604
        %v2408 = vunpack.c.h.b16 %v604
        %v2409 = vunpack.c.l.b16 %v605
        %v2410 = vunpack.c.h.b16 %v605
        %v2411 = vunpack.c.l.b16 %v606
        %v2412 = vunpack.c.h.b16 %v606
        %v2413 = vunpack.c.l.b16 %v607
        %v2414 = vunpack.c.h.b16 %v607
        %v2415 = vunpack.c.l.b16 %v608
        %v2416 = vunpack.c.h.b16 %v608
        %v2417 = vunpack.c.l.b16 %v609
        %v2418 = vunpack.c.h.b16 %v609
        %v2419 = vunpack.c.l.b16 %v610
        %v2420 = vunpack.c.h.b16 %v610
        %v2421 = vunpack.c.l.b16 %v611
        %v2422 = vunpack.c.h.b16 %v611
        %v2423 = vunpack.c.l.b16 %v612
        %v2424 = vunpack.c.h.b16 %v612
        %v2425 = vunpack.c.l.b16 %v613
        %v2426 = vunpack.c.h.b16 %v613
        %v2427 = vunpack.c.l.b16 %v614
        %v2428 = vunpack.c.h.b16 %v614
        %v2429 = vunpack.c.l.b16 %v615
        %v2430 = vunpack.c.h.b16 %v615
        %v2431 = vunpack.c.l.b16 %v616
        %v2432 = vunpack.c.h.b16 %v616
        %v2433 = vunpack.c.l.b16 %v617
        %v2434 = vunpack.c.h.b16 %v617
        %v2435 = vunpack.c.l.b16 %v618
        %v2436 = vunpack.c.h.b16 %v618
        %v2437 = vunpack.c.l.b16 %v619
        %v2438 = vunpack.c.h.b16 %v619
        %v2439 = vunpack.c.l.b16 %v620
        %v2440 = vunpack.c.h.b16 %v620
        %v2441 = vunpack.c.l.b16 %v621
        %v2442 = vunpack.c.h.b16 %v621
        %v2443 = vunpack.c.l.b16 %v622
        %v2444 = vunpack.c.h.b16 %v622
        %v2445 = vunpack.c.l.b16 %v623
        %v2446 = vunpack.c.h.b16 %v623
        %v2447 = vunpack.c.l.b16 %v624
        %v2448 = vunpack.c.h.b16 %v624
        %v2449 = vunpack.c.l.b16 %v625
        %v2450 = vunpack.c.h.b16 %v625
        %v2451 = vunpack.c.l.b16 %v626
        %v2452 = vunpack.c.h.b16 %v626
        %v2453 = vunpack.c.l.b16 %v627
        %v2454 = vunpack.c.h.b16 %v627
        %v2455 = vunpack.c.l.b16 %v628
        %v2456 = vunpack.c.h.b16 %v628
        %v2457 = vunpack.c.l.b16 %v629
        %v2458 = vunpack.c.h.b16 %v629
        %v2459 = vunpack.c.l.b16 %v630
        %v2460 = vunpack.c.h.b16 %v630
        %v2461 = vunpack.c.l.b16 %v631
        %v2462 = vunpack.c.h.b16 %v631
        %v2463 = vunpack.c.l.b16 %v632
        %v2464 = vunpack.c.h.b16 %v632
        %v2465 = vunpack.c.l.b16 %v633
        %v2466 = vunpack.c.h.b16 %v633
        %v2467 = vunpack.c.l.b16 %v634
        %v2468 = vunpack.c.h.b16 %v634
        %v2469 = vunpack.c.l.b16 %v635
        %v2470 = vunpack.c.h.b16 %v635
        %v2471 = vunpack.c.l.b16 %v636
        %v2472 = vunpack.c.h.b16 %v636
        %v2473 = vunpack.c.l.b16 %v637
        %v2474 = vunpack.c.h.b16 %v637
        %v2475 = vunpack.c.l.b16 %v638
        %v2476 = vunpack.c.h.b16 %v638
        %v2477 = vunpack.c.l.b16 %v639
        %v2478 = vunpack.c.h.b16 %v639
        %v2479 = vunpack.c.l.b16 %v640
        %v2480 = vunpack.c.h.b16 %v640
        %v2481 = vunpack.c.l.b16 %v641
        %v2482 = vunpack.c.h.b16 %v641
        %v2483 = vunpack.c.l.b16 %v642
        %v2484 = vunpack.c.h.b16 %v642
        %v2485 = vunpack.c.l.b16 %v643
        %v2486 = vunpack.c.h.b16 %v643
        %v2487 = vunpack.c.l.b16 %v644
        %v2488 = vunpack.c.h.b16 %v644
        %v2489 = vunpack.c.l.b16 %v645
        %v2490 = vunpack.c.h.b16 %v645
        %v2491 = vunpack.c.l.b16 %v646
        %v2492 = vunpack.c.h.b16 %v646
        %v2493 = vunpack.c.l.b16 %v647
        %v2494 = vunpack.c.h.b16 %v647
        %v2495 = vunpack.c.l.b16 %v648
        %v2496 = vunpack.c.h.b16 %v648
        %v2497 = vunpack.c.l.b16 %v649
        %v2498 = vunpack.c.h.b16 %v649
        %v2499 = vunpack.c.l.b16 %v650
        %v2500 = vunpack.c.h.b16 %v650
        %v2501 = vunpack.c.l.b16 %v651
        %v2502 = vunpack.c.h.b16 %v651
        %v2503 = vunpack.c.l.b16 %v652
        %v2504 = vunpack.c.h.b16 %v652
        %v2505 = vunpack.c.l.b16 %v653
        %v2506 = vunpack.c.h.b16 %v653
        %v2507 = vunpack.c.l.b16 %v654
        %v2508 = vunpack.c.h.b16 %v654
        %v2509 = vunpack.c.l.b16 %v655
        %v2510 = vunpack.c.h.b16 %v655
        %v2511 = vunpack.c.l.b16 %v656
        %v2512 = vunpack.c.h.b16 %v656
        %v2513 = vunpack.c.l.b16 %v657
        %v2514 = vunpack.c.h.b16 %v657
        %v2515 = vunpack.c.l.b16 %v658
        %v2516 = vunpack.c.h.b16 %v658
        %v2517 = vunpack.c.l.b16 %v659
        %v2518 = vunpack.c.h.b16 %v659
        %v2519 = vunpack.c.l.b16 %v660
        %v2520 = vunpack.c.h.b16 %v660
        %v2521 = vunpack.c.l.b16 %v661
        %v2522 = vunpack.c.h.b16 %v661
        %v2523 = vunpack.c.l.b16 %v662
        %v2524 = vunpack.c.h.b16 %v662
        %v2525 = vunpack.c.l.b16 %v663
        %v2526 = vunpack.c.h.b16 %v663
        %v2527 = vunpack.c.l.b16 %v664
        %v2528 = vunpack.c.h.b16 %v664
        %v2529 = vunpack.c.l.b16 %v665
        %v2530 = vunpack.c.h.b16 %v665
        %v2531 = vunpack.c.l.b16 %v666
        %v2532 = vunpack.c.h.b16 %v666
        %v2533 = vunpack.c.l.b16 %v667
        %v2534 = vunpack.c.h.b16 %v667
        %v2535 = vunpack.c.l.b16 %v668
        %v2536 = vunpack.c.h.b16 %v668
        %v2537 = vunpack.c.l.b16 %v669
        %v2538 = vunpack.c.h.b16 %v669
        %v2539 = vunpack.c.l.b16 %v670
        %v2540 = vunpack.c.h.b16 %v670
        %v2541 = vunpack.c.l.b16 %v671
        %v2542 = vunpack.c.h.b16 %v671
        %v2543 = vunpack.c.l.b16 %v672
        %v2544 = vunpack.c.h.b16 %v672
        %v2545 = vunpack.c.l.b16 %v673
        %v2546 = vunpack.c.h.b16 %v673
        %v2547 = vunpack.c.l.b16 %v674
        %v2548 = vunpack.c.h.b16 %v674
        %v2549 = vunpack.c.l.b16 %v675
        %v2550 = vunpack.c.h.b16 %v675
        %v2551 = vunpack.c.l.b16 %v676
        %v2552 = vunpack.c.h.b16 %v676
        %v2553 = vunpack.c.l.b16 %v677
        %v2554 = vunpack.c.h.b16 %v677
        %v2555 = vunpack.c.l.b16 %v678
        %v2556 = vunpack.c.h.b16 %v678
        %v2557 = vunpack.c.l.b16 %v679
        %v2558 = vunpack.c.h.b16 %v679
        %v2559 = vunpack.c.l.b16 %v680
        %v2560 = vunpack.c.h.b16 %v680
        %v2561 = vunpack.c.l.b16 %v681
        %v2562 = vunpack.c.h.b16 %v681
        %v2563 = vunpack.c.l.b16 %v682
        %v2564 = vunpack.c.h.b16 %v682
        %v2565 = vunpack.c.l.b16 %v683
        %v2566 = vunpack.c.h.b16 %v683
        %v2567 = vunpack.c.l.b16 %v684
        %v2568 = vunpack.c.h.b16 %v684
        %v2569 = vunpack.c.l.b16 %v685
        %v2570 = vunpack.c.h.b16 %v685
        %v2571 = vunpack.c.l.b16 %v686
        %v2572 = vunpack.c.h.b16 %v686
        %v2573 = vunpack.c.l.b16 %v687
        %v2574 = vunpack.c.h.b16 %v687
        %v2575 = vunpack.c.l.b16 %v688
        %v2576 = vunpack.c.h.b16 %v688
        %v2577 = vunpack.c.l.b16 %v689
        %v2578 = vunpack.c.h.b16 %v689
        %v2579 = vunpack.c.l.b16 %v690
        %v2580 = vunpack.c.h.b16 %v690
        %v2581 = vunpack.c.l.b16 %v691
        %v2582 = vunpack.c.h.b16 %v691
        %v2583 = vunpack.c.l.b16 %v692
        %v2584 = vunpack.c.h.b16 %v692
        %v2585 = vunpack.c.l.b16 %v693
        %v2586 = vunpack.c.h.b16 %v693
        %v2587 = vunpack.c.l.b16 %v694
        %v2588 = vunpack.c.h.b16 %v694
        %v2589 = vunpack.c.l.b16 %v695
        %v2590 = vunpack.c.h.b16 %v695
        %v2591 = vunpack.c.l.b16 %v696
        %v2592 = vunpack.c.h.b16 %v696
        %v2593 = vunpack.c.l.b16 %v697
        %v2594 = vunpack.c.h.b16 %v697
        %v2595 = vunpack.c.l.b16 %v698
        %v2596 = vunpack.c.h.b16 %v698
        %v2597 = vunpack.c.l.b16 %v699
        %v2598 = vunpack.c.h.b16 %v699
        %v2599 = vunpack.c.l.b16 %v700
        %v2600 = vunpack.c.h.b16 %v700
        %v2601 = vunpack.c.l.b16 %v701
        %v2602 = vunpack.c.h.b16 %v701
        %v2603 = vunpack.c.l.b16 %v702
        %v2604 = vunpack.c.h.b16 %v702
        %v2605 = vunpack.c.l.b16 %v703
        %v2606 = vunpack.c.h.b16 %v703
        %v2607 = vunpack.c.l.b16 %v704
        %v2608 = vunpack.c.h.b16 %v704
        %v2609 = vunpack.c.l.b16 %v705
        %v2610 = vunpack.c.h.b16 %v705
        %v2611 = vunpack.c.l.b16 %v706
        %v2612 = vunpack.c.h.b16 %v706
        %v2613 = vunpack.c.l.b16 %v707
        %v2614 = vunpack.c.h.b16 %v707
        %v2615 = vunpack.c.l.b16 %v708
        %v2616 = vunpack.c.h.b16 %v708
        %v2617 = vunpack.c.l.b16 %v709
        %v2618 = vunpack.c.h.b16 %v709
        %v2619 = vunpack.c.l.b16 %v710
        %v2620 = vunpack.c.h.b16 %v710
        %v2621 = vunpack.c.l.b16 %v711
        %v2622 = vunpack.c.h.b16 %v711
        %v2623 = vunpack.c.l.b16 %v712
        %v2624 = vunpack.c.h.b16 %v712
        %v2625 = vunpack.c.l.b16 %v713
        %v2626 = vunpack.c.h.b16 %v713
        %v2627 = vunpack.c.l.b16 %v714
        %v2628 = vunpack.c.h.b16 %v714
        %v2629 = vunpack.c.l.b16 %v715
        %v2630 = vunpack.c.h.b16 %v715
        %v2631 = vunpack.c.l.b16 %v716
        %v2632 = vunpack.c.h.b16 %v716
        %v2633 = vunpack.c.l.b16 %v717
        %v2634 = vunpack.c.h.b16 %v717
        %v2635 = vunpack.c.l.b16 %v718
        %v2636 = vunpack.c.h.b16 %v718
        %v2637 = vunpack.c.l.b16 %v719
        %v2638 = vunpack.c.h.b16 %v719
        %v2639 = vunpack.c.l.b16 %v720
        %v2640 = vunpack.c.h.b16 %v720
        %v2641 = vunpack.c.l.b16 %v721
        %v2642 = vunpack.c.h.b16 %v721
        %v2643 = vunpack.c.l.b16 %v722
        %v2644 = vunpack.c.h.b16 %v722
        %v2645 = vunpack.c.l.b16 %v723
        %v2646 = vunpack.c.h.b16 %v723
        %v2647 = vunpack.c.l.b16 %v724
        %v2648 = vunpack.c.h.b16 %v724
        %v2649 = vunpack.c.l.b16 %v725
        %v2650 = vunpack.c.h.b16 %v725
        %v2651 = vunpack.c.l.b16 %v726
        %v2652 = vunpack.c.h.b16 %v726
        %v2653 = vunpack.c.l.b16 %v727
        %v2654 = vunpack.c.h.b16 %v727
        %v2655 = vunpack.c.l.b16 %v728
        %v2656 = vunpack.c.h.b16 %v728
        %v2657 = vunpack.c.l.b16 %v729
        %v2658 = vunpack.c.h.b16 %v729
        %v2659 = vunpack.c.l.b16 %v730
        %v2660 = vunpack.c.h.b16 %v730
        %v2661 = vunpack.c.l.b16 %v731
        %v2662 = vunpack.c.h.b16 %v731
        %v2663 = vunpack.c.l.b16 %v732
        %v2664 = vunpack.c.h.b16 %v732
        %v2665 = vunpack.c.l.b16 %v733
        %v2666 = vunpack.c.h.b16 %v733
        %v2667 = vunpack.c.l.b16 %v734
        %v2668 = vunpack.c.h.b16 %v734
        %v2669 = vunpack.c.l.b16 %v735
        %v2670 = vunpack.c.h.b16 %v735
        %v2671 = vunpack.c.l.b16 %v736
        %v2672 = vunpack.c.h.b16 %v736
        %v2673 = vunpack.c.l.b16 %v737
        %v2674 = vunpack.c.h.b16 %v737
        %v2675 = vunpack.c.l.b16 %v738
        %v2676 = vunpack.c.h.b16 %v738
        %v2677 = vunpack.c.l.b16 %v739
        %v2678 = vunpack.c.h.b16 %v739
        %v2679 = vunpack.c.l.b16 %v740
        %v2680 = vunpack.c.h.b16 %v740
        %v2681 = vunpack.c.l.b16 %v741
        %v2682 = vunpack.c.h.b16 %v741
        %v2683 = vunpack.c.l.b16 %v742
        %v2684 = vunpack.c.h.b16 %v742
        %v2685 = vunpack.c.l.b16 %v743
        %v2686 = vunpack.c.h.b16 %v743
        %v2687 = vunpack.c.l.b16 %v744
        %v2688 = vunpack.c.h.b16 %v744
        %v2689 = vunpack.c.l.b16 %v745
        %v2690 = vunpack.c.h.b16 %v745
        %v2691 = vunpack.c.l.b16 %v746
        %v2692 = vunpack.c.h.b16 %v746
        %v2693 = vunpack.c.l.b16 %v747
        %v2694 = vunpack.c.h.b16 %v747
        %v2695 = vunpack.c.l.b16 %v748
        %v2696 = vunpack.c.h.b16 %v748
        %v2697 = vunpack.c.l.b16 %v749
        %v2698 = vunpack.c.h.b16 %v749
        %v2699 = vunpack.c.l.b16 %v750
        %v2700 = vunpack.c.h.b16 %v750
        %v2701 = vunpack.c.l.b16 %v751
        %v2702 = vunpack.c.h.b16 %v751
        %v2703 = vunpack.c.l.b16 %v752
        %v2704 = vunpack.c.h.b16 %v752
        %v2705 = vunpack.c.l.b16 %v753
        %v2706 = vunpack.c.h.b16 %v753
        %v2707 = vunpack.c.l.b16 %v754
        %v2708 = vunpack.c.h.b16 %v754
        %v2709 = vunpack.c.l.b16 %v755
        %v2710 = vunpack.c.h.b16 %v755
        %v2711 = vunpack.c.l.b16 %v756
        %v2712 = vunpack.c.h.b16 %v756
        %v2713 = vunpack.c.l.b16 %v757
        %v2714 = vunpack.c.h.b16 %v757
        %v2715 = vunpack.c.l.b16 %v758
        %v2716 = vunpack.c.h.b16 %v758
        %v2717 = vunpack.c.l.b16 %v759
        %v2718 = vunpack.c.h.b16 %v759
        %v2719 = vunpack.c.l.b16 %v760
        %v2720 = vunpack.c.h.b16 %v760
        %v2721 = vunpack.c.l.b16 %v761
        %v2722 = vunpack.c.h.b16 %v761
        %v2723 = vunpack.c.l.b16 %v762
        %v2724 = vunpack.c.h.b16 %v762
        %v2725 = vunpack.c.l.b16 %v763
        %v2726 = vunpack.c.h.b16 %v763
        %v2727 = vunpack.c.l.b16 %v764
        %v2728 = vunpack.c.h.b16 %v764
        %v2729 = vunpack.c.l.b16 %v765
        %v2730 = vunpack.c.h.b16 %v765
        %v2731 = vunpack.c.l.b16 %v766
        %v2732 = vunpack.c.h.b16 %v766
        %v2733 = vunpack.c.l.b16 %v767
        %v2734 = vunpack.c.h.b16 %v767
        %v2735 = vunpack.c.l.b16 %v768
        %v2736 = vunpack.c.h.b16 %v768
        %v2737 = vunpack.c.l.b16 %v769
        %v2738 = vunpack.c.h.b16 %v769
        %v2739 = vunpack.c.l.b16 %v770
        %v2740 = vunpack.c.h.b16 %v770
        %v2741 = vunpack.c.l.b16 %v771
        %v2742 = vunpack.c.h.b16 %v771
        %v2743 = vunpack.c.l.b16 %v772
        %v2744 = vunpack.c.h.b16 %v772
        %v2745 = vunpack.c.l.b16 %v773
        %v2746 = vunpack.c.h.b16 %v773
        %v2747 = vunpack.c.l.b16 %v774
        %v2748 = vunpack.c.h.b16 %v774
        %v2749 = vunpack.c.l.b16 %v775
        %v2750 = vunpack.c.h.b16 %v775
        %v2751 = vunpack.c.l.b16 %v776
        %v2752 = vunpack.c.h.b16 %v776
        %v2753 = vunpack.c.l.b16 %v777
        %v2754 = vunpack.c.h.b16 %v777
        %v2755 = vunpack.c.l.b16 %v778
        %v2756 = vunpack.c.h.b16 %v778
        %v2757 = vunpack.c.l.b16 %v779
        %v2758 = vunpack.c.h.b16 %v779
        %v2759 = vunpack.c.l.b16 %v780
        %v2760 = vunpack.c.h.b16 %v780
        %v2761 = vunpack.c.l.b16 %v781
        %v2762 = vunpack.c.h.b16 %v781
        %v2763 = vunpack.c.l.b16 %v782
        %v2764 = vunpack.c.h.b16 %v782
        %v2765 = vunpack.c.l.b16 %v783
        %v2766 = vunpack.c.h.b16 %v783
        %v2767 = vunpack.c.l.b16 %v784
        %v2768 = vunpack.c.h.b16 %v784
        %v2769 = vunpack.c.l.b16 %v785
        %v2770 = vunpack.c.h.b16 %v785
        %v2771 = vunpack.c.l.b16 %v786
        %v2772 = vunpack.c.h.b16 %v786
        %v2773 = vunpack.c.l.b16 %v787
        %v2774 = vunpack.c.h.b16 %v787
        %v2775 = vunpack.c.l.b16 %v788
        %v2776 = vunpack.c.h.b16 %v788
        %v2777 = vunpack.c.l.b16 %v789
        %v2778 = vunpack.c.h.b16 %v789
        %v2779 = vunpack.c.l.b16 %v790
        %v2780 = vunpack.c.h.b16 %v790
        %v2781 = vunpack.c.l.b16 %v791
        %v2782 = vunpack.c.h.b16 %v791
        %v2783 = vunpack.c.l.b16 %v792
        %v2784 = vunpack.c.h.b16 %v792
        %v2785 = vunpack.c.l.b16 %v793
        %v2786 = vunpack.c.h.b16 %v793
        %v2787 = vunpack.c.l.b16 %v794
        %v2788 = vunpack.c.h.b16 %v794
        %v2789 = vunpack.c.l.b16 %v795
        %v2790 = vunpack.c.h.b16 %v795
        %v2791 = vunpack.c.l.b16 %v796
        %v2792 = vunpack.c.h.b16 %v796
        %v2793 = vunpack.c.l.b16 %v797
        %v2794 = vunpack.c.h.b16 %v797
        %v2795 = vunpack.c.l.b16 %v798
        %v2796 = vunpack.c.h.b16 %v798
        %v2797 = vunpack.c.l.b16 %v799
        %v2798 = vunpack.c.h.b16 %v799
        %v2799 = vunpack.c.l.b16 %v800
        %v2800 = vunpack.c.h.b16 %v800
        %v2801 = vunpack.c.l.b16 %v801
        %v2802 = vunpack.c.h.b16 %v801
        %v2803 = vunpack.c.l.b16 %v802
        %v2804 = vunpack.c.h.b16 %v802
        %v2805 = vunpack.c.l.b16 %v803
        %v2806 = vunpack.c.h.b16 %v803
        %v2807 = vunpack.c.l.b16 %v804
        %v2808 = vunpack.c.h.b16 %v804
        %v2809 = vunpack.c.l.b16 %v805
        %v2810 = vunpack.c.h.b16 %v805
        %v2811 = vunpack.c.l.b16 %v806
        %v2812 = vunpack.c.h.b16 %v806
        %v2813 = vunpack.c.l.b16 %v807
        %v2814 = vunpack.c.h.b16 %v807
        %v2815 = vunpack.c.l.b16 %v808
        %v2816 = vunpack.c.h.b16 %v808
        %v2817 = vunpack.c.l.b16 %v809
        %v2818 = vunpack.c.h.b16 %v809
        %v2819 = vunpack.c.l.b16 %v810
        %v2820 = vunpack.c.h.b16 %v810
        %v2821 = vunpack.c.l.b16 %v811
        %v2822 = vunpack.c.h.b16 %v811
        %v2823 = vunpack.c.l.b16 %v812
        %v2824 = vunpack.c.h.b16 %v812
        %v2825 = vunpack.c.l.b16 %v813
        %v2826 = vunpack.c.h.b16 %v813
        %v2827 = vunpack.c.l.b16 %v814
        %v2828 = vunpack.c.h.b16 %v814
        %v2829 = vunpack.c.l.b16 %v815
        %v2830 = vunpack.c.h.b16 %v815
        %v2831 = vunpack.c.l.b16 %v816
        %v2832 = vunpack.c.h.b16 %v816
        %v2833 = vunpack.c.l.b16 %v817
        %v2834 = vunpack.c.h.b16 %v817
        %v2835 = vunpack.c.l.b16 %v818
        %v2836 = vunpack.c.h.b16 %v818
        %v2837 = vunpack.c.l.b16 %v819
        %v2838 = vunpack.c.h.b16 %v819
        %v2839 = vunpack.c.l.b16 %v820
        %v2840 = vunpack.c.h.b16 %v820
        %v2841 = vunpack.c.l.b16 %v821
        %v2842 = vunpack.c.h.b16 %v821
        %v2843 = vunpack.c.l.b16 %v822
        %v2844 = vunpack.c.h.b16 %v822
        %v2845 = vunpack.c.l.b16 %v823
        %v2846 = vunpack.c.h.b16 %v823
        %v2847 = vunpack.c.l.b16 %v824
        %v2848 = vunpack.c.h.b16 %v824
        %v2849 = vunpack.c.l.b16 %v825
        %v2850 = vunpack.c.h.b16 %v825
        %v2851 = vunpack.c.l.b16 %v826
        %v2852 = vunpack.c.h.b16 %v826
        %v2853 = vunpack.c.l.b16 %v827
        %v2854 = vunpack.c.h.b16 %v827
        %v2855 = vunpack.c.l.b16 %v828
        %v2856 = vunpack.c.h.b16 %v828
        %v2857 = vunpack.c.l.b16 %v829
        %v2858 = vunpack.c.h.b16 %v829
        %v2859 = vunpack.c.l.b16 %v830
        %v2860 = vunpack.c.h.b16 %v830
        %v2861 = vunpack.c.l.b16 %v831
        %v2862 = vunpack.c.h.b16 %v831
        %v2863 = vunpack.c.l.b16 %v832
        %v2864 = vunpack.c.h.b16 %v832
        %v2865 = vunpack.c.l.b16 %v833
        %v2866 = vunpack.c.h.b16 %v833
        %v2867 = vunpack.c.l.b16 %v834
        %v2868 = vunpack.c.h.b16 %v834
        %v2869 = vunpack.c.l.b16 %v835
        %v2870 = vunpack.c.h.b16 %v835
        %v2871 = vunpack.c.l.b16 %v836
        %v2872 = vunpack.c.h.b16 %v836
        %v2873 = vunpack.c.l.b16 %v837
        %v2874 = vunpack.c.h.b16 %v837
        %v2875 = vunpack.c.l.b16 %v838
        %v2876 = vunpack.c.h.b16 %v838
        %v2877 = vunpack.c.l.b16 %v839
        %v2878 = vunpack.c.h.b16 %v839
        %v2879 = vunpack.c.l.b16 %v840
        %v2880 = vunpack.c.h.b16 %v840
        %v2881 = vunpack.c.l.b16 %v841
        %v2882 = vunpack.c.h.b16 %v841
        %v2883 = vunpack.c.l.b16 %v842
        %v2884 = vunpack.c.h.b16 %v842
        %v2885 = vunpack.c.l.b16 %v843
        %v2886 = vunpack.c.h.b16 %v843
        %v2887 = vunpack.c.l.b16 %v844
        %v2888 = vunpack.c.h.b16 %v844
        %v2889 = vunpack.c.l.b16 %v845
        %v2890 = vunpack.c.h.b16 %v845
        %v2891 = vunpack.c.l.b16 %v846
        %v2892 = vunpack.c.h.b16 %v846
        %v2893 = vunpack.c.l.b16 %v847
        %v2894 = vunpack.c.h.b16 %v847
        %v2895 = vunpack.c.l.b16 %v848
        %v2896 = vunpack.c.h.b16 %v848
        %v2897 = vunpack.c.l.b16 %v849
        %v2898 = vunpack.c.h.b16 %v849
        %v2899 = vunpack.c.l.b16 %v850
        %v2900 = vunpack.c.h.b16 %v850
        %v2901 = vunpack.c.l.b16 %v851
        %v2902 = vunpack.c.h.b16 %v851
        %v2903 = vunpack.c.l.b16 %v852
        %v2904 = vunpack.c.h.b16 %v852
        %v2905 = vunpack.c.l.b16 %v853
        %v2906 = vunpack.c.h.b16 %v853
        %v2907 = vunpack.c.l.b16 %v854
        %v2908 = vunpack.c.h.b16 %v854
        %v2909 = vunpack.c.l.b16 %v855
        %v2910 = vunpack.c.h.b16 %v855
        %v2911 = vunpack.c.l.b16 %v856
        %v2912 = vunpack.c.h.b16 %v856
        %v2913 = vunpack.c.l.b16 %v857
        %v2914 = vunpack.c.h.b16 %v857
        %v2915 = vunpack.c.l.b16 %v858
        %v2916 = vunpack.c.h.b16 %v858
        %v2917 = vunpack.c.l.b16 %v859
        %v2918 = vunpack.c.h.b16 %v859
        %v2919 = vunpack.c.l.b16 %v860
        %v2920 = vunpack.c.h.b16 %v860
        %v2921 = vunpack.c.l.b16 %v861
        %v2922 = vunpack.c.h.b16 %v861
        %v2923 = vunpack.c.l.b16 %v862
        %v2924 = vunpack.c.h.b16 %v862
        %v2925 = vunpack.c.l.b16 %v863
        %v2926 = vunpack.c.h.b16 %v863
        %v2927 = vunpack.c.l.b16 %v864
        %v2928 = vunpack.c.h.b16 %v864
        %v2929 = vunpack.c.l.b16 %v865
        %v2930 = vunpack.c.h.b16 %v865
        %v2931 = vunpack.c.l.b16 %v866
        %v2932 = vunpack.c.h.b16 %v866
        %v2933 = vunpack.c.l.b16 %v867
        %v2934 = vunpack.c.h.b16 %v867
        %v2935 = vunpack.c.l.b16 %v868
        %v2936 = vunpack.c.h.b16 %v868
        %v2937 = vunpack.c.l.b16 %v869
        %v2938 = vunpack.c.h.b16 %v869
        %v2939 = vunpack.c.l.b16 %v870
        %v2940 = vunpack.c.h.b16 %v870
        %v2941 = vunpack.c.l.b16 %v871
        %v2942 = vunpack.c.h.b16 %v871
        %v2943 = vunpack.c.l.b16 %v872
        %v2944 = vunpack.c.h.b16 %v872
        %v2945 = vunpack.c.l.b16 %v873
        %v2946 = vunpack.c.h.b16 %v873
        %v2947 = vunpack.c.l.b16 %v874
        %v2948 = vunpack.c.h.b16 %v874
        %v2949 = vunpack.c.l.b16 %v875
        %v2950 = vunpack.c.h.b16 %v875
        %v2951 = vunpack.c.l.b16 %v876
        %v2952 = vunpack.c.h.b16 %v876
        %v2953 = vunpack.c.l.b16 %v877
        %v2954 = vunpack.c.h.b16 %v877
        %v2955 = vunpack.c.l.b16 %v878
        %v2956 = vunpack.c.h.b16 %v878
        %v2957 = vunpack.c.l.b16 %v879
        %v2958 = vunpack.c.h.b16 %v879
        %v2959 = vunpack.c.l.b16 %v880
        %v2960 = vunpack.c.h.b16 %v880
        %v2961 = vunpack.c.l.b16 %v881
        %v2962 = vunpack.c.h.b16 %v881
        %v2963 = vunpack.c.l.b16 %v882
        %v2964 = vunpack.c.h.b16 %v882
        %v2965 = vunpack.c.l.b16 %v883
        %v2966 = vunpack.c.h.b16 %v883
        %v2967 = vunpack.c.l.b16 %v884
        %v2968 = vunpack.c.h.b16 %v884
        %v2969 = vunpack.c.l.b16 %v885
        %v2970 = vunpack.c.h.b16 %v885
        %v2971 = vunpack.c.l.b16 %v886
        %v2972 = vunpack.c.h.b16 %v886
        %v2973 = vunpack.c.l.b16 %v887
        %v2974 = vunpack.c.h.b16 %v887
        %v2975 = vunpack.c.l.b16 %v888
        %v2976 = vunpack.c.h.b16 %v888
        %v2977 = vunpack.c.l.b16 %v889
        %v2978 = vunpack.c.h.b16 %v889
        %v2979 = vunpack.c.l.b16 %v890
        %v2980 = vunpack.c.h.b16 %v890
        %v2981 = vunpack.c.l.b16 %v891
        %v2982 = vunpack.c.h.b16 %v891
        %v2983 = vunpack.c.l.b16 %v892
        %v2984 = vunpack.c.h.b16 %v892
        %v2985 = vunpack.c.l.b16 %v893
        %v2986 = vunpack.c.h.b16 %v893
        %v2987 = vunpack.c.l.b16 %v894
        %v2988 = vunpack.c.h.b16 %v894
        %v2989 = vunpack.c.l.b16 %v895
        %v2990 = vunpack.c.h.b16 %v895
        %v2991 = vunpack.c.l.b16 %v896
        %v2992 = vunpack.c.h.b16 %v896
        %v2993 = vunpack.c.l.b16 %v897
        %v2994 = vunpack.c.h.b16 %v897
        %v2995 = vunpack.c.l.b16 %v898
        %v2996 = vunpack.c.h.b16 %v898
        %v2997 = vunpack.c.l.b16 %v899
        %v2998 = vunpack.c.h.b16 %v899
        %v2999 = vunpack.c.l.b16 %v900
        %v3000 = vunpack.c.h.b16 %v900
        %v3001 = vunpack.c.l.b16 %v901
        %v3002 = vunpack.c.h.b16 %v901
        %v3003 = vunpack.c.l.b16 %v902
        %v3004 = vunpack.c.h.b16 %v902
        %v3005 = vunpack.c.l.b16 %v903
        %v3006 = vunpack.c.h.b16 %v903
        %v3007 = vunpack.c.l.b16 %v904
        %v3008 = vunpack.c.h.b16 %v904
        %v3009 = vunpack.c.l.b16 %v905
        %v3010 = vunpack.c.h.b16 %v905
        %v3011 = vunpack.c.l.b16 %v906
        %v3012 = vunpack.c.h.b16 %v906
        %v3013 = vunpack.c.l.b16 %v907
        %v3014 = vunpack.c.h.b16 %v907
        %v3015 = vunpack.c.l.b16 %v908
        %v3016 = vunpack.c.h.b16 %v908
        %v3017 = vunpack.c.l.b16 %v909
        %v3018 = vunpack.c.h.b16 %v909
        %v3019 = vunpack.c.l.b16 %v910
        %v3020 = vunpack.c.h.b16 %v910
        %v3021 = vunpack.c.l.b16 %v911
        %v3022 = vunpack.c.h.b16 %v911
        %v3023 = vunpack.c.l.b16 %v912
        %v3024 = vunpack.c.h.b16 %v912
        %v3025 = vunpack.c.l.b16 %v913
        %v3026 = vunpack.c.h.b16 %v913
        %v3027 = vunpack.c.l.b16 %v914
        %v3028 = vunpack.c.h.b16 %v914
        %v3029 = vunpack.c.l.b16 %v915
        %v3030 = vunpack.c.h.b16 %v915
        %v3031 = vunpack.c.l.b16 %v916
        %v3032 = vunpack.c.h.b16 %v916
        %v3033 = vunpack.c.l.b16 %v917
        %v3034 = vunpack.c.h.b16 %v917
        %v3035 = vunpack.c.l.b16 %v918
        %v3036 = vunpack.c.h.b16 %v918
        %v3037 = vunpack.c.l.b16 %v919
        %v3038 = vunpack.c.h.b16 %v919
        %v3039 = vunpack.c.l.b16 %v920
        %v3040 = vunpack.c.h.b16 %v920
        %v3041 = vunpack.c.l.b16 %v921
        %v3042 = vunpack.c.h.b16 %v921
        %v3043 = vunpack.c.l.b16 %v922
        %v3044 = vunpack.c.h.b16 %v922
        %v3045 = vunpack.c.l.b16 %v923
        %v3046 = vunpack.c.h.b16 %v923
        %v3047 = vunpack.c.l.b16 %v924
        %v3048 = vunpack.c.h.b16 %v924
        %v3049 = vunpack.c.l.b16 %v925
        %v3050 = vunpack.c.h.b16 %v925
        %v3051 = vunpack.c.l.b16 %v926
        %v3052 = vunpack.c.h.b16 %v926
        %v3053 = vunpack.c.l.b16 %v927
        %v3054 = vunpack.c.h.b16 %v927
        %v3055 = vunpack.c.l.b16 %v928
        %v3056 = vunpack.c.h.b16 %v928
        %v3057 = vunpack.c.l.b16 %v929
        %v3058 = vunpack.c.h.b16 %v929
        %v3059 = vunpack.c.l.b16 %v930
        %v3060 = vunpack.c.h.b16 %v930
        %v3061 = vunpack.c.l.b16 %v931
        %v3062 = vunpack.c.h.b16 %v931
        %v3063 = vunpack.c.l.b16 %v932
        %v3064 = vunpack.c.h.b16 %v932
        %v3065 = vunpack.c.l.b16 %v933
        %v3066 = vunpack.c.h.b16 %v933
        %v3067 = vunpack.c.l.b16 %v934
        %v3068 = vunpack.c.h.b16 %v934
        %v3069 = vunpack.c.l.b16 %v935
        %v3070 = vunpack.c.h.b16 %v935
        %v3071 = vunpack.c.l.b16 %v936
        %v3072 = vunpack.c.h.b16 %v936
        %v3073 = vunpack.c.l.b16 %v937
        %v3074 = vunpack.c.h.b16 %v937
        %v3075 = vunpack.c.l.b16 %v938
        %v3076 = vunpack.c.h.b16 %v938
        %v3077 = vunpack.c.l.b16 %v939
        %v3078 = vunpack.c.h.b16 %v939
        %v3079 = vunpack.c.l.b16 %v940
        %v3080 = vunpack.c.h.b16 %v940
        %v3081 = vunpack.c.l.b16 %v941
        %v3082 = vunpack.c.h.b16 %v941
        %v3083 = vunpack.c.l.b16 %v942
        %v3084 = vunpack.c.h.b16 %v942
        %v3085 = vunpack.c.l.b16 %v943
        %v3086 = vunpack.c.h.b16 %v943
        %v3087 = vunpack.c.l.b16 %v944
        %v3088 = vunpack.c.h.b16 %v944
        %v3089 = vunpack.c.l.b16 %v945
        %v3090 = vunpack.c.h.b16 %v945
        %v3091 = vunpack.c.l.b16 %v946
        %v3092 = vunpack.c.h.b16 %v946
        %v3093 = vunpack.c.l.b16 %v947
        %v3094 = vunpack.c.h.b16 %v947
        %v3095 = vunpack.c.l.b16 %v948
        %v3096 = vunpack.c.h.b16 %v948
        %v3097 = vunpack.c.l.b16 %v949
        %v3098 = vunpack.c.h.b16 %v949
        %v3099 = vunpack.c.l.b16 %v950
        %v3100 = vunpack.c.h.b16 %v950
        %v3101 = vunpack.c.l.b16 %v951
        %v3102 = vunpack.c.h.b16 %v951
        %v3103 = vunpack.c.l.b16 %v952
        %v3104 = vunpack.c.h.b16 %v952
        %v3105 = vunpack.c.l.b16 %v953
        %v3106 = vunpack.c.h.b16 %v953
        %v3107 = vunpack.c.l.b16 %v954
        %v3108 = vunpack.c.h.b16 %v954
        %v3109 = vunpack.c.l.b16 %v955
        %v3110 = vunpack.c.h.b16 %v955
        %v3111 = vunpack.c.l.b16 %v956
        %v3112 = vunpack.c.h.b16 %v956
        %v3113 = vunpack.c.l.b16 %v957
        %v3114 = vunpack.c.h.b16 %v957
        %v3115 = vunpack.c.l.b16 %v958
        %v3116 = vunpack.c.h.b16 %v958
        %v3117 = vunpack.c.l.b16 %v959
        %v3118 = vunpack.c.h.b16 %v959
        %v3119 = vunpack.c.l.b16 %v960
        %v3120 = vunpack.c.h.b16 %v960
        %v3121 = vunpack.c.l.b16 %v961
        %v3122 = vunpack.c.h.b16 %v961
        %v3123 = vunpack.c.l.b16 %v962
        %v3124 = vunpack.c.h.b16 %v962
        %v3125 = vunpack.c.l.b16 %v963
        %v3126 = vunpack.c.h.b16 %v963
        %v3127 = vunpack.c.l.b16 %v964
        %v3128 = vunpack.c.h.b16 %v964
        %v3129 = vunpack.c.l.b16 %v965
        %v3130 = vunpack.c.h.b16 %v965
        %v3131 = vunpack.c.l.b16 %v966
        %v3132 = vunpack.c.h.b16 %v966
        %v3133 = vunpack.c.l.b16 %v967
        %v3134 = vunpack.c.h.b16 %v967
        %v3135 = vunpack.c.l.b16 %v968
        %v3136 = vunpack.c.h.b16 %v968
        %v3137 = vunpack.c.l.b16 %v969
        %v3138 = vunpack.c.h.b16 %v969
        %v3139 = vunpack.c.l.b16 %v970
        %v3140 = vunpack.c.h.b16 %v970
        %v3141 = vunpack.c.l.b16 %v971
        %v3142 = vunpack.c.h.b16 %v971
        %v3143 = vunpack.c.l.b16 %v972
        %v3144 = vunpack.c.h.b16 %v972
        %v3145 = vunpack.c.l.b16 %v973
        %v3146 = vunpack.c.h.b16 %v973
        %v3147 = vunpack.c.l.b16 %v974
        %v3148 = vunpack.c.h.b16 %v974
        %v3149 = vunpack.c.l.b16 %v975
        %v3150 = vunpack.c.h.b16 %v975
        %v3151 = vunpack.c.l.b16 %v976
        %v3152 = vunpack.c.h.b16 %v976
        %v3153 = vunpack.c.l.b16 %v977
        %v3154 = vunpack.c.h.b16 %v977
        %v3155 = vunpack.c.l.b16 %v978
        %v3156 = vunpack.c.h.b16 %v978
        %v3157 = vunpack.c.l.b16 %v979
        %v3158 = vunpack.c.h.b16 %v979
        %v3159 = vunpack.c.l.b16 %v980
        %v3160 = vunpack.c.h.b16 %v980
        %v3161 = vunpack.c.l.b16 %v981
        %v3162 = vunpack.c.h.b16 %v981
        %v3163 = vunpack.c.l.b16 %v982
        %v3164 = vunpack.c.h.b16 %v982
        %v3165 = vunpack.c.l.b16 %v983
        %v3166 = vunpack.c.h.b16 %v983
        %v3167 = vunpack.c.l.b16 %v984
        %v3168 = vunpack.c.h.b16 %v984
        %v3169 = vunpack.c.l.b16 %v985
        %v3170 = vunpack.c.h.b16 %v985
        %v3171 = vunpack.c.l.b16 %v986
        %v3172 = vunpack.c.h.b16 %v986
        %v3173 = vunpack.c.l.b16 %v987
        %v3174 = vunpack.c.h.b16 %v987
        %v3175 = vunpack.c.l.b16 %v988
        %v3176 = vunpack.c.h.b16 %v988
        %v3177 = vunpack.c.l.b16 %v989
        %v3178 = vunpack.c.h.b16 %v989
        %v3179 = vunpack.c.l.b16 %v990
        %v3180 = vunpack.c.h.b16 %v990
        %v3181 = vunpack.c.l.b16 %v991
        %v3182 = vunpack.c.h.b16 %v991
        %v3183 = vunpack.c.l.b16 %v992
        %v3184 = vunpack.c.h.b16 %v992
        %v3185 = vunpack.c.l.b16 %v993
        %v3186 = vunpack.c.h.b16 %v993
        %v3187 = vunpack.c.l.b16 %v994
        %v3188 = vunpack.c.h.b16 %v994
        %v3189 = vunpack.c.l.b16 %v995
        %v3190 = vunpack.c.h.b16 %v995
        %v3191 = vunpack.c.l.b16 %v996
        %v3192 = vunpack.c.h.b16 %v996
        %v3193 = vunpack.c.l.b16 %v997
        %v3194 = vunpack.c.h.b16 %v997
        %v3195 = vunpack.c.l.b16 %v998
        %v3196 = vunpack.c.h.b16 %v998
        %v3197 = vunpack.c.l.b16 %v999
        %v3198 = vunpack.c.h.b16 %v999
        %v3199 = vunpack.c.l.b16 %v1000
        %v3200 = vunpack.c.h.b16 %v1000
        %v3201 = vunpack.c.l.b16 %v1001
        %v3202 = vunpack.c.h.b16 %v1001
        %v3203 = vunpack.c.l.b16 %v1002
        %v3204 = vunpack.c.h.b16 %v1002
        %v3205 = vunpack.c.l.b16 %v1003
        %v3206 = vunpack.c.h.b16 %v1003
        %v3207 = vunpack.c.l.b16 %v1004
        %v3208 = vunpack.c.h.b16 %v1004
        %v3209 = vunpack.c.l.b16 %v1005
        %v3210 = vunpack.c.h.b16 %v1005
        %v3211 = vunpack.c.l.b16 %v1006
        %v3212 = vunpack.c.h.b16 %v1006
        %v3213 = vunpack.c.l.b16 %v1007
        %v3214 = vunpack.c.h.b16 %v1007
        %v3215 = vunpack.c.l.b16 %v1008
        %v3216 = vunpack.c.h.b16 %v1008
        %v3217 = vunpack.c.l.b16 %v1009
        %v3218 = vunpack.c.h.b16 %v1009
        %v3219 = vunpack.c.l.b16 %v1010
        %v3220 = vunpack.c.h.b16 %v1010
        %v3221 = vunpack.c.l.b16 %v1011
        %v3222 = vunpack.c.h.b16 %v1011
        %v3223 = vunpack.c.l.b16 %v1012
        %v3224 = vunpack.c.h.b16 %v1012
        %v3225 = vunpack.c.l.b16 %v1013
        %v3226 = vunpack.c.h.b16 %v1013
        %v3227 = vunpack.c.l.b16 %v1014
        %v3228 = vunpack.c.h.b16 %v1014
        %v3229 = vunpack.c.l.b16 %v1015
        %v3230 = vunpack.c.h.b16 %v1015
        %v3231 = vunpack.c.l.b16 %v1016
        %v3232 = vunpack.c.h.b16 %v1016
        %v3233 = vunpack.c.l.b16 %v1017
        %v3234 = vunpack.c.h.b16 %v1017
        %v3235 = vunpack.c.l.b16 %v1018
        %v3236 = vunpack.c.h.b16 %v1018
        %v3237 = vunpack.c.l.b16 %v1019
        %v3238 = vunpack.c.h.b16 %v1019
        %v3239 = vunpack.c.l.b16 %v1020
        %v3240 = vunpack.c.h.b16 %v1020
        %v3241 = vunpack.c.l.b16 %v1021
        %v3242 = vunpack.c.h.b16 %v1021
        %v3243 = vunpack.c.l.b16 %v1022
        %v3244 = vunpack.c.h.b16 %v1022
        %v3245 = vunpack.c.l.b16 %v1023
        %v3246 = vunpack.c.h.b16 %v1023
        %v3247 = vunpack.c.l.b16 %v1024
        %v3248 = vunpack.c.h.b16 %v1024
        %v3249 = vunpack.c.l.b16 %v1025
        %v3250 = vunpack.c.h.b16 %v1025
        %v3251 = vunpack.c.l.b16 %v1026
        %v3252 = vunpack.c.h.b16 %v1026
        %v3253 = vunpack.c.l.b16 %v1027
        %v3254 = vunpack.c.h.b16 %v1027
        %v3255 = vunpack.c.l.b16 %v1028
        %v3256 = vunpack.c.h.b16 %v1028
        %v3257 = vunpack.c.l.b16 %v1029
        %v3258 = vunpack.c.h.b16 %v1029
        %v3259 = vunpack.c.l.b16 %v1030
        %v3260 = vunpack.c.h.b16 %v1030
        %v3261 = vunpack.c.l.b16 %v1031
        %v3262 = vunpack.c.h.b16 %v1031
        %v3263 = vunpack.c.l.b16 %v1032
        %v3264 = vunpack.c.h.b16 %v1032
        %v3265 = vunpack.c.l.b16 %v1033
        %v3266 = vunpack.c.h.b16 %v1033
        %v3267 = vunpack.c.l.b16 %v1034
        %v3268 = vunpack.c.h.b16 %v1034
        %v3269 = vunpack.c.l.b16 %v1035
        %v3270 = vunpack.c.h.b16 %v1035
        %v3271 = vunpack.c.l.b16 %v1036
        %v3272 = vunpack.c.h.b16 %v1036
        %v3273 = vunpack.c.l.b16 %v1037
        %v3274 = vunpack.c.h.b16 %v1037
        %v3275 = vunpack.c.l.b16 %v1038
        %v3276 = vunpack.c.h.b16 %v1038
        %v3277 = vunpack.c.l.b16 %v1039
        %v3278 = vunpack.c.h.b16 %v1039
        %v3279 = vunpack.c.l.b16 %v1040
        %v3280 = vunpack.c.h.b16 %v1040
        %v3281 = vunpack.c.l.b16 %v1041
        %v3282 = vunpack.c.h.b16 %v1041
        %v3283 = vunpack.c.l.b16 %v1042
        %v3284 = vunpack.c.h.b16 %v1042
        %v3285 = vunpack.c.l.b16 %v1043
        %v3286 = vunpack.c.h.b16 %v1043
        %v3287 = vunpack.c.l.b16 %v1044
        %v3288 = vunpack.c.h.b16 %v1044
        %v3289 = vunpack.c.l.b16 %v1045
        %v3290 = vunpack.c.h.b16 %v1045
        %v3291 = vunpack.c.l.b16 %v1046
        %v3292 = vunpack.c.h.b16 %v1046
        %v3293 = vunpack.c.l.b16 %v1047
        %v3294 = vunpack.c.h.b16 %v1047
        %v3295 = vunpack.c.l.b16 %v1048
        %v3296 = vunpack.c.h.b16 %v1048
        %v3297 = vunpack.c.l.b16 %v1049
        %v3298 = vunpack.c.h.b16 %v1049
        %v3299 = vunpack.c.l.b16 %v1050
        %v3300 = vunpack.c.h.b16 %v1050
        %v3301 = vunpack.c.l.b16 %v1051
        %v3302 = vunpack.c.h.b16 %v1051
        %v3303 = vunpack.c.l.b16 %v1052
        %v3304 = vunpack.c.h.b16 %v1052
        %v3305 = vunpack.c.l.b16 %v1053
        %v3306 = vunpack.c.h.b16 %v1053
        %v3307 = vunpack.c.l.b16 %v1054
        %v3308 = vunpack.c.h.b16 %v1054
        %v3309 = vunpack.c.l.b16 %v1055
        %v3310 = vunpack.c.h.b16 %v1055
        %v3311 = vunpack.c.l.b16 %v1056
        %v3312 = vunpack.c.h.b16 %v1056
        %v3313 = vunpack.c.l.b16 %v1057
        %v3314 = vunpack.c.h.b16 %v1057
        %v3315 = vunpack.c.l.b16 %v1058
        %v3316 = vunpack.c.h.b16 %v1058
        %v3317 = vunpack.c.l.b16 %v1059
        %v3318 = vunpack.c.h.b16 %v1059
        %v3319 = vunpack.c.l.b16 %v1060
        %v3320 = vunpack.c.h.b16 %v1060
        %v3321 = vunpack.c.l.b16 %v1061
        %v3322 = vunpack.c.h.b16 %v1061
        %v3323 = vunpack.c.l.b16 %v1062
        %v3324 = vunpack.c.h.b16 %v1062
        %v3325 = vunpack.c.l.b16 %v1063
        %v3326 = vunpack.c.h.b16 %v1063
        %v3327 = vunpack.c.l.b16 %v1064
        %v3328 = vunpack.c.h.b16 %v1064
        %v3329 = vunpack.c.l.b16 %v1065
        %v3330 = vunpack.c.h.b16 %v1065
        %v3331 = vunpack.c.l.b16 %v1066
        %v3332 = vunpack.c.h.b16 %v1066
        %v3333 = vunpack.c.l.b16 %v1067
        %v3334 = vunpack.c.h.b16 %v1067
        %v3335 = vunpack.c.l.b16 %v1068
        %v3336 = vunpack.c.h.b16 %v1068
        %v3337 = vunpack.c.l.b16 %v1069
        %v3338 = vunpack.c.h.b16 %v1069
        %v3339 = vunpack.c.l.b16 %v1070
        %v3340 = vunpack.c.h.b16 %v1070
        %v3341 = vunpack.c.l.b16 %v1071
        %v3342 = vunpack.c.h.b16 %v1071
        %v3343 = vunpack.c.l.b16 %v1072
        %v3344 = vunpack.c.h.b16 %v1072
        %v3345 = vunpack.c.l.b16 %v1073
        %v3346 = vunpack.c.h.b16 %v1073
        %v3347 = vunpack.c.l.b16 %v1074
        %v3348 = vunpack.c.h.b16 %v1074
        %v3349 = vunpack.c.l.b16 %v1075
        %v3350 = vunpack.c.h.b16 %v1075
        %v3351 = vunpack.c.l.b16 %v1076
        %v3352 = vunpack.c.h.b16 %v1076
        %v3353 = vunpack.c.l.b16 %v1077
        %v3354 = vunpack.c.h.b16 %v1077
        %v3355 = vunpack.c.l.b16 %v1078
        %v3356 = vunpack.c.h.b16 %v1078
        %v3357 = vunpack.c.l.b16 %v1079
        %v3358 = vunpack.c.h.b16 %v1079
        %v3359 = vunpack.c.l.b16 %v1080
        %v3360 = vunpack.c.h.b16 %v1080
        %v3361 = vunpack.c.l.b16 %v1081
        %v3362 = vunpack.c.h.b16 %v1081
        %v3363 = vunpack.c.l.b16 %v1082
        %v3364 = vunpack.c.h.b16 %v1082
        %v3365 = vunpack.c.l.b16 %v1083
        %v3366 = vunpack.c.h.b16 %v1083
        %v3367 = vunpack.c.l.b16 %v1084
        %v3368 = vunpack.c.h.b16 %v1084
        %v3369 = vunpack.c.l.b16 %v1085
        %v3370 = vunpack.c.h.b16 %v1085
        %v3371 = vunpack.c.l.b16 %v1086
        %v3372 = vunpack.c.h.b16 %v1086
        %v3373 = vunpack.c.l.b16 %v1087
        %v3374 = vunpack.c.h.b16 %v1087
        %v3375 = vunpack.c.l.b16 %v1088
        %v3376 = vunpack.c.h.b16 %v1088
        %v3377 = vunpack.c.l.b16 %v1089
        %v3378 = vunpack.c.h.b16 %v1089
        %v3379 = vunpack.c.l.b16 %v1090
        %v3380 = vunpack.c.h.b16 %v1090
        %v3381 = vunpack.c.l.b16 %v1091
        %v3382 = vunpack.c.h.b16 %v1091
        %v3383 = vunpack.c.l.b16 %v1092
        %v3384 = vunpack.c.h.b16 %v1092
        %v3385 = vunpack.c.l.b16 %v1093
        %v3386 = vunpack.c.h.b16 %v1093
        %v3387 = vunpack.c.l.b16 %v1094
        %v3388 = vunpack.c.h.b16 %v1094
        %v3389 = vunpack.c.l.b16 %v1095
        %v3390 = vunpack.c.h.b16 %v1095
        %v3391 = vunpack.c.l.b16 %v1096
        %v3392 = vunpack.c.h.b16 %v1096
        %v3393 = vunpack.c.l.b16 %v1097
        %v3394 = vunpack.c.h.b16 %v1097
        %v3395 = vunpack.c.l.b16 %v1098
        %v3396 = vunpack.c.h.b16 %v1098
        %v3397 = vunpack.c.l.b16 %v1099
        %v3398 = vunpack.c.h.b16 %v1099
        %v3399 = vunpack.c.l.b16 %v1100
        %v3400 = vunpack.c.h.b16 %v1100
        %v3401 = vunpack.c.l.b16 %v1101
        %v3402 = vunpack.c.h.b16 %v1101
        %v3403 = vunpack.c.l.b16 %v1102
        %v3404 = vunpack.c.h.b16 %v1102
        %v3405 = vunpack.c.l.b16 %v1103
        %v3406 = vunpack.c.h.b16 %v1103
        %v3407 = vunpack.c.l.b16 %v1104
        %v3408 = vunpack.c.h.b16 %v1104
        %v3409 = vunpack.c.l.b16 %v1105
        %v3410 = vunpack.c.h.b16 %v1105
        %v3411 = vunpack.c.l.b16 %v1106
        %v3412 = vunpack.c.h.b16 %v1106
        %v3413 = vunpack.c.l.b16 %v1107
        %v3414 = vunpack.c.h.b16 %v1107
        %v3415 = vunpack.c.l.b16 %v1108
        %v3416 = vunpack.c.h.b16 %v1108
        %v3417 = vunpack.c.l.b16 %v1109
        %v3418 = vunpack.c.h.b16 %v1109
        %v3419 = vunpack.c.l.b16 %v1110
        %v3420 = vunpack.c.h.b16 %v1110
        %v3421 = vunpack.c.l.b16 %v1111
        %v3422 = vunpack.c.h.b16 %v1111
        %v3423 = vunpack.c.l.b16 %v1112
        %v3424 = vunpack.c.h.b16 %v1112
        %v3425 = vunpack.c.l.b16 %v1113
        %v3426 = vunpack.c.h.b16 %v1113
        %v3427 = vunpack.c.l.b16 %v1114
        %v3428 = vunpack.c.h.b16 %v1114
        %v3429 = vunpack.c.l.b16 %v1115
        %v3430 = vunpack.c.h.b16 %v1115
        %v3431 = vunpack.c.l.b16 %v1116
        %v3432 = vunpack.c.h.b16 %v1116
        %v3433 = vunpack.c.l.b16 %v1117
        %v3434 = vunpack.c.h.b16 %v1117
        %v3435 = vunpack.c.l.b16 %v1118
        %v3436 = vunpack.c.h.b16 %v1118
        %v3437 = vunpack.c.l.b16 %v1119
        %v3438 = vunpack.c.h.b16 %v1119
        %v3439 = vunpack.c.l.b16 %v1120
        %v3440 = vunpack.c.h.b16 %v1120
        %v3441 = vunpack.c.l.b16 %v1121
        %v3442 = vunpack.c.h.b16 %v1121
        %v3443 = vunpack.c.l.b16 %v1122
        %v3444 = vunpack.c.h.b16 %v1122
        %v3445 = vunpack.c.l.b16 %v1123
        %v3446 = vunpack.c.h.b16 %v1123
        %v3447 = vunpack.c.l.b16 %v1124
        %v3448 = vunpack.c.h.b16 %v1124
        %v3449 = vunpack.c.l.b16 %v1125
        %v3450 = vunpack.c.h.b16 %v1125
        %v3451 = vunpack.c.l.b16 %v1126
        %v3452 = vunpack.c.h.b16 %v1126
        %v3453 = vpack.c.b16 %v1921, %v1917
        %v3454 = vpack.c.b16 %v1922, %v1918
        %v3455 = vpack.c.b16 %v1923, %v1919
        %v3456 = vpack.c.b16 %v1924, %v1920
        %v3457 = vpack.c.b16 %v1929, %v1925
        %v3458 = vpack.c.b16 %v1930, %v1926
        %v3459 = vpack.c.b16 %v1931, %v1927
        %v3460 = vpack.c.b16 %v1932, %v1928
        %v3461 = vpack.c.b16 %v1937, %v1933
        %v3462 = vpack.c.b16 %v1938, %v1934
        %v3463 = vpack.c.b16 %v1939, %v1935
        %v3464 = vpack.c.b16 %v1940, %v1936
        %v3465 = vpack.c.b16 %v1945, %v1941
        %v3466 = vpack.c.b16 %v1946, %v1942
        %v3467 = vpack.c.b16 %v1947, %v1943
        %v3468 = vpack.c.b16 %v1948, %v1944
        %v3469 = vpack.c.b16 %v1953, %v1949
        %v3470 = vpack.c.b16 %v1954, %v1950
        %v3471 = vpack.c.b16 %v1955, %v1951
        %v3472 = vpack.c.b16 %v1956, %v1952
        %v3473 = vpack.c.b16 %v1961, %v1957
        %v3474 = vpack.c.b16 %v1962, %v1958
        %v3475 = vpack.c.b16 %v1963, %v1959
        %v3476 = vpack.c.b16 %v1964, %v1960
        %v3477 = vpack.c.b16 %v1969, %v1965
        %v3478 = vpack.c.b16 %v1970, %v1966
        %v3479 = vpack.c.b16 %v1971, %v1967
        %v3480 = vpack.c.b16 %v1972, %v1968
        %v3481 = vpack.c.b16 %v1977, %v1973
        %v3482 = vpack.c.b16 %v1978, %v1974
        %v3483 = vpack.c.b16 %v1979, %v1975
        %v3484 = vpack.c.b16 %v1980, %v1976
        %v3485 = vpack.c.b16 %v1985, %v1981
        %v3486 = vpack.c.b16 %v1986, %v1982
        %v3487 = vpack.c.b16 %v1987, %v1983
        %v3488 = vpack.c.b16 %v1988, %v1984
        %v3489 = vpack.c.b16 %v1993, %v1989
        %v3490 = vpack.c.b16 %v1994, %v1990
        %v3491 = vpack.c.b16 %v1995, %v1991
        %v3492 = vpack.c.b16 %v1996, %v1992
        %v3493 = vpack.c.b16 %v2001, %v1997
        %v3494 = vpack.c.b16 %v2002, %v1998
        %v3495 = vpack.c.b16 %v2003, %v1999
        %v3496 = vpack.c.b16 %v2004, %v2000
        %v3497 = vpack.c.b16 %v2009, %v2005
        %v3498 = vpack.c.b16 %v2010, %v2006
        %v3499 = vpack.c.b16 %v2011, %v2007
        %v3500 = vpack.c.b16 %v2012, %v2008
        %v3501 = vpack.c.b16 %v2017, %v2013
        %v3502 = vpack.c.b16 %v2018, %v2014
        %v3503 = vpack.c.b16 %v2019, %v2015
        %v3504 = vpack.c.b16 %v2020, %v2016
        %v3505 = vpack.c.b16 %v2025, %v2021
        %v3506 = vpack.c.b16 %v2026, %v2022
        %v3507 = vpack.c.b16 %v2027, %v2023
        %v3508 = vpack.c.b16 %v2028, %v2024
        %v3509 = vpack.c.b16 %v2033, %v2029
        %v3510 = vpack.c.b16 %v2034, %v2030
        %v3511 = vpack.c.b16 %v2035, %v2031
        %v3512 = vpack.c.b16 %v2036, %v2032
        %v3513 = vpack.c.b16 %v2041, %v2037
        %v3514 = vpack.c.b16 %v2042, %v2038
        %v3515 = vpack.c.b16 %v2043, %v2039
        %v3516 = vpack.c.b16 %v2044, %v2040
        %v3517 = vpack.c.b16 %v2049, %v2045
        %v3518 = vpack.c.b16 %v2050, %v2046
        %v3519 = vpack.c.b16 %v2051, %v2047
        %v3520 = vpack.c.b16 %v2052, %v2048
        %v3521 = vpack.c.b16 %v2057, %v2053
        %v3522 = vpack.c.b16 %v2058, %v2054
        %v3523 = vpack.c.b16 %v2059, %v2055
        %v3524 = vpack.c.b16 %v2060, %v2056
        %v3525 = vpack.c.b16 %v2065, %v2061
        %v3526 = vpack.c.b16 %v2066, %v2062
        %v3527 = vpack.c.b16 %v2067, %v2063
        %v3528 = vpack.c.b16 %v2068, %v2064
        %v3529 = vpack.c.b16 %v2073, %v2069
        %v3530 = vpack.c.b16 %v2074, %v2070
        %v3531 = vpack.c.b16 %v2075, %v2071
        %v3532 = vpack.c.b16 %v2076, %v2072
        %v3533 = vpack.c.b16 %v2081, %v2077
        %v3534 = vpack.c.b16 %v2082, %v2078
        %v3535 = vpack.c.b16 %v2083, %v2079
        %v3536 = vpack.c.b16 %v2084, %v2080
        %v3537 = vpack.c.b16 %v2089, %v2085
        %v3538 = vpack.c.b16 %v2090, %v2086
        %v3539 = vpack.c.b16 %v2091, %v2087
        %v3540 = vpack.c.b16 %v2092, %v2088
        %v3541 = vpack.c.b16 %v2097, %v2093
        %v3542 = vpack.c.b16 %v2098, %v2094
        %v3543 = vpack.c.b16 %v2099, %v2095
        %v3544 = vpack.c.b16 %v2100, %v2096
        %v3545 = vpack.c.b16 %v2105, %v2101
        %v3546 = vpack.c.b16 %v2106, %v2102
        %v3547 = vpack.c.b16 %v2107, %v2103
        %v3548 = vpack.c.b16 %v2108, %v2104
        %v3549 = vpack.c.b16 %v2113, %v2109
        %v3550 = vpack.c.b16 %v2114, %v2110
        %v3551 = vpack.c.b16 %v2115, %v2111
        %v3552 = vpack.c.b16 %v2116, %v2112
        %v3553 = vpack.c.b16 %v2121, %v2117
        %v3554 = vpack.c.b16 %v2122, %v2118
        %v3555 = vpack.c.b16 %v2123, %v2119
        %v3556 = vpack.c.b16 %v2124, %v2120
        %v3557 = vpack.c.b16 %v2129, %v2125
        %v3558 = vpack.c.b16 %v2130, %v2126
        %v3559 = vpack.c.b16 %v2131, %v2127
        %v3560 = vpack.c.b16 %v2132, %v2128
        %v3561 = vpack.c.b16 %v2137, %v2133
        %v3562 = vpack.c.b16 %v2138, %v2134
        %v3563 = vpack.c.b16 %v2139, %v2135
        %v3564 = vpack.c.b16 %v2140, %v2136
        %v3565 = vpack.c.b16 %v2145, %v2141
        %v3566 = vpack.c.b16 %v2146, %v2142
        %v3567 = vpack.c.b16 %v2147, %v2143
        %v3568 = vpack.c.b16 %v2148, %v2144
        %v3569 = vpack.c.b16 %v2153, %v2149
        %v3570 = vpack.c.b16 %v2154, %v2150
        %v3571 = vpack.c.b16 %v2155, %v2151
        %v3572 = vpack.c.b16 %v2156, %v2152
        %v3573 = vpack.c.b16 %v2161, %v2157
        %v3574 = vpack.c.b16 %v2162, %v2158
        %v3575 = vpack.c.b16 %v2163, %v2159
        %v3576 = vpack.c.b16 %v2164, %v2160
        %v3577 = vpack.c.b16 %v2169, %v2165
        %v3578 = vpack.c.b16 %v2170, %v2166
        %v3579 = vpack.c.b16 %v2171, %v2167
        %v3580 = vpack.c.b16 %v2172, %v2168
        %v3581 = vpack.c.b16 %v2177, %v2173
        %v3582 = vpack.c.b16 %v2178, %v2174
        %v3583 = vpack.c.b16 %v2179, %v2175
        %v3584 = vpack.c.b16 %v2180, %v2176
        %v3585 = vpack.c.b16 %v2185, %v2181
        %v3586 = vpack.c.b16 %v2186, %v2182
        %v3587 = vpack.c.b16 %v2187, %v2183
        %v3588 = vpack.c.b16 %v2188, %v2184
        %v3589 = vpack.c.b16 %v2193, %v2189
        %v3590 = vpack.c.b16 %v2194, %v2190
        %v3591 = vpack.c.b16 %v2195, %v2191
        %v3592 = vpack.c.b16 %v2196, %v2192
        %v3593 = vpack.c.b16 %v2201, %v2197
        %v3594 = vpack.c.b16 %v2202, %v2198
        %v3595 = vpack.c.b16 %v2203, %v2199
        %v3596 = vpack.c.b16 %v2204, %v2200
        %v3597 = vpack.c.b16 %v2209, %v2205
        %v3598 = vpack.c.b16 %v2210, %v2206
        %v3599 = vpack.c.b16 %v2211, %v2207
        %v3600 = vpack.c.b16 %v2212, %v2208
        %v3601 = vpack.c.b16 %v2217, %v2213
        %v3602 = vpack.c.b16 %v2218, %v2214
        %v3603 = vpack.c.b16 %v2219, %v2215
        %v3604 = vpack.c.b16 %v2220, %v2216
        %v3605 = vpack.c.b16 %v2225, %v2221
        %v3606 = vpack.c.b16 %v2226, %v2222
        %v3607 = vpack.c.b16 %v2227, %v2223
        %v3608 = vpack.c.b16 %v2228, %v2224
        %v3609 = vpack.c.b16 %v2233, %v2229
        %v3610 = vpack.c.b16 %v2234, %v2230
        %v3611 = vpack.c.b16 %v2235, %v2231
        %v3612 = vpack.c.b16 %v2236, %v2232
        %v3613 = vpack.c.b16 %v2241, %v2237
        %v3614 = vpack.c.b16 %v2242, %v2238
        %v3615 = vpack.c.b16 %v2243, %v2239
        %v3616 = vpack.c.b16 %v2244, %v2240
        %v3617 = vpack.c.b16 %v2249, %v2245
        %v3618 = vpack.c.b16 %v2250, %v2246
        %v3619 = vpack.c.b16 %v2251, %v2247
        %v3620 = vpack.c.b16 %v2252, %v2248
        %v3621 = vpack.c.b16 %v2257, %v2253
        %v3622 = vpack.c.b16 %v2258, %v2254
        %v3623 = vpack.c.b16 %v2259, %v2255
        %v3624 = vpack.c.b16 %v2260, %v2256
        %v3625 = vpack.c.b16 %v2265, %v2261
        %v3626 = vpack.c.b16 %v2266, %v2262
        %v3627 = vpack.c.b16 %v2267, %v2263
        %v3628 = vpack.c.b16 %v2268, %v2264
        %v3629 = vpack.c.b16 %v2273, %v2269
        %v3630 = vpack.c.b16 %v2274, %v2270
        %v3631 = vpack.c.b16 %v2275, %v2271
        %v3632 = vpack.c.b16 %v2276, %v2272
        %v3633 = vpack.c.b16 %v2281, %v2277
        %v3634 = vpack.c.b16 %v2282, %v2278
        %v3635 = vpack.c.b16 %v2283, %v2279
        %v3636 = vpack.c.b16 %v2284, %v2280
        %v3637 = vpack.c.b16 %v2289, %v2285
        %v3638 = vpack.c.b16 %v2290, %v2286
        %v3639 = vpack.c.b16 %v2291, %v2287
        %v3640 = vpack.c.b16 %v2292, %v2288
        %v3641 = vpack.c.b16 %v2297, %v2293
        %v3642 = vpack.c.b16 %v2298, %v2294
        %v3643 = vpack.c.b16 %v2299, %v2295
        %v3644 = vpack.c.b16 %v2300, %v2296
        %v3645 = vpack.c.b16 %v2305, %v2301
        %v3646 = vpack.c.b16 %v2306, %v2302
        %v3647 = vpack.c.b16 %v2307, %v2303
        %v3648 = vpack.c.b16 %v2308, %v2304
        %v3649 = vpack.c.b16 %v2313, %v2309
        %v3650 = vpack.c.b16 %v2314, %v2310
        %v3651 = vpack.c.b16 %v2315, %v2311
        %v3652 = vpack.c.b16 %v2316, %v2312
        %v3653 = vpack.c.b16 %v2321, %v2317
        %v3654 = vpack.c.b16 %v2322, %v2318
        %v3655 = vpack.c.b16 %v2323, %v2319
        %v3656 = vpack.c.b16 %v2324, %v2320
        %v3657 = vpack.c.b16 %v2329, %v2325
        %v3658 = vpack.c.b16 %v2330, %v2326
        %v3659 = vpack.c.b16 %v2331, %v2327
        %v3660 = vpack.c.b16 %v2332, %v2328
        %v3661 = vpack.c.b16 %v2337, %v2333
        %v3662 = vpack.c.b16 %v2338, %v2334
        %v3663 = vpack.c.b16 %v2339, %v2335
        %v3664 = vpack.c.b16 %v2340, %v2336
        %v3665 = vpack.c.b16 %v2345, %v2341
        %v3666 = vpack.c.b16 %v2346, %v2342
        %v3667 = vpack.c.b16 %v2347, %v2343
        %v3668 = vpack.c.b16 %v2348, %v2344
        %v3669 = vpack.c.b16 %v2353, %v2349
        %v3670 = vpack.c.b16 %v2354, %v2350
        %v3671 = vpack.c.b16 %v2355, %v2351
        %v3672 = vpack.c.b16 %v2356, %v2352
        %v3673 = vpack.c.b16 %v2361, %v2357
        %v3674 = vpack.c.b16 %v2362, %v2358
        %v3675 = vpack.c.b16 %v2363, %v2359
        %v3676 = vpack.c.b16 %v2364, %v2360
        %v3677 = vpack.c.b16 %v2369, %v2365
        %v3678 = vpack.c.b16 %v2370, %v2366
        %v3679 = vpack.c.b16 %v2371, %v2367
        %v3680 = vpack.c.b16 %v2372, %v2368
        %v3681 = vpack.c.b16 %v2377, %v2373
        %v3682 = vpack.c.b16 %v2378, %v2374
        %v3683 = vpack.c.b16 %v2379, %v2375
        %v3684 = vpack.c.b16 %v2380, %v2376
        %v3685 = vpack.c.b16 %v2385, %v2381
        %v3686 = vpack.c.b16 %v2386, %v2382
        %v3687 = vpack.c.b16 %v2387, %v2383
        %v3688 = vpack.c.b16 %v2388, %v2384
        %v3689 = vpack.c.b16 %v2393, %v2389
        %v3690 = vpack.c.b16 %v2394, %v2390
        %v3691 = vpack.c.b16 %v2395, %v2391
        %v3692 = vpack.c.b16 %v2396, %v2392
        %v3693 = vpack.c.b16 %v2401, %v2397
        %v3694 = vpack.c.b16 %v2402, %v2398
        %v3695 = vpack.c.b16 %v2403, %v2399
        %v3696 = vpack.c.b16 %v2404, %v2400
        %v3697 = vpack.c.b16 %v2409, %v2405
        %v3698 = vpack.c.b16 %v2410, %v2406
        %v3699 = vpack.c.b16 %v2411, %v2407
        %v3700 = vpack.c.b16 %v2412, %v2408
        %v3701 = vpack.c.b16 %v2417, %v2413
        %v3702 = vpack.c.b16 %v2418, %v2414
        %v3703 = vpack.c.b16 %v2419, %v2415
        %v3704 = vpack.c.b16 %v2420, %v2416
        %v3705 = vpack.c.b16 %v2425, %v2421
        %v3706 = vpack.c.b16 %v2426, %v2422
        %v3707 = vpack.c.b16 %v2427, %v2423
        %v3708 = vpack.c.b16 %v2428, %v2424
        %v3709 = vpack.c.b16 %v2433, %v2429
        %v3710 = vpack.c.b16 %v2434, %v2430
        %v3711 = vpack.c.b16 %v2435, %v2431
        %v3712 = vpack.c.b16 %v2436, %v2432
        %v3713 = vpack.c.b16 %v2441, %v2437
        %v3714 = vpack.c.b16 %v2442, %v2438
        %v3715 = vpack.c.b16 %v2443, %v2439
        %v3716 = vpack.c.b16 %v2444, %v2440
        %v3717 = vpack.c.b16 %v2449, %v2445
        %v3718 = vpack.c.b16 %v2450, %v2446
        %v3719 = vpack.c.b16 %v2451, %v2447
        %v3720 = vpack.c.b16 %v2452, %v2448
        %v3721 = vpack.c.b16 %v2457, %v2453
        %v3722 = vpack.c.b16 %v2458, %v2454
        %v3723 = vpack.c.b16 %v2459, %v2455
        %v3724 = vpack.c.b16 %v2460, %v2456
        %v3725 = vpack.c.b16 %v2465, %v2461
        %v3726 = vpack.c.b16 %v2466, %v2462
        %v3727 = vpack.c.b16 %v2467, %v2463
        %v3728 = vpack.c.b16 %v2468, %v2464
        %v3729 = vpack.c.b16 %v2473, %v2469
        %v3730 = vpack.c.b16 %v2474, %v2470
        %v3731 = vpack.c.b16 %v2475, %v2471
        %v3732 = vpack.c.b16 %v2476, %v2472
        %v3733 = vpack.c.b16 %v2481, %v2477
        %v3734 = vpack.c.b16 %v2482, %v2478
        %v3735 = vpack.c.b16 %v2483, %v2479
        %v3736 = vpack.c.b16 %v2484, %v2480
        %v3737 = vpack.c.b16 %v2489, %v2485
        %v3738 = vpack.c.b16 %v2490, %v2486
        %v3739 = vpack.c.b16 %v2491, %v2487
        %v3740 = vpack.c.b16 %v2492, %v2488
        %v3741 = vpack.c.b16 %v2497, %v2493
        %v3742 = vpack.c.b16 %v2498, %v2494
        %v3743 = vpack.c.b16 %v2499, %v2495
        %v3744 = vpack.c.b16 %v2500, %v2496
        %v3745 = vpack.c.b16 %v2505, %v2501
        %v3746 = vpack.c.b16 %v2506, %v2502
        %v3747 = vpack.c.b16 %v2507, %v2503
        %v3748 = vpack.c.b16 %v2508, %v2504
        %v3749 = vpack.c.b16 %v2513, %v2509
        %v3750 = vpack.c.b16 %v2514, %v2510
        %v3751 = vpack.c.b16 %v2515, %v2511
        %v3752 = vpack.c.b16 %v2516, %v2512
        %v3753 = vpack.c.b16 %v2521, %v2517
        %v3754 = vpack.c.b16 %v2522, %v2518
        %v3755 = vpack.c.b16 %v2523, %v2519
        %v3756 = vpack.c.b16 %v2524, %v2520
        %v3757 = vpack.c.b16 %v2529, %v2525
        %v3758 = vpack.c.b16 %v2530, %v2526
        %v3759 = vpack.c.b16 %v2531, %v2527
        %v3760 = vpack.c.b16 %v2532, %v2528
        %v3761 = vpack.c.b16 %v2537, %v2533
        %v3762 = vpack.c.b16 %v2538, %v2534
        %v3763 = vpack.c.b16 %v2539, %v2535
        %v3764 = vpack.c.b16 %v2540, %v2536
        %v3765 = vpack.c.b16 %v2545, %v2541
        %v3766 = vpack.c.b16 %v2546, %v2542
        %v3767 = vpack.c.b16 %v2547, %v2543
        %v3768 = vpack.c.b16 %v2548, %v2544
        %v3769 = vpack.c.b16 %v2553, %v2549
        %v3770 = vpack.c.b16 %v2554, %v2550
        %v3771 = vpack.c.b16 %v2555, %v2551
        %v3772 = vpack.c.b16 %v2556, %v2552
        %v3773 = vpack.c.b16 %v2561, %v2557
        %v3774 = vpack.c.b16 %v2562, %v2558
        %v3775 = vpack.c.b16 %v2563, %v2559
        %v3776 = vpack.c.b16 %v2564, %v2560
        %v3777 = vpack.c.b16 %v2569, %v2565
        %v3778 = vpack.c.b16 %v2570, %v2566
        %v3779 = vpack.c.b16 %v2571, %v2567
        %v3780 = vpack.c.b16 %v2572, %v2568
        %v3781 = vpack.c.b16 %v2577, %v2573
        %v3782 = vpack.c.b16 %v2578, %v2574
        %v3783 = vpack.c.b16 %v2579, %v2575
        %v3784 = vpack.c.b16 %v2580, %v2576
        %v3785 = vpack.c.b16 %v2585, %v2581
        %v3786 = vpack.c.b16 %v2586, %v2582
        %v3787 = vpack.c.b16 %v2587, %v2583
        %v3788 = vpack.c.b16 %v2588, %v2584
        %v3789 = vpack.c.b16 %v2593, %v2589
        %v3790 = vpack.c.b16 %v2594, %v2590
        %v3791 = vpack.c.b16 %v2595, %v2591
        %v3792 = vpack.c.b16 %v2596, %v2592
        %v3793 = vpack.c.b16 %v2601, %v2597
        %v3794 = vpack.c.b16 %v2602, %v2598
        %v3795 = vpack.c.b16 %v2603, %v2599
        %v3796 = vpack.c.b16 %v2604, %v2600
        %v3797 = vpack.c.b16 %v2609, %v2605
        %v3798 = vpack.c.b16 %v2610, %v2606
        %v3799 = vpack.c.b16 %v2611, %v2607
        %v3800 = vpack.c.b16 %v2612, %v2608
        %v3801 = vpack.c.b16 %v2617, %v2613
        %v3802 = vpack.c.b16 %v2618, %v2614
        %v3803 = vpack.c.b16 %v2619, %v2615
        %v3804 = vpack.c.b16 %v2620, %v2616
        %v3805 = vpack.c.b16 %v2625, %v2621
        %v3806 = vpack.c.b16 %v2626, %v2622
        %v3807 = vpack.c.b16 %v2627, %v2623
        %v3808 = vpack.c.b16 %v2628, %v2624
        %v3809 = vpack.c.b16 %v2633, %v2629
        %v3810 = vpack.c.b16 %v2634, %v2630
        %v3811 = vpack.c.b16 %v2635, %v2631
        %v3812 = vpack.c.b16 %v2636, %v2632
        %v3813 = vpack.c.b16 %v2641, %v2637
        %v3814 = vpack.c.b16 %v2642, %v2638
        %v3815 = vpack.c.b16 %v2643, %v2639
        %v3816 = vpack.c.b16 %v2644, %v2640
        %v3817 = vpack.c.b16 %v2649, %v2645
        %v3818 = vpack.c.b16 %v2650, %v2646
        %v3819 = vpack.c.b16 %v2651, %v2647
        %v3820 = vpack.c.b16 %v2652, %v2648
        %v3821 = vpack.c.b16 %v2657, %v2653
        %v3822 = vpack.c.b16 %v2658, %v2654
        %v3823 = vpack.c.b16 %v2659, %v2655
        %v3824 = vpack.c.b16 %v2660, %v2656
        %v3825 = vpack.c.b16 %v2665, %v2661
        %v3826 = vpack.c.b16 %v2666, %v2662
        %v3827 = vpack.c.b16 %v2667, %v2663
        %v3828 = vpack.c.b16 %v2668, %v2664
        %v3829 = vpack.c.b16 %v2673, %v2669
        %v3830 = vpack.c.b16 %v2674, %v2670
        %v3831 = vpack.c.b16 %v2675, %v2671
        %v3832 = vpack.c.b16 %v2676, %v2672
        %v3833 = vpack.c.b16 %v2681, %v2677
        %v3834 = vpack.c.b16 %v2682, %v2678
        %v3835 = vpack.c.b16 %v2683, %v2679
        %v3836 = vpack.c.b16 %v2684, %v2680
        %v3837 = vpack.c.b16 %v2689, %v2685
        %v3838 = vpack.c.b16 %v2690, %v2686
        %v3839 = vpack.c.b16 %v2691, %v2687
        %v3840 = vpack.c.b16 %v2692, %v2688
        %v3841 = vpack.c.b16 %v2697, %v2693
        %v3842 = vpack.c.b16 %v2698, %v2694
        %v3843 = vpack.c.b16 %v2699, %v2695
        %v3844 = vpack.c.b16 %v2700, %v2696
        %v3845 = vpack.c.b16 %v2705, %v2701
        %v3846 = vpack.c.b16 %v2706, %v2702
        %v3847 = vpack.c.b16 %v2707, %v2703
        %v3848 = vpack.c.b16 %v2708, %v2704
        %v3849 = vpack.c.b16 %v2713, %v2709
        %v3850 = vpack.c.b16 %v2714, %v2710
        %v3851 = vpack.c.b16 %v2715, %v2711
        %v3852 = vpack.c.b16 %v2716, %v2712
        %v3853 = vpack.c.b16 %v2721, %v2717
        %v3854 = vpack.c.b16 %v2722, %v2718
        %v3855 = vpack.c.b16 %v2723, %v2719
        %v3856 = vpack.c.b16 %v2724, %v2720
        %v3857 = vpack.c.b16 %v2729, %v2725
        %v3858 = vpack.c.b16 %v2730, %v2726
        %v3859 = vpack.c.b16 %v2731, %v2727
        %v3860 = vpack.c.b16 %v2732, %v2728
        %v3861 = vpack.c.b16 %v2737, %v2733
        %v3862 = vpack.c.b16 %v2738, %v2734
        %v3863 = vpack.c.b16 %v2739, %v2735
        %v3864 = vpack.c.b16 %v2740, %v2736
        %v3865 = vpack.c.b16 %v2745, %v2741
        %v3866 = vpack.c.b16 %v2746, %v2742
        %v3867 = vpack.c.b16 %v2747, %v2743
        %v3868 = vpack.c.b16 %v2748, %v2744
        %v3869 = vpack.c.b16 %v2753, %v2749
        %v3870 = vpack.c.b16 %v2754, %v2750
        %v3871 = vpack.c.b16 %v2755, %v2751
        %v3872 = vpack.c.b16 %v2756, %v2752
        %v3873 = vpack.c.b16 %v2761, %v2757
        %v3874 = vpack.c.b16 %v2762, %v2758
        %v3875 = vpack.c.b16 %v2763, %v2759
        %v3876 = vpack.c.b16 %v2764, %v2760
        %v3877 = vpack.c.b16 %v2769, %v2765
        %v3878 = vpack.c.b16 %v2770, %v2766
        %v3879 = vpack.c.b16 %v2771, %v2767
        %v3880 = vpack.c.b16 %v2772, %v2768
        %v3881 = vpack.c.b16 %v2777, %v2773
        %v3882 = vpack.c.b16 %v2778, %v2774
        %v3883 = vpack.c.b16 %v2779, %v2775
        %v3884 = vpack.c.b16 %v2780, %v2776
        %v3885 = vpack.c.b16 %v2785, %v2781
        %v3886 = vpack.c.b16 %v2786, %v2782
        %v3887 = vpack.c.b16 %v2787, %v2783
        %v3888 = vpack.c.b16 %v2788, %v2784
        %v3889 = vpack.c.b16 %v2793, %v2789
        %v3890 = vpack.c.b16 %v2794, %v2790
        %v3891 = vpack.c.b16 %v2795, %v2791
        %v3892 = vpack.c.b16 %v2796, %v2792
        %v3893 = vpack.c.b16 %v2801, %v2797
        %v3894 = vpack.c.b16 %v2802, %v2798
        %v3895 = vpack.c.b16 %v2803, %v2799
        %v3896 = vpack.c.b16 %v2804, %v2800
        %v3897 = vpack.c.b16 %v2809, %v2805
        %v3898 = vpack.c.b16 %v2810, %v2806
        %v3899 = vpack.c.b16 %v2811, %v2807
        %v3900 = vpack.c.b16 %v2812, %v2808
        %v3901 = vpack.c.b16 %v2817, %v2813
        %v3902 = vpack.c.b16 %v2818, %v2814
        %v3903 = vpack.c.b16 %v2819, %v2815
        %v3904 = vpack.c.b16 %v2820, %v2816
        %v3905 = vpack.c.b16 %v2825, %v2821
        %v3906 = vpack.c.b16 %v2826, %v2822
        %v3907 = vpack.c.b16 %v2827, %v2823
        %v3908 = vpack.c.b16 %v2828, %v2824
        %v3909 = vpack.c.b16 %v2833, %v2829
        %v3910 = vpack.c.b16 %v2834, %v2830
        %v3911 = vpack.c.b16 %v2835, %v2831
        %v3912 = vpack.c.b16 %v2836, %v2832
        %v3913 = vpack.c.b16 %v2841, %v2837
        %v3914 = vpack.c.b16 %v2842, %v2838
        %v3915 = vpack.c.b16 %v2843, %v2839
        %v3916 = vpack.c.b16 %v2844, %v2840
        %v3917 = vpack.c.b16 %v2849, %v2845
        %v3918 = vpack.c.b16 %v2850, %v2846
        %v3919 = vpack.c.b16 %v2851, %v2847
        %v3920 = vpack.c.b16 %v2852, %v2848
        %v3921 = vpack.c.b16 %v2857, %v2853
        %v3922 = vpack.c.b16 %v2858, %v2854
        %v3923 = vpack.c.b16 %v2859, %v2855
        %v3924 = vpack.c.b16 %v2860, %v2856
        %v3925 = vpack.c.b16 %v2865, %v2861
        %v3926 = vpack.c.b16 %v2866, %v2862
        %v3927 = vpack.c.b16 %v2867, %v2863
        %v3928 = vpack.c.b16 %v2868, %v2864
        %v3929 = vpack.c.b16 %v2873, %v2869
        %v3930 = vpack.c.b16 %v2874, %v2870
        %v3931 = vpack.c.b16 %v2875, %v2871
        %v3932 = vpack.c.b16 %v2876, %v2872
        %v3933 = vpack.c.b16 %v2881, %v2877
        %v3934 = vpack.c.b16 %v2882, %v2878
        %v3935 = vpack.c.b16 %v2883, %v2879
        %v3936 = vpack.c.b16 %v2884, %v2880
        %v3937 = vpack.c.b16 %v2889, %v2885
        %v3938 = vpack.c.b16 %v2890, %v2886
        %v3939 = vpack.c.b16 %v2891, %v2887
        %v3940 = vpack.c.b16 %v2892, %v2888
        %v3941 = vpack.c.b16 %v2897, %v2893
        %v3942 = vpack.c.b16 %v2898, %v2894
        %v3943 = vpack.c.b16 %v2899, %v2895
        %v3944 = vpack.c.b16 %v2900, %v2896
        %v3945 = vpack.c.b16 %v2905, %v2901
        %v3946 = vpack.c.b16 %v2906, %v2902
        %v3947 = vpack.c.b16 %v2907, %v2903
        %v3948 = vpack.c.b16 %v2908, %v2904
        %v3949 = vpack.c.b16 %v2913, %v2909
        %v3950 = vpack.c.b16 %v2914, %v2910
        %v3951 = vpack.c.b16 %v2915, %v2911
        %v3952 = vpack.c.b16 %v2916, %v2912
        %v3953 = vpack.c.b16 %v2921, %v2917
        %v3954 = vpack.c.b16 %v2922, %v2918
        %v3955 = vpack.c.b16 %v2923, %v2919
        %v3956 = vpack.c.b16 %v2924, %v2920
        %v3957 = vpack.c.b16 %v2929, %v2925
        %v3958 = vpack.c.b16 %v2930, %v2926
        %v3959 = vpack.c.b16 %v2931, %v2927
        %v3960 = vpack.c.b16 %v2932, %v2928
        %v3961 = vpack.c.b16 %v2937, %v2933
        %v3962 = vpack.c.b16 %v2938, %v2934
        %v3963 = vpack.c.b16 %v2939, %v2935
        %v3964 = vpack.c.b16 %v2940, %v2936
        %v3965 = vpack.c.b16 %v2945, %v2941
        %v3966 = vpack.c.b16 %v2946, %v2942
        %v3967 = vpack.c.b16 %v2947, %v2943
        %v3968 = vpack.c.b16 %v2948, %v2944
        %v3969 = vpack.c.b16 %v2953, %v2949
        %v3970 = vpack.c.b16 %v2954, %v2950
        %v3971 = vpack.c.b16 %v2955, %v2951
        %v3972 = vpack.c.b16 %v2956, %v2952
        %v3973 = vpack.c.b16 %v2961, %v2957
        %v3974 = vpack.c.b16 %v2962, %v2958
        %v3975 = vpack.c.b16 %v2963, %v2959
        %v3976 = vpack.c.b16 %v2964, %v2960
        %v3977 = vpack.c.b16 %v2969, %v2965
        %v3978 = vpack.c.b16 %v2970, %v2966
        %v3979 = vpack.c.b16 %v2971, %v2967
        %v3980 = vpack.c.b16 %v2972, %v2968
        %v3981 = vpack.c.b16 %v2977, %v2973
        %v3982 = vpack.c.b16 %v2978, %v2974
        %v3983 = vpack.c.b16 %v2979, %v2975
        %v3984 = vpack.c.b16 %v2980, %v2976
        %v3985 = vpack.c.b16 %v2985, %v2981
        %v3986 = vpack.c.b16 %v2986, %v2982
        %v3987 = vpack.c.b16 %v2987, %v2983
        %v3988 = vpack.c.b16 %v2988, %v2984
        %v3989 = vpack.c.b16 %v2993, %v2989
        %v3990 = vpack.c.b16 %v2994, %v2990
        %v3991 = vpack.c.b16 %v2995, %v2991
        %v3992 = vpack.c.b16 %v2996, %v2992
        %v3993 = vpack.c.b16 %v3001, %v2997
        %v3994 = vpack.c.b16 %v3002, %v2998
        %v3995 = vpack.c.b16 %v3003, %v2999
        %v3996 = vpack.c.b16 %v3004, %v3000
        %v3997 = vpack.c.b16 %v3009, %v3005
        %v3998 = vpack.c.b16 %v3010, %v3006
        %v3999 = vpack.c.b16 %v3011, %v3007
        %v4000 = vpack.c.b16 %v3012, %v3008
        %v4001 = vpack.c.b16 %v3017, %v3013
        %v4002 = vpack.c.b16 %v3018, %v3014
        %v4003 = vpack.c.b16 %v3019, %v3015
        %v4004 = vpack.c.b16 %v3020, %v3016
        %v4005 = vpack.c.b16 %v3025, %v3021
        %v4006 = vpack.c.b16 %v3026, %v3022
        %v4007 = vpack.c.b16 %v3027, %v3023
        %v4008 = vpack.c.b16 %v3028, %v3024
        %v4009 = vpack.c.b16 %v3033, %v3029
        %v4010 = vpack.c.b16 %v3034, %v3030
        %v4011 = vpack.c.b16 %v3035, %v3031
        %v4012 = vpack.c.b16 %v3036, %v3032
        %v4013 = vpack.c.b16 %v3041, %v3037
        %v4014 = vpack.c.b16 %v3042, %v3038
        %v4015 = vpack.c.b16 %v3043, %v3039
        %v4016 = vpack.c.b16 %v3044, %v3040
        %v4017 = vpack.c.b16 %v3049, %v3045
        %v4018 = vpack.c.b16 %v3050, %v3046
        %v4019 = vpack.c.b16 %v3051, %v3047
        %v4020 = vpack.c.b16 %v3052, %v3048
        %v4021 = vpack.c.b16 %v3057, %v3053
        %v4022 = vpack.c.b16 %v3058, %v3054
        %v4023 = vpack.c.b16 %v3059, %v3055
        %v4024 = vpack.c.b16 %v3060, %v3056
        %v4025 = vpack.c.b16 %v3065, %v3061
        %v4026 = vpack.c.b16 %v3066, %v3062
        %v4027 = vpack.c.b16 %v3067, %v3063
        %v4028 = vpack.c.b16 %v3068, %v3064
        %v4029 = vpack.c.b16 %v3073, %v3069
        %v4030 = vpack.c.b16 %v3074, %v3070
        %v4031 = vpack.c.b16 %v3075, %v3071
        %v4032 = vpack.c.b16 %v3076, %v3072
        %v4033 = vpack.c.b16 %v3081, %v3077
        %v4034 = vpack.c.b16 %v3082, %v3078
        %v4035 = vpack.c.b16 %v3083, %v3079
        %v4036 = vpack.c.b16 %v3084, %v3080
        %v4037 = vpack.c.b16 %v3089, %v3085
        %v4038 = vpack.c.b16 %v3090, %v3086
        %v4039 = vpack.c.b16 %v3091, %v3087
        %v4040 = vpack.c.b16 %v3092, %v3088
        %v4041 = vpack.c.b16 %v3097, %v3093
        %v4042 = vpack.c.b16 %v3098, %v3094
        %v4043 = vpack.c.b16 %v3099, %v3095
        %v4044 = vpack.c.b16 %v3100, %v3096
        %v4045 = vpack.c.b16 %v3105, %v3101
        %v4046 = vpack.c.b16 %v3106, %v3102
        %v4047 = vpack.c.b16 %v3107, %v3103
        %v4048 = vpack.c.b16 %v3108, %v3104
        %v4049 = vpack.c.b16 %v3113, %v3109
        %v4050 = vpack.c.b16 %v3114, %v3110
        %v4051 = vpack.c.b16 %v3115, %v3111
        %v4052 = vpack.c.b16 %v3116, %v3112
        %v4053 = vpack.c.b16 %v3121, %v3117
        %v4054 = vpack.c.b16 %v3122, %v3118
        %v4055 = vpack.c.b16 %v3123, %v3119
        %v4056 = vpack.c.b16 %v3124, %v3120
        %v4057 = vpack.c.b16 %v3129, %v3125
        %v4058 = vpack.c.b16 %v3130, %v3126
        %v4059 = vpack.c.b16 %v3131, %v3127
        %v4060 = vpack.c.b16 %v3132, %v3128
        %v4061 = vpack.c.b16 %v3137, %v3133
        %v4062 = vpack.c.b16 %v3138, %v3134
        %v4063 = vpack.c.b16 %v3139, %v3135
        %v4064 = vpack.c.b16 %v3140, %v3136
        %v4065 = vpack.c.b16 %v3145, %v3141
        %v4066 = vpack.c.b16 %v3146, %v3142
        %v4067 = vpack.c.b16 %v3147, %v3143
        %v4068 = vpack.c.b16 %v3148, %v3144
        %v4069 = vpack.c.b16 %v3153, %v3149
        %v4070 = vpack.c.b16 %v3154, %v3150
        %v4071 = vpack.c.b16 %v3155, %v3151
        %v4072 = vpack.c.b16 %v3156, %v3152
        %v4073 = vpack.c.b16 %v3161, %v3157
        %v4074 = vpack.c.b16 %v3162, %v3158
        %v4075 = vpack.c.b16 %v3163, %v3159
        %v4076 = vpack.c.b16 %v3164, %v3160
        %v4077 = vpack.c.b16 %v3169, %v3165
        %v4078 = vpack.c.b16 %v3170, %v3166
        %v4079 = vpack.c.b16 %v3171, %v3167
        %v4080 = vpack.c.b16 %v3172, %v3168
        %v4081 = vpack.c.b16 %v3177, %v3173
        %v4082 = vpack.c.b16 %v3178, %v3174
        %v4083 = vpack.c.b16 %v3179, %v3175
        %v4084 = vpack.c.b16 %v3180, %v3176
        %v4085 = vpack.c.b16 %v3185, %v3181
        %v4086 = vpack.c.b16 %v3186, %v3182
        %v4087 = vpack.c.b16 %v3187, %v3183
        %v4088 = vpack.c.b16 %v3188, %v3184
        %v4089 = vpack.c.b16 %v3193, %v3189
        %v4090 = vpack.c.b16 %v3194, %v3190
        %v4091 = vpack.c.b16 %v3195, %v3191
        %v4092 = vpack.c.b16 %v3196, %v3192
        %v4093 = vpack.c.b16 %v3201, %v3197
        %v4094 = vpack.c.b16 %v3202, %v3198
        %v4095 = vpack.c.b16 %v3203, %v3199
        %v4096 = vpack.c.b16 %v3204, %v3200
        %v4097 = vpack.c.b16 %v3209, %v3205
        %v4098 = vpack.c.b16 %v3210, %v3206
        %v4099 = vpack.c.b16 %v3211, %v3207
        %v4100 = vpack.c.b16 %v3212, %v3208
        %v4101 = vpack.c.b16 %v3217, %v3213
        %v4102 = vpack.c.b16 %v3218, %v3214
        %v4103 = vpack.c.b16 %v3219, %v3215
        %v4104 = vpack.c.b16 %v3220, %v3216
        %v4105 = vpack.c.b16 %v3225, %v3221
        %v4106 = vpack.c.b16 %v3226, %v3222
        %v4107 = vpack.c.b16 %v3227, %v3223
        %v4108 = vpack.c.b16 %v3228, %v3224
        %v4109 = vpack.c.b16 %v3233, %v3229
        %v4110 = vpack.c.b16 %v3234, %v3230
        %v4111 = vpack.c.b16 %v3235, %v3231
        %v4112 = vpack.c.b16 %v3236, %v3232
        %v4113 = vpack.c.b16 %v3241, %v3237
        %v4114 = vpack.c.b16 %v3242, %v3238
        %v4115 = vpack.c.b16 %v3243, %v3239
        %v4116 = vpack.c.b16 %v3244, %v3240
        %v4117 = vpack.c.b16 %v3249, %v3245
        %v4118 = vpack.c.b16 %v3250, %v3246
        %v4119 = vpack.c.b16 %v3251, %v3247
        %v4120 = vpack.c.b16 %v3252, %v3248
        %v4121 = vpack.c.b16 %v3257, %v3253
        %v4122 = vpack.c.b16 %v3258, %v3254
        %v4123 = vpack.c.b16 %v3259, %v3255
        %v4124 = vpack.c.b16 %v3260, %v3256
        %v4125 = vpack.c.b16 %v3265, %v3261
        %v4126 = vpack.c.b16 %v3266, %v3262
        %v4127 = vpack.c.b16 %v3267, %v3263
        %v4128 = vpack.c.b16 %v3268, %v3264
        %v4129 = vpack.c.b16 %v3273, %v3269
        %v4130 = vpack.c.b16 %v3274, %v3270
        %v4131 = vpack.c.b16 %v3275, %v3271
        %v4132 = vpack.c.b16 %v3276, %v3272
        %v4133 = vpack.c.b16 %v3281, %v3277
        %v4134 = vpack.c.b16 %v3282, %v3278
        %v4135 = vpack.c.b16 %v3283, %v3279
        %v4136 = vpack.c.b16 %v3284, %v3280
        %v4137 = vpack.c.b16 %v3289, %v3285
        %v4138 = vpack.c.b16 %v3290, %v3286
        %v4139 = vpack.c.b16 %v3291, %v3287
        %v4140 = vpack.c.b16 %v3292, %v3288
        %v4141 = vpack.c.b16 %v3297, %v3293
        %v4142 = vpack.c.b16 %v3298, %v3294
        %v4143 = vpack.c.b16 %v3299, %v3295
        %v4144 = vpack.c.b16 %v3300, %v3296
        %v4145 = vpack.c.b16 %v3305, %v3301
        %v4146 = vpack.c.b16 %v3306, %v3302
        %v4147 = vpack.c.b16 %v3307, %v3303
        %v4148 = vpack.c.b16 %v3308, %v3304
        %v4149 = vpack.c.b16 %v3313, %v3309
        %v4150 = vpack.c.b16 %v3314, %v3310
        %v4151 = vpack.c.b16 %v3315, %v3311
        %v4152 = vpack.c.b16 %v3316, %v3312
        %v4153 = vpack.c.b16 %v3321, %v3317
        %v4154 = vpack.c.b16 %v3322, %v3318
        %v4155 = vpack.c.b16 %v3323, %v3319
        %v4156 = vpack.c.b16 %v3324, %v3320
        %v4157 = vpack.c.b16 %v3329, %v3325
        %v4158 = vpack.c.b16 %v3330, %v3326
        %v4159 = vpack.c.b16 %v3331, %v3327
        %v4160 = vpack.c.b16 %v3332, %v3328
        %v4161 = vpack.c.b16 %v3337, %v3333
        %v4162 = vpack.c.b16 %v3338, %v3334
        %v4163 = vpack.c.b16 %v3339, %v3335
        %v4164 = vpack.c.b16 %v3340, %v3336
        %v4165 = vpack.c.b16 %v3345, %v3341
        %v4166 = vpack.c.b16 %v3346, %v3342
        %v4167 = vpack.c.b16 %v3347, %v3343
        %v4168 = vpack.c.b16 %v3348, %v3344
        %v4169 = vpack.c.b16 %v3353, %v3349
        %v4170 = vpack.c.b16 %v3354, %v3350
        %v4171 = vpack.c.b16 %v3355, %v3351
        %v4172 = vpack.c.b16 %v3356, %v3352
        %v4173 = vpack.c.b16 %v3361, %v3357
        %v4174 = vpack.c.b16 %v3362, %v3358
        %v4175 = vpack.c.b16 %v3363, %v3359
        %v4176 = vpack.c.b16 %v3364, %v3360
        %v4177 = vpack.c.b16 %v3369, %v3365
        %v4178 = vpack.c.b16 %v3370, %v3366
        %v4179 = vpack.c.b16 %v3371, %v3367
        %v4180 = vpack.c.b16 %v3372, %v3368
        %v4181 = vpack.c.b16 %v3377, %v3373
        %v4182 = vpack.c.b16 %v3378, %v3374
        %v4183 = vpack.c.b16 %v3379, %v3375
        %v4184 = vpack.c.b16 %v3380, %v3376
        %v4185 = vpack.c.b16 %v3385, %v3381
        %v4186 = vpack.c.b16 %v3386, %v3382
        %v4187 = vpack.c.b16 %v3387, %v3383
        %v4188 = vpack.c.b16 %v3388, %v3384
        %v4189 = vpack.c.b16 %v3393, %v3389
        %v4190 = vpack.c.b16 %v3394, %v3390
        %v4191 = vpack.c.b16 %v3395, %v3391
        %v4192 = vpack.c.b16 %v3396, %v3392
        %v4193 = vpack.c.b16 %v3401, %v3397
        %v4194 = vpack.c.b16 %v3402, %v3398
        %v4195 = vpack.c.b16 %v3403, %v3399
        %v4196 = vpack.c.b16 %v3404, %v3400
        %v4197 = vpack.c.b16 %v3409, %v3405
        %v4198 = vpack.c.b16 %v3410, %v3406
        %v4199 = vpack.c.b16 %v3411, %v3407
        %v4200 = vpack.c.b16 %v3412, %v3408
        %v4201 = vpack.c.b16 %v3417, %v3413
        %v4202 = vpack.c.b16 %v3418, %v3414
        %v4203 = vpack.c.b16 %v3419, %v3415
        %v4204 = vpack.c.b16 %v3420, %v3416
        %v4205 = vpack.c.b16 %v3425, %v3421
        %v4206 = vpack.c.b16 %v3426, %v3422
        %v4207 = vpack.c.b16 %v3427, %v3423
        %v4208 = vpack.c.b16 %v3428, %v3424
        %v4209 = vpack.c.b16 %v3433, %v3429
        %v4210 = vpack.c.b16 %v3434, %v3430
        %v4211 = vpack.c.b16 %v3435, %v3431
        %v4212 = vpack.c.b16 %v3436, %v3432
        %v4213 = vpack.c.b16 %v3441, %v3437
        %v4214 = vpack.c.b16 %v3442, %v3438
        %v4215 = vpack.c.b16 %v3443, %v3439
        %v4216 = vpack.c.b16 %v3444, %v3440
        %v4217 = vpack.c.b16 %v3449, %v3445
        %v4218 = vpack.c.b16 %v3450, %v3446
        %v4219 = vpack.c.b16 %v3451, %v3447
        %v4220 = vpack.c.b16 %v3452, %v3448
        %4989 = vmatprep.subr.bf16.mxu0 %v3454
        %4990 = vmatpush1.bf16.msra.mxu0 %v3453
        %4991 = vmatprep.subr.bf16.mxu0 %v3458
        %4992 = vmatpush1.bf16.msra.mxu0 %v3457
        %4993 = vmatprep.subr.bf16.mxu0 %v3462
        %4994 = vmatpush1.bf16.msra.mxu0 %v3461
        %4995 = vmatprep.subr.bf16.mxu0 %v3466
        %4996 = vmatpush1.bf16.msra.mxu0 %v3465
        %4997 = vmatprep.subr.bf16.mxu0 %v3470
        %4998 = vmatpush1.bf16.msra.mxu0 %v3469
        %4999 = vmatprep.subr.bf16.mxu0 %v3474
        %5000 = vmatpush1.bf16.msra.mxu0 %v3473
        %5001 = vmatprep.subr.bf16.mxu0 %v3478
        %5002 = vmatpush1.bf16.msra.mxu0 %v3477
        %5003 = vmatprep.subr.bf16.mxu0 %v3482
        %5004 = vmatpush1.bf16.msra.mxu0 %v3481
        %5005 = vmatprep.subr.bf16.mxu0 %v3486
        %5006 = vmatpush1.bf16.msra.mxu0 %v3485
        %5007 = vmatprep.subr.bf16.mxu0 %v3490
        %5008 = vmatpush1.bf16.msra.mxu0 %v3489
        %5009 = vmatprep.subr.bf16.mxu0 %v3494
        %5010 = vmatpush1.bf16.msra.mxu0 %v3493
        %5011 = vmatprep.subr.bf16.mxu0 %v3498
        %5012 = vmatpush1.bf16.msra.mxu0 %v3497
        %5013 = vmatprep.subr.bf16.mxu0 %v3502
        %5014 = vmatpush1.bf16.msra.mxu0 %v3501
        %5015 = vmatprep.subr.bf16.mxu0 %v3506
        %5016 = vmatpush1.bf16.msra.mxu0 %v3505
        %5017 = vmatprep.subr.bf16.mxu0 %v3510
        %5018 = vmatpush1.bf16.msra.mxu0 %v3509
        %5019 = vmatprep.subr.bf16.mxu0 %v3514
        %5020 = vmatpush1.bf16.msra.mxu0 %v3513
        %5021 = vmatprep.mubr.bf16.mxu0 %v336
        %5022 = vmatmul.mubr.bf16.gmra.mrb[0].mxu0 %v335
        %v5023 = vpop.f32.mrb[0].mxu0
        %v5024 = vadd.f32 %v1132, %v5023
        %v5025 = vpop.f32.mrb[0].mxu0
        %v5026 = vadd.f32 %v1136, %v5025
        %v5027 = vpop.f32.mrb[0].mxu0
        %v5028 = vpop.f32.mrb[0].mxu0
        %5029 = vdwg.mxu0
        %5030 = vmatprep.subr.bf16.mxu0 %v3518
        %5031 = vmatpush1.bf16.msra.mxu0 %v3517
        %5032 = vmatprep.subr.bf16.mxu0 %v3522
        %5033 = vmatpush1.bf16.msra.mxu0 %v3521
        %5034 = vmatprep.subr.bf16.mxu0 %v3526
        %5035 = vmatpush1.bf16.msra.mxu0 %v3525
        %5036 = vmatprep.subr.bf16.mxu0 %v3530
        %5037 = vmatpush1.bf16.msra.mxu0 %v3529
        %5038 = vmatprep.subr.bf16.mxu0 %v3534
        %5039 = vmatpush1.bf16.msra.mxu0 %v3533
        %5040 = vmatprep.subr.bf16.mxu0 %v3538
        %5041 = vmatpush1.bf16.msra.mxu0 %v3537
        %5042 = vmatprep.subr.bf16.mxu0 %v3542
        %5043 = vmatpush1.bf16.msra.mxu0 %v3541
        %5044 = vmatprep.subr.bf16.mxu0 %v3546
        %5045 = vmatpush1.bf16.msra.mxu0 %v3545
        %5046 = vmatprep.subr.bf16.mxu0 %v3550
        %5047 = vmatpush1.bf16.msra.mxu0 %v3549
        %5048 = vmatprep.subr.bf16.mxu0 %v3554
        %5049 = vmatpush1.bf16.msra.mxu0 %v3553
        %5050 = vmatprep.subr.bf16.mxu0 %v3558
        %5051 = vmatpush1.bf16.msra.mxu0 %v3557
        %5052 = vmatprep.subr.bf16.mxu0 %v3562
        %5053 = vmatpush1.bf16.msra.mxu0 %v3561
        %5054 = vmatprep.subr.bf16.mxu0 %v3566
        %5055 = vmatpush1.bf16.msra.mxu0 %v3565
        %5056 = vmatprep.subr.bf16.mxu0 %v3570
        %5057 = vmatpush1.bf16.msra.mxu0 %v3569
        %5058 = vmatprep.subr.bf16.mxu0 %v3574
        %5059 = vmatpush1.bf16.msra.mxu0 %v3573
        %5060 = vmatprep.subr.bf16.mxu0 %v3578
        %5061 = vmatpush1.bf16.msra.mxu0 %v3577
        %5062 = vmatprep.mubr.bf16.mxu0 %v338
        %5063 = vmatmul.mubr.bf16.gmra.mrb[0].mxu0 %v337
        %v5064 = vpop.f32.mrb[0].mxu0
        %v5065 = vadd.f32 %v5024, %v5064
        %v5066 = vpop.f32.mrb[0].mxu0
        %v5067 = vadd.f32 %v5026, %v5066
        %v5068 = vpop.f32.mrb[0].mxu0
        %v5069 = vpop.f32.mrb[0].mxu0
        %5070 = vdwg.mxu0
        %5071 = vmatprep.subr.bf16.mxu0 %v3582
        %5072 = vmatpush1.bf16.msra.mxu0 %v3581
        %5073 = vmatprep.subr.bf16.mxu0 %v3586
        %5074 = vmatpush1.bf16.msra.mxu0 %v3585
        %5075 = vmatprep.subr.bf16.mxu0 %v3590
        %5076 = vmatpush1.bf16.msra.mxu0 %v3589
        %5077 = vmatprep.subr.bf16.mxu0 %v3594
        %5078 = vmatpush1.bf16.msra.mxu0 %v3593
        %5079 = vmatprep.subr.bf16.mxu0 %v3598
        %5080 = vmatpush1.bf16.msra.mxu0 %v3597
        %5081 = vmatprep.subr.bf16.mxu0 %v3602
        %5082 = vmatpush1.bf16.msra.mxu0 %v3601
        %5083 = vmatprep.subr.bf16.mxu0 %v3606
        %5084 = vmatpush1.bf16.msra.mxu0 %v3605
        %5085 = vmatprep.subr.bf16.mxu0 %v3610
        %5086 = vmatpush1.bf16.msra.mxu0 %v3609
        %5087 = vmatprep.subr.bf16.mxu0 %v3614
        %5088 = vmatpush1.bf16.msra.mxu0 %v3613
        %5089 = vmatprep.subr.bf16.mxu0 %v3618
        %5090 = vmatpush1.bf16.msra.mxu0 %v3617
        %5091 = vmatprep.subr.bf16.mxu0 %v3622
        %5092 = vmatpush1.bf16.msra.mxu0 %v3621
        %5093 = vmatprep.subr.bf16.mxu0 %v3626
        %5094 = vmatpush1.bf16.msra.mxu0 %v3625
        %5095 = vmatprep.subr.bf16.mxu0 %v3630
        %5096 = vmatpush1.bf16.msra.mxu0 %v3629
        %5097 = vmatprep.subr.bf16.mxu0 %v3634
        %5098 = vmatpush1.bf16.msra.mxu0 %v3633
        %5099 = vmatprep.subr.bf16.mxu0 %v3638
        %5100 = vmatpush1.bf16.msra.mxu0 %v3637
        %5101 = vmatprep.subr.bf16.mxu0 %v3642
        %5102 = vmatpush1.bf16.msra.mxu0 %v3641
        %5103 = vmatprep.mubr.bf16.mxu0 %v340
        %5104 = vmatmul.mubr.bf16.gmra.mrb[0].mxu0 %v339
        %v5105 = vpop.f32.mrb[0].mxu0
        %v5106 = vadd.f32 %v5065, %v5105
        %v5107 = vpop.f32.mrb[0].mxu0
        %v5108 = vadd.f32 %v5067, %v5107
        %v5109 = vpop.f32.mrb[0].mxu0
        %v5110 = vpop.f32.mrb[0].mxu0
        %5111 = vdwg.mxu0
        %5112 = vmatprep.subr.bf16.mxu0 %v3646
        %5113 = vmatpush1.bf16.msra.mxu0 %v3645
        %5114 = vmatprep.subr.bf16.mxu0 %v3650
        %5115 = vmatpush1.bf16.msra.mxu0 %v3649
        %5116 = vmatprep.subr.bf16.mxu0 %v3654
        %5117 = vmatpush1.bf16.msra.mxu0 %v3653
        %5118 = vmatprep.subr.bf16.mxu0 %v3658
        %5119 = vmatpush1.bf16.msra.mxu0 %v3657
        %5120 = vmatprep.subr.bf16.mxu0 %v3662
        %5121 = vmatpush1.bf16.msra.mxu0 %v3661
        %5122 = vmatprep.subr.bf16.mxu0 %v3666
        %5123 = vmatpush1.bf16.msra.mxu0 %v3665
        %5124 = vmatprep.subr.bf16.mxu0 %v3670
        %5125 = vmatpush1.bf16.msra.mxu0 %v3669
        %5126 = vmatprep.subr.bf16.mxu0 %v3674
        %5127 = vmatpush1.bf16.msra.mxu0 %v3673
        %5128 = vmatprep.subr.bf16.mxu0 %v3678
        %5129 = vmatpush1.bf16.msra.mxu0 %v3677
        %5130 = vmatprep.subr.bf16.mxu0 %v3682
        %5131 = vmatpush1.bf16.msra.mxu0 %v3681
        %5132 = vmatprep.subr.bf16.mxu0 %v3686
        %5133 = vmatpush1.bf16.msra.mxu0 %v3685
        %5134 = vmatprep.subr.bf16.mxu0 %v3690
        %5135 = vmatpush1.bf16.msra.mxu0 %v3689
        %5136 = vmatprep.subr.bf16.mxu0 %v3694
        %5137 = vmatpush1.bf16.msra.mxu0 %v3693
        %5138 = vmatprep.subr.bf16.mxu0 %v3698
        %5139 = vmatpush1.bf16.msra.mxu0 %v3697
        %5140 = vmatprep.subr.bf16.mxu0 %v3702
        %5141 = vmatpush1.bf16.msra.mxu0 %v3701
        %5142 = vmatprep.subr.bf16.mxu0 %v3706
        %5143 = vmatpush1.bf16.msra.mxu0 %v3705
        %5144 = vmatprep.mubr.bf16.mxu0 %v342
        %5145 = vmatmul.mubr.bf16.gmra.mrb[0].mxu0 %v341
        %v5146 = vpop.f32.mrb[0].mxu0
        %v5147 = vadd.f32 %v5106, %v5146
        %v5148 = vpop.f32.mrb[0].mxu0
        %v5149 = vadd.f32 %v5108, %v5148
        %v5150 = vpop.f32.mrb[0].mxu0
        %v5151 = vpop.f32.mrb[0].mxu0
        %5152 = vdwg.mxu0
        %5153 = vmatprep.subr.bf16.mxu0 %v3710
        %5154 = vmatpush1.bf16.msra.mxu0 %v3709
        %5155 = vmatprep.subr.bf16.mxu0 %v3714
        %5156 = vmatpush1.bf16.msra.mxu0 %v3713
        %5157 = vmatprep.subr.bf16.mxu0 %v3718
        %5158 = vmatpush1.bf16.msra.mxu0 %v3717
        %5159 = vmatprep.subr.bf16.mxu0 %v3722
        %5160 = vmatpush1.bf16.msra.mxu0 %v3721
        %5161 = vmatprep.subr.bf16.mxu0 %v3726
        %5162 = vmatpush1.bf16.msra.mxu0 %v3725
        %5163 = vmatprep.subr.bf16.mxu0 %v3730
        %5164 = vmatpush1.bf16.msra.mxu0 %v3729
        %5165 = vmatprep.subr.bf16.mxu0 %v3734
        %5166 = vmatpush1.bf16.msra.mxu0 %v3733
        %5167 = vmatprep.subr.bf16.mxu0 %v3738
        %5168 = vmatpush1.bf16.msra.mxu0 %v3737
        %5169 = vmatprep.subr.bf16.mxu0 %v3742
        %5170 = vmatpush1.bf16.msra.mxu0 %v3741
        %5171 = vmatprep.subr.bf16.mxu0 %v3746
        %5172 = vmatpush1.bf16.msra.mxu0 %v3745
        %5173 = vmatprep.subr.bf16.mxu0 %v3750
        %5174 = vmatpush1.bf16.msra.mxu0 %v3749
        %5175 = vmatprep.subr.bf16.mxu0 %v3754
        %5176 = vmatpush1.bf16.msra.mxu0 %v3753
        %5177 = vmatprep.subr.bf16.mxu0 %v3758
        %5178 = vmatpush1.bf16.msra.mxu0 %v3757
        %5179 = vmatprep.subr.bf16.mxu0 %v3762
        %5180 = vmatpush1.bf16.msra.mxu0 %v3761
        %5181 = vmatprep.subr.bf16.mxu0 %v3766
        %5182 = vmatpush1.bf16.msra.mxu0 %v3765
        %5183 = vmatprep.subr.bf16.mxu0 %v3770
        %5184 = vmatpush1.bf16.msra.mxu0 %v3769
        %5185 = vmatprep.mubr.bf16.mxu0 %v344
        %5186 = vmatmul.mubr.bf16.gmra.mrb[0].mxu0 %v343
        %v5187 = vpop.f32.mrb[0].mxu0
        %v5188 = vadd.f32 %v5147, %v5187
        %v5189 = vpop.f32.mrb[0].mxu0
        %v5190 = vadd.f32 %v5149, %v5189
        %v5191 = vpop.f32.mrb[0].mxu0
        %v5192 = vpop.f32.mrb[0].mxu0
        %5193 = vdwg.mxu0
        %5194 = vmatprep.subr.bf16.mxu0 %v3774
        %5195 = vmatpush1.bf16.msra.mxu0 %v3773
        %5196 = vmatprep.subr.bf16.mxu0 %v3778
        %5197 = vmatpush1.bf16.msra.mxu0 %v3777
        %5198 = vmatprep.subr.bf16.mxu0 %v3782
        %5199 = vmatpush1.bf16.msra.mxu0 %v3781
        %5200 = vmatprep.subr.bf16.mxu0 %v3786
        %5201 = vmatpush1.bf16.msra.mxu0 %v3785
        %5202 = vmatprep.subr.bf16.mxu0 %v3790
        %5203 = vmatpush1.bf16.msra.mxu0 %v3789
        %5204 = vmatprep.subr.bf16.mxu0 %v3794
        %5205 = vmatpush1.bf16.msra.mxu0 %v3793
        %5206 = vmatprep.subr.bf16.mxu0 %v3798
        %5207 = vmatpush1.bf16.msra.mxu0 %v3797
        %5208 = vmatprep.subr.bf16.mxu0 %v3802
        %5209 = vmatpush1.bf16.msra.mxu0 %v3801
        %5210 = vmatprep.subr.bf16.mxu0 %v3806
        %5211 = vmatpush1.bf16.msra.mxu0 %v3805
        %5212 = vmatprep.subr.bf16.mxu0 %v3810
        %5213 = vmatpush1.bf16.msra.mxu0 %v3809
        %5214 = vmatprep.subr.bf16.mxu0 %v3814
        %5215 = vmatpush1.bf16.msra.mxu0 %v3813
        %5216 = vmatprep.subr.bf16.mxu0 %v3818
        %5217 = vmatpush1.bf16.msra.mxu0 %v3817
        %5218 = vmatprep.subr.bf16.mxu0 %v3822
        %5219 = vmatpush1.bf16.msra.mxu0 %v3821
        %5220 = vmatprep.subr.bf16.mxu0 %v3826
        %5221 = vmatpush1.bf16.msra.mxu0 %v3825
        %5222 = vmatprep.subr.bf16.mxu0 %v3830
        %5223 = vmatpush1.bf16.msra.mxu0 %v3829
        %5224 = vmatprep.subr.bf16.mxu0 %v3834
        %5225 = vmatpush1.bf16.msra.mxu0 %v3833
        %5226 = vmatprep.mubr.bf16.mxu0 %v346
        %5227 = vmatmul.mubr.bf16.gmra.mrb[0].mxu0 %v345
        %v5228 = vpop.f32.mrb[0].mxu0
        %v5229 = vadd.f32 %v5188, %v5228
        %v5230 = vpop.f32.mrb[0].mxu0
        %v5231 = vadd.f32 %v5190, %v5230
        %v5232 = vpop.f32.mrb[0].mxu0
        %v5233 = vpop.f32.mrb[0].mxu0
        %5234 = vdwg.mxu0
        %5235 = vmatprep.subr.bf16.mxu0 %v3838
        %5236 = vmatpush1.bf16.msra.mxu0 %v3837
        %5237 = vmatprep.subr.bf16.mxu0 %v3842
        %5238 = vmatpush1.bf16.msra.mxu0 %v3841
        %5239 = vmatprep.subr.bf16.mxu0 %v3846
        %5240 = vmatpush1.bf16.msra.mxu0 %v3845
        %5241 = vmatprep.subr.bf16.mxu0 %v3850
        %5242 = vmatpush1.bf16.msra.mxu0 %v3849
        %5243 = vmatprep.subr.bf16.mxu0 %v3854
        %5244 = vmatpush1.bf16.msra.mxu0 %v3853
        %5245 = vmatprep.subr.bf16.mxu0 %v3858
        %5246 = vmatpush1.bf16.msra.mxu0 %v3857
        %5247 = vmatprep.subr.bf16.mxu0 %v3862
        %5248 = vmatpush1.bf16.msra.mxu0 %v3861
        %5249 = vmatprep.subr.bf16.mxu0 %v3866
        %5250 = vmatpush1.bf16.msra.mxu0 %v3865
        %5251 = vmatprep.subr.bf16.mxu0 %v3870
        %5252 = vmatpush1.bf16.msra.mxu0 %v3869
        %5253 = vmatprep.subr.bf16.mxu0 %v3874
        %5254 = vmatpush1.bf16.msra.mxu0 %v3873
        %5255 = vmatprep.subr.bf16.mxu0 %v3878
        %5256 = vmatpush1.bf16.msra.mxu0 %v3877
        %5257 = vmatprep.subr.bf16.mxu0 %v3882
        %5258 = vmatpush1.bf16.msra.mxu0 %v3881
        %5259 = vmatprep.subr.bf16.mxu0 %v3886
        %5260 = vmatpush1.bf16.msra.mxu0 %v3885
        %5261 = vmatprep.subr.bf16.mxu0 %v3890
        %5262 = vmatpush1.bf16.msra.mxu0 %v3889
        %5263 = vmatprep.subr.bf16.mxu0 %v3894
        %5264 = vmatpush1.bf16.msra.mxu0 %v3893
        %5265 = vmatprep.subr.bf16.mxu0 %v3898
        %5266 = vmatpush1.bf16.msra.mxu0 %v3897
        %5267 = vmatprep.mubr.bf16.mxu0 %v348
        %5268 = vmatmul.mubr.bf16.gmra.mrb[0].mxu0 %v347
        %v5269 = vpop.f32.mrb[0].mxu0
        %v5270 = vadd.f32 %v5229, %v5269
        %v5271 = vpop.f32.mrb[0].mxu0
        %v5272 = vadd.f32 %v5231, %v5271
        %v5273 = vpop.f32.mrb[0].mxu0
        %v5274 = vpop.f32.mrb[0].mxu0
        %5275 = vdwg.mxu0
        %5276 = vmatprep.subr.bf16.mxu0 %v3902
        %5277 = vmatpush1.bf16.msra.mxu0 %v3901
        %5278 = vmatprep.subr.bf16.mxu0 %v3906
        %5279 = vmatpush1.bf16.msra.mxu0 %v3905
        %5280 = vmatprep.subr.bf16.mxu0 %v3910
        %5281 = vmatpush1.bf16.msra.mxu0 %v3909
        %5282 = vmatprep.subr.bf16.mxu0 %v3914
        %5283 = vmatpush1.bf16.msra.mxu0 %v3913
        %5284 = vmatprep.subr.bf16.mxu0 %v3918
        %5285 = vmatpush1.bf16.msra.mxu0 %v3917
        %5286 = vmatprep.subr.bf16.mxu0 %v3922
        %5287 = vmatpush1.bf16.msra.mxu0 %v3921
        %5288 = vmatprep.subr.bf16.mxu0 %v3926
        %5289 = vmatpush1.bf16.msra.mxu0 %v3925
        %5290 = vmatprep.subr.bf16.mxu0 %v3930
        %5291 = vmatpush1.bf16.msra.mxu0 %v3929
        %5292 = vmatprep.subr.bf16.mxu0 %v3934
        %5293 = vmatpush1.bf16.msra.mxu0 %v3933
        %5294 = vmatprep.subr.bf16.mxu0 %v3938
        %5295 = vmatpush1.bf16.msra.mxu0 %v3937
        %5296 = vmatprep.subr.bf16.mxu0 %v3942
        %5297 = vmatpush1.bf16.msra.mxu0 %v3941
        %5298 = vmatprep.subr.bf16.mxu0 %v3946
        %5299 = vmatpush1.bf16.msra.mxu0 %v3945
        %5300 = vmatprep.subr.bf16.mxu0 %v3950
        %5301 = vmatpush1.bf16.msra.mxu0 %v3949
        %5302 = vmatprep.subr.bf16.mxu0 %v3954
        %5303 = vmatpush1.bf16.msra.mxu0 %v3953
        %5304 = vmatprep.subr.bf16.mxu0 %v3958
        %5305 = vmatpush1.bf16.msra.mxu0 %v3957
        %5306 = vmatprep.subr.bf16.mxu0 %v3962
        %5307 = vmatpush1.bf16.msra.mxu0 %v3961
        %5308 = vmatprep.mubr.bf16.mxu0 %v350
        %5309 = vmatmul.mubr.bf16.gmra.mrb[0].mxu0 %v349
        %v5310 = vpop.f32.mrb[0].mxu0
        %v5311 = vadd.f32 %v5270, %v5310
        %v5312 = vpop.f32.mrb[0].mxu0
        %v5313 = vadd.f32 %v5272, %v5312
        %v5314 = vpop.f32.mrb[0].mxu0
        %v5315 = vpop.f32.mrb[0].mxu0
        %5316 = vdwg.mxu0
        %5317 = vmatprep.subr.bf16.mxu0 %v3966
        %5318 = vmatpush1.bf16.msra.mxu0 %v3965
        %5319 = vmatprep.subr.bf16.mxu0 %v3970
        %5320 = vmatpush1.bf16.msra.mxu0 %v3969
        %5321 = vmatprep.subr.bf16.mxu0 %v3974
        %5322 = vmatpush1.bf16.msra.mxu0 %v3973
        %5323 = vmatprep.subr.bf16.mxu0 %v3978
        %5324 = vmatpush1.bf16.msra.mxu0 %v3977
        %5325 = vmatprep.subr.bf16.mxu0 %v3982
        %5326 = vmatpush1.bf16.msra.mxu0 %v3981
        %5327 = vmatprep.subr.bf16.mxu0 %v3986
        %5328 = vmatpush1.bf16.msra.mxu0 %v3985
        %5329 = vmatprep.subr.bf16.mxu0 %v3990
        %5330 = vmatpush1.bf16.msra.mxu0 %v3989
        %5331 = vmatprep.subr.bf16.mxu0 %v3994
        %5332 = vmatpush1.bf16.msra.mxu0 %v3993
        %5333 = vmatprep.subr.bf16.mxu0 %v3998
        %5334 = vmatpush1.bf16.msra.mxu0 %v3997
        %5335 = vmatprep.subr.bf16.mxu0 %v4002
        %5336 = vmatpush1.bf16.msra.mxu0 %v4001
        %5337 = vmatprep.subr.bf16.mxu0 %v4006
        %5338 = vmatpush1.bf16.msra.mxu0 %v4005
        %5339 = vmatprep.subr.bf16.mxu0 %v4010
        %5340 = vmatpush1.bf16.msra.mxu0 %v4009
        %5341 = vmatprep.subr.bf16.mxu0 %v4014
        %5342 = vmatpush1.bf16.msra.mxu0 %v4013
        %5343 = vmatprep.subr.bf16.mxu0 %v4018
        %5344 = vmatpush1.bf16.msra.mxu0 %v4017
        %5345 = vmatprep.subr.bf16.mxu0 %v4022
        %5346 = vmatpush1.bf16.msra.mxu0 %v4021
        %5347 = vmatprep.subr.bf16.mxu0 %v4026
        %5348 = vmatpush1.bf16.msra.mxu0 %v4025
        %5349 = vmatprep.mubr.bf16.mxu0 %v352
        %5350 = vmatmul.mubr.bf16.gmra.mrb[0].mxu0 %v351
        %v5351 = vpop.f32.mrb[0].mxu0
        %v5352 = vadd.f32 %v5311, %v5351
        %v5353 = vpop.f32.mrb[0].mxu0
        %v5354 = vadd.f32 %v5313, %v5353
        %v5355 = vpop.f32.mrb[0].mxu0
        %v5356 = vpop.f32.mrb[0].mxu0
        %5357 = vdwg.mxu0
        %5358 = vmatprep.subr.bf16.mxu0 %v4030
        %5359 = vmatpush1.bf16.msra.mxu0 %v4029
        %5360 = vmatprep.subr.bf16.mxu0 %v4034
        %5361 = vmatpush1.bf16.msra.mxu0 %v4033
        %5362 = vmatprep.subr.bf16.mxu0 %v4038
        %5363 = vmatpush1.bf16.msra.mxu0 %v4037
        %5364 = vmatprep.subr.bf16.mxu0 %v4042
        %5365 = vmatpush1.bf16.msra.mxu0 %v4041
        %5366 = vmatprep.subr.bf16.mxu0 %v4046
        %5367 = vmatpush1.bf16.msra.mxu0 %v4045
        %5368 = vmatprep.subr.bf16.mxu0 %v4050
        %5369 = vmatpush1.bf16.msra.mxu0 %v4049
        %5370 = vmatprep.subr.bf16.mxu0 %v4054
        %5371 = vmatpush1.bf16.msra.mxu0 %v4053
        %5372 = vmatprep.subr.bf16.mxu0 %v4058
        %5373 = vmatpush1.bf16.msra.mxu0 %v4057
        %5374 = vmatprep.subr.bf16.mxu0 %v4062
        %5375 = vmatpush1.bf16.msra.mxu0 %v4061
        %5376 = vmatprep.subr.bf16.mxu0 %v4066
        %5377 = vmatpush1.bf16.msra.mxu0 %v4065
        %5378 = vmatprep.subr.bf16.mxu0 %v4070
        %5379 = vmatpush1.bf16.msra.mxu0 %v4069
        %5380 = vmatprep.subr.bf16.mxu0 %v4074
        %5381 = vmatpush1.bf16.msra.mxu0 %v4073
        %5382 = vmatprep.subr.bf16.mxu0 %v4078
        %5383 = vmatpush1.bf16.msra.mxu0 %v4077
        %5384 = vmatprep.subr.bf16.mxu0 %v4082
        %5385 = vmatpush1.bf16.msra.mxu0 %v4081
        %5386 = vmatprep.subr.bf16.mxu0 %v4086
        %5387 = vmatpush1.bf16.msra.mxu0 %v4085
        %5388 = vmatprep.subr.bf16.mxu0 %v4090
        %5389 = vmatpush1.bf16.msra.mxu0 %v4089
        %5390 = vmatprep.mubr.bf16.mxu0 %v354
        %5391 = vmatmul.mubr.bf16.gmra.mrb[0].mxu0 %v353
        %v5392 = vpop.f32.mrb[0].mxu0
        %v5393 = vadd.f32 %v5352, %v5392
        %v5394 = vpop.f32.mrb[0].mxu0
        %v5395 = vadd.f32 %v5354, %v5394
        %v5396 = vpop.f32.mrb[0].mxu0
        %v5397 = vpop.f32.mrb[0].mxu0
        %5398 = vdwg.mxu0
        %5399 = vmatprep.subr.bf16.mxu0 %v4094
        %5400 = vmatpush1.bf16.msra.mxu0 %v4093
        %5401 = vmatprep.subr.bf16.mxu0 %v4098
        %5402 = vmatpush1.bf16.msra.mxu0 %v4097
        %5403 = vmatprep.subr.bf16.mxu0 %v4102
        %5404 = vmatpush1.bf16.msra.mxu0 %v4101
        %5405 = vmatprep.subr.bf16.mxu0 %v4106
        %5406 = vmatpush1.bf16.msra.mxu0 %v4105
        %5407 = vmatprep.subr.bf16.mxu0 %v4110
        %5408 = vmatpush1.bf16.msra.mxu0 %v4109
        %5409 = vmatprep.subr.bf16.mxu0 %v4114
        %5410 = vmatpush1.bf16.msra.mxu0 %v4113
        %5411 = vmatprep.subr.bf16.mxu0 %v4118
        %5412 = vmatpush1.bf16.msra.mxu0 %v4117
        %5413 = vmatprep.subr.bf16.mxu0 %v4122
        %5414 = vmatpush1.bf16.msra.mxu0 %v4121
        %5415 = vmatprep.subr.bf16.mxu0 %v4126
        %5416 = vmatpush1.bf16.msra.mxu0 %v4125
        %5417 = vmatprep.subr.bf16.mxu0 %v4130
        %5418 = vmatpush1.bf16.msra.mxu0 %v4129
        %5419 = vmatprep.subr.bf16.mxu0 %v4134
        %5420 = vmatpush1.bf16.msra.mxu0 %v4133
        %5421 = vmatprep.subr.bf16.mxu0 %v4138
        %5422 = vmatpush1.bf16.msra.mxu0 %v4137
        %5423 = vmatprep.subr.bf16.mxu0 %v4142
        %5424 = vmatpush1.bf16.msra.mxu0 %v4141
        %5425 = vmatprep.subr.bf16.mxu0 %v4146
        %5426 = vmatpush1.bf16.msra.mxu0 %v4145
        %5427 = vmatprep.subr.bf16.mxu0 %v4150
        %5428 = vmatpush1.bf16.msra.mxu0 %v4149
        %5429 = vmatprep.subr.bf16.mxu0 %v4154
        %5430 = vmatpush1.bf16.msra.mxu0 %v4153
        %5431 = vmatprep.mubr.bf16.mxu0 %v356
        %5432 = vmatmul.mubr.bf16.gmra.mrb[0].mxu0 %v355
        %v5433 = vpop.f32.mrb[0].mxu0
        %v5434 = vadd.f32 %v5393, %v5433
        %v5435 = vpop.f32.mrb[0].mxu0
        %v5436 = vadd.f32 %v5395, %v5435
        %v5437 = vpop.f32.mrb[0].mxu0
        %v5438 = vpop.f32.mrb[0].mxu0
        %5439 = vdwg.mxu0
        %5440 = vmatprep.subr.bf16.mxu0 %v4158
        %5441 = vmatpush1.bf16.msra.mxu0 %v4157
        %5442 = vmatprep.subr.bf16.mxu0 %v4162
        %5443 = vmatpush1.bf16.msra.mxu0 %v4161
        %5444 = vmatprep.subr.bf16.mxu0 %v4166
        %5445 = vmatpush1.bf16.msra.mxu0 %v4165
        %5446 = vmatprep.subr.bf16.mxu0 %v4170
        %5447 = vmatpush1.bf16.msra.mxu0 %v4169
        %5448 = vmatprep.subr.bf16.mxu0 %v4174
        %5449 = vmatpush1.bf16.msra.mxu0 %v4173
        %5450 = vmatprep.subr.bf16.mxu0 %v4178
        %5451 = vmatpush1.bf16.msra.mxu0 %v4177
        %5452 = vmatprep.subr.bf16.mxu0 %v4182
        %5453 = vmatpush1.bf16.msra.mxu0 %v4181
        %5454 = vmatprep.subr.bf16.mxu0 %v4186
        %5455 = vmatpush1.bf16.msra.mxu0 %v4185
        %5456 = vmatprep.subr.bf16.mxu0 %v4190
        %5457 = vmatpush1.bf16.msra.mxu0 %v4189
        %5458 = vmatprep.subr.bf16.mxu0 %v4194
        %5459 = vmatpush1.bf16.msra.mxu0 %v4193
        %5460 = vmatprep.subr.bf16.mxu0 %v4198
        %5461 = vmatpush1.bf16.msra.mxu0 %v4197
        %5462 = vmatprep.subr.bf16.mxu0 %v4202
        %5463 = vmatpush1.bf16.msra.mxu0 %v4201
        %5464 = vmatprep.subr.bf16.mxu0 %v4206
        %5465 = vmatpush1.bf16.msra.mxu0 %v4205
        %5466 = vmatprep.subr.bf16.mxu0 %v4210
        %5467 = vmatpush1.bf16.msra.mxu0 %v4209
        %5468 = vmatprep.subr.bf16.mxu0 %v4214
        %5469 = vmatpush1.bf16.msra.mxu0 %v4213
        %5470 = vmatprep.subr.bf16.mxu0 %v4218
        %5471 = vmatpush1.bf16.msra.mxu0 %v4217
        %5472 = vmatprep.mubr.bf16.mxu0 %v358
        %5473 = vmatmul.mubr.bf16.gmra.mrb[0].mxu0 %v357
        %v5474 = vpop.f32.mrb[0].mxu0
        %v5475 = vadd.f32 %v5434, %v5474
        %v5476 = vpop.f32.mrb[0].mxu0
        %v5477 = vadd.f32 %v5436, %v5476
        %v5478 = vpop.f32.mrb[0].mxu0
        %v5479 = vpop.f32.mrb[0].mxu0
        %5480 = vdwg.mxu0
        %5481 = vmatprep.subr.bf16.mxu0 %v3456
        %5482 = vmatpush1.bf16.msra.mxu0 %v3455
        %5483 = vmatprep.subr.bf16.mxu0 %v3460
        %5484 = vmatpush1.bf16.msra.mxu0 %v3459
        %5485 = vmatprep.subr.bf16.mxu0 %v3464
        %5486 = vmatpush1.bf16.msra.mxu0 %v3463
        %5487 = vmatprep.subr.bf16.mxu0 %v3468
        %5488 = vmatpush1.bf16.msra.mxu0 %v3467
        %5489 = vmatprep.subr.bf16.mxu0 %v3472
        %5490 = vmatpush1.bf16.msra.mxu0 %v3471
        %5491 = vmatprep.subr.bf16.mxu0 %v3476
        %5492 = vmatpush1.bf16.msra.mxu0 %v3475
        %5493 = vmatprep.subr.bf16.mxu0 %v3480
        %5494 = vmatpush1.bf16.msra.mxu0 %v3479
        %5495 = vmatprep.subr.bf16.mxu0 %v3484
        %5496 = vmatpush1.bf16.msra.mxu0 %v3483
        %5497 = vmatprep.subr.bf16.mxu0 %v3488
        %5498 = vmatpush1.bf16.msra.mxu0 %v3487
        %5499 = vmatprep.subr.bf16.mxu0 %v3492
        %5500 = vmatpush1.bf16.msra.mxu0 %v3491
        %5501 = vmatprep.subr.bf16.mxu0 %v3496
        %5502 = vmatpush1.bf16.msra.mxu0 %v3495
        %5503 = vmatprep.subr.bf16.mxu0 %v3500
        %5504 = vmatpush1.bf16.msra.mxu0 %v3499
        %5505 = vmatprep.subr.bf16.mxu0 %v3504
        %5506 = vmatpush1.bf16.msra.mxu0 %v3503
        %5507 = vmatprep.subr.bf16.mxu0 %v3508
        %5508 = vmatpush1.bf16.msra.mxu0 %v3507
        %5509 = vmatprep.subr.bf16.mxu0 %v3512
        %5510 = vmatpush1.bf16.msra.mxu0 %v3511
        %5511 = vmatprep.subr.bf16.mxu0 %v3516
        %5512 = vmatpush1.bf16.msra.mxu0 %v3515
        %5513 = vmatprep.mubr.bf16.mxu0 %v336
        %5514 = vmatmul.mubr.bf16.gmra.mrb[0].mxu0 %v335
        %v5515 = vpop.f32.mrb[0].mxu0
        %v5516 = vadd.f32 %v1140, %v5515
        %v5517 = vpop.f32.mrb[0].mxu0
        %v5518 = vadd.f32 %v1144, %v5517
        %v5519 = vpop.f32.mrb[0].mxu0
        %v5520 = vpop.f32.mrb[0].mxu0
        %5521 = vdwg.mxu0
        %5522 = vmatprep.subr.bf16.mxu0 %v3520
        %5523 = vmatpush1.bf16.msra.mxu0 %v3519
        %5524 = vmatprep.subr.bf16.mxu0 %v3524
        %5525 = vmatpush1.bf16.msra.mxu0 %v3523
        %5526 = vmatprep.subr.bf16.mxu0 %v3528
        %5527 = vmatpush1.bf16.msra.mxu0 %v3527
        %5528 = vmatprep.subr.bf16.mxu0 %v3532
        %5529 = vmatpush1.bf16.msra.mxu0 %v3531
        %5530 = vmatprep.subr.bf16.mxu0 %v3536
        %5531 = vmatpush1.bf16.msra.mxu0 %v3535
        %5532 = vmatprep.subr.bf16.mxu0 %v3540
        %5533 = vmatpush1.bf16.msra.mxu0 %v3539
        %5534 = vmatprep.subr.bf16.mxu0 %v3544
        %5535 = vmatpush1.bf16.msra.mxu0 %v3543
        %5536 = vmatprep.subr.bf16.mxu0 %v3548
        %5537 = vmatpush1.bf16.msra.mxu0 %v3547
        %5538 = vmatprep.subr.bf16.mxu0 %v3552
        %5539 = vmatpush1.bf16.msra.mxu0 %v3551
        %5540 = vmatprep.subr.bf16.mxu0 %v3556
        %5541 = vmatpush1.bf16.msra.mxu0 %v3555
        %5542 = vmatprep.subr.bf16.mxu0 %v3560
        %5543 = vmatpush1.bf16.msra.mxu0 %v3559
        %5544 = vmatprep.subr.bf16.mxu0 %v3564
        %5545 = vmatpush1.bf16.msra.mxu0 %v3563
        %5546 = vmatprep.subr.bf16.mxu0 %v3568
        %5547 = vmatpush1.bf16.msra.mxu0 %v3567
        %5548 = vmatprep.subr.bf16.mxu0 %v3572
        %5549 = vmatpush1.bf16.msra.mxu0 %v3571
        %5550 = vmatprep.subr.bf16.mxu0 %v3576
        %5551 = vmatpush1.bf16.msra.mxu0 %v3575
        %5552 = vmatprep.subr.bf16.mxu0 %v3580
        %5553 = vmatpush1.bf16.msra.mxu0 %v3579
        %5554 = vmatprep.mubr.bf16.mxu0 %v338
        %5555 = vmatmul.mubr.bf16.gmra.mrb[0].mxu0 %v337
        %v5556 = vpop.f32.mrb[0].mxu0
        %v5557 = vadd.f32 %v5516, %v5556
        %v5558 = vpop.f32.mrb[0].mxu0
        %v5559 = vadd.f32 %v5518, %v5558
        %v5560 = vpop.f32.mrb[0].mxu0
        %v5561 = vpop.f32.mrb[0].mxu0
        %5562 = vdwg.mxu0
        %5563 = vmatprep.subr.bf16.mxu0 %v3584
        %5564 = vmatpush1.bf16.msra.mxu0 %v3583
        %5565 = vmatprep.subr.bf16.mxu0 %v3588
        %5566 = vmatpush1.bf16.msra.mxu0 %v3587
        %5567 = vmatprep.subr.bf16.mxu0 %v3592
        %5568 = vmatpush1.bf16.msra.mxu0 %v3591
        %5569 = vmatprep.subr.bf16.mxu0 %v3596
        %5570 = vmatpush1.bf16.msra.mxu0 %v3595
        %5571 = vmatprep.subr.bf16.mxu0 %v3600
        %5572 = vmatpush1.bf16.msra.mxu0 %v3599
        %5573 = vmatprep.subr.bf16.mxu0 %v3604
        %5574 = vmatpush1.bf16.msra.mxu0 %v3603
        %5575 = vmatprep.subr.bf16.mxu0 %v3608
        %5576 = vmatpush1.bf16.msra.mxu0 %v3607
        %5577 = vmatprep.subr.bf16.mxu0 %v3612
        %5578 = vmatpush1.bf16.msra.mxu0 %v3611
        %5579 = vmatprep.subr.bf16.mxu0 %v3616
        %5580 = vmatpush1.bf16.msra.mxu0 %v3615
        %5581 = vmatprep.subr.bf16.mxu0 %v3620
        %5582 = vmatpush1.bf16.msra.mxu0 %v3619
        %5583 = vmatprep.subr.bf16.mxu0 %v3624
        %5584 = vmatpush1.bf16.msra.mxu0 %v3623
        %5585 = vmatprep.subr.bf16.mxu0 %v3628
        %5586 = vmatpush1.bf16.msra.mxu0 %v3627
        %5587 = vmatprep.subr.bf16.mxu0 %v3632
        %5588 = vmatpush1.bf16.msra.mxu0 %v3631
        %5589 = vmatprep.subr.bf16.mxu0 %v3636
        %5590 = vmatpush1.bf16.msra.mxu0 %v3635
        %5591 = vmatprep.subr.bf16.mxu0 %v3640
        %5592 = vmatpush1.bf16.msra.mxu0 %v3639
        %5593 = vmatprep.subr.bf16.mxu0 %v3644
        %5594 = vmatpush1.bf16.msra.mxu0 %v3643
        %5595 = vmatprep.mubr.bf16.mxu0 %v340
        %5596 = vmatmul.mubr.bf16.gmra.mrb[0].mxu0 %v339
        %v5597 = vpop.f32.mrb[0].mxu0
        %v5598 = vadd.f32 %v5557, %v5597
        %v5599 = vpop.f32.mrb[0].mxu0
        %v5600 = vadd.f32 %v5559, %v5599
        %v5601 = vpop.f32.mrb[0].mxu0
        %v5602 = vpop.f32.mrb[0].mxu0
        %5603 = vdwg.mxu0
        %5604 = vmatprep.subr.bf16.mxu0 %v3648
        %5605 = vmatpush1.bf16.msra.mxu0 %v3647
        %5606 = vmatprep.subr.bf16.mxu0 %v3652
        %5607 = vmatpush1.bf16.msra.mxu0 %v3651
        %5608 = vmatprep.subr.bf16.mxu0 %v3656
        %5609 = vmatpush1.bf16.msra.mxu0 %v3655
        %5610 = vmatprep.subr.bf16.mxu0 %v3660
        %5611 = vmatpush1.bf16.msra.mxu0 %v3659
        %5612 = vmatprep.subr.bf16.mxu0 %v3664
        %5613 = vmatpush1.bf16.msra.mxu0 %v3663
        %5614 = vmatprep.subr.bf16.mxu0 %v3668
        %5615 = vmatpush1.bf16.msra.mxu0 %v3667
        %5616 = vmatprep.subr.bf16.mxu0 %v3672
        %5617 = vmatpush1.bf16.msra.mxu0 %v3671
        %5618 = vmatprep.subr.bf16.mxu0 %v3676
        %5619 = vmatpush1.bf16.msra.mxu0 %v3675
        %5620 = vmatprep.subr.bf16.mxu0 %v3680
        %5621 = vmatpush1.bf16.msra.mxu0 %v3679
        %5622 = vmatprep.subr.bf16.mxu0 %v3684
        %5623 = vmatpush1.bf16.msra.mxu0 %v3683
        %5624 = vmatprep.subr.bf16.mxu0 %v3688
        %5625 = vmatpush1.bf16.msra.mxu0 %v3687
        %5626 = vmatprep.subr.bf16.mxu0 %v3692
        %5627 = vmatpush1.bf16.msra.mxu0 %v3691
        %5628 = vmatprep.subr.bf16.mxu0 %v3696
        %5629 = vmatpush1.bf16.msra.mxu0 %v3695
        %5630 = vmatprep.subr.bf16.mxu0 %v3700
        %5631 = vmatpush1.bf16.msra.mxu0 %v3699
        %5632 = vmatprep.subr.bf16.mxu0 %v3704
        %5633 = vmatpush1.bf16.msra.mxu0 %v3703
        %5634 = vmatprep.subr.bf16.mxu0 %v3708
        %5635 = vmatpush1.bf16.msra.mxu0 %v3707
        %5636 = vmatprep.mubr.bf16.mxu0 %v342
        %5637 = vmatmul.mubr.bf16.gmra.mrb[0].mxu0 %v341
        %v5638 = vpop.f32.mrb[0].mxu0
        %v5639 = vadd.f32 %v5598, %v5638
        %v5640 = vpop.f32.mrb[0].mxu0
        %v5641 = vadd.f32 %v5600, %v5640
        %v5642 = vpop.f32.mrb[0].mxu0
        %v5643 = vpop.f32.mrb[0].mxu0
        %5644 = vdwg.mxu0
        %5645 = vmatprep.subr.bf16.mxu0 %v3712
        %5646 = vmatpush1.bf16.msra.mxu0 %v3711
        %5647 = vmatprep.subr.bf16.mxu0 %v3716
        %5648 = vmatpush1.bf16.msra.mxu0 %v3715
        %5649 = vmatprep.subr.bf16.mxu0 %v3720
        %5650 = vmatpush1.bf16.msra.mxu0 %v3719
        %5651 = vmatprep.subr.bf16.mxu0 %v3724
        %5652 = vmatpush1.bf16.msra.mxu0 %v3723
        %5653 = vmatprep.subr.bf16.mxu0 %v3728
        %5654 = vmatpush1.bf16.msra.mxu0 %v3727
        %5655 = vmatprep.subr.bf16.mxu0 %v3732
        %5656 = vmatpush1.bf16.msra.mxu0 %v3731
        %5657 = vmatprep.subr.bf16.mxu0 %v3736
        %5658 = vmatpush1.bf16.msra.mxu0 %v3735
        %5659 = vmatprep.subr.bf16.mxu0 %v3740
        %5660 = vmatpush1.bf16.msra.mxu0 %v3739
        %5661 = vmatprep.subr.bf16.mxu0 %v3744
        %5662 = vmatpush1.bf16.msra.mxu0 %v3743
        %5663 = vmatprep.subr.bf16.mxu0 %v3748
        %5664 = vmatpush1.bf16.msra.mxu0 %v3747
        %5665 = vmatprep.subr.bf16.mxu0 %v3752
        %5666 = vmatpush1.bf16.msra.mxu0 %v3751
        %5667 = vmatprep.subr.bf16.mxu0 %v3756
        %5668 = vmatpush1.bf16.msra.mxu0 %v3755
        %5669 = vmatprep.subr.bf16.mxu0 %v3760
        %5670 = vmatpush1.bf16.msra.mxu0 %v3759
        %5671 = vmatprep.subr.bf16.mxu0 %v3764
        %5672 = vmatpush1.bf16.msra.mxu0 %v3763
        %5673 = vmatprep.subr.bf16.mxu0 %v3768
        %5674 = vmatpush1.bf16.msra.mxu0 %v3767
        %5675 = vmatprep.subr.bf16.mxu0 %v3772
        %5676 = vmatpush1.bf16.msra.mxu0 %v3771
        %5677 = vmatprep.mubr.bf16.mxu0 %v344
        %5678 = vmatmul.mubr.bf16.gmra.mrb[0].mxu0 %v343
        %v5679 = vpop.f32.mrb[0].mxu0
        %v5680 = vadd.f32 %v5639, %v5679
        %v5681 = vpop.f32.mrb[0].mxu0
        %v5682 = vadd.f32 %v5641, %v5681
        %v5683 = vpop.f32.mrb[0].mxu0
        %v5684 = vpop.f32.mrb[0].mxu0
        %5685 = vdwg.mxu0
        %5686 = vmatprep.subr.bf16.mxu0 %v3776
        %5687 = vmatpush1.bf16.msra.mxu0 %v3775
        %5688 = vmatprep.subr.bf16.mxu0 %v3780
        %5689 = vmatpush1.bf16.msra.mxu0 %v3779
        %5690 = vmatprep.subr.bf16.mxu0 %v3784
        %5691 = vmatpush1.bf16.msra.mxu0 %v3783
        %5692 = vmatprep.subr.bf16.mxu0 %v3788
        %5693 = vmatpush1.bf16.msra.mxu0 %v3787
        %5694 = vmatprep.subr.bf16.mxu0 %v3792
        %5695 = vmatpush1.bf16.msra.mxu0 %v3791
        %5696 = vmatprep.subr.bf16.mxu0 %v3796
        %5697 = vmatpush1.bf16.msra.mxu0 %v3795
        %5698 = vmatprep.subr.bf16.mxu0 %v3800
        %5699 = vmatpush1.bf16.msra.mxu0 %v3799
        %5700 = vmatprep.subr.bf16.mxu0 %v3804
        %5701 = vmatpush1.bf16.msra.mxu0 %v3803
        %5702 = vmatprep.subr.bf16.mxu0 %v3808
        %5703 = vmatpush1.bf16.msra.mxu0 %v3807
        %5704 = vmatprep.subr.bf16.mxu0 %v3812
        %5705 = vmatpush1.bf16.msra.mxu0 %v3811
        %5706 = vmatprep.subr.bf16.mxu0 %v3816
        %5707 = vmatpush1.bf16.msra.mxu0 %v3815
        %5708 = vmatprep.subr.bf16.mxu0 %v3820
        %5709 = vmatpush1.bf16.msra.mxu0 %v3819
        %5710 = vmatprep.subr.bf16.mxu0 %v3824
        %5711 = vmatpush1.bf16.msra.mxu0 %v3823
        %5712 = vmatprep.subr.bf16.mxu0 %v3828
        %5713 = vmatpush1.bf16.msra.mxu0 %v3827
        %5714 = vmatprep.subr.bf16.mxu0 %v3832
        %5715 = vmatpush1.bf16.msra.mxu0 %v3831
        %5716 = vmatprep.subr.bf16.mxu0 %v3836
        %5717 = vmatpush1.bf16.msra.mxu0 %v3835
        %5718 = vmatprep.mubr.bf16.mxu0 %v346
        %5719 = vmatmul.mubr.bf16.gmra.mrb[0].mxu0 %v345
        %v5720 = vpop.f32.mrb[0].mxu0
        %v5721 = vadd.f32 %v5680, %v5720
        %v5722 = vpop.f32.mrb[0].mxu0
        %v5723 = vadd.f32 %v5682, %v5722
        %v5724 = vpop.f32.mrb[0].mxu0
        %v5725 = vpop.f32.mrb[0].mxu0
        %5726 = vdwg.mxu0
        %5727 = vmatprep.subr.bf16.mxu0 %v3840
        %5728 = vmatpush1.bf16.msra.mxu0 %v3839
        %5729 = vmatprep.subr.bf16.mxu0 %v3844
        %5730 = vmatpush1.bf16.msra.mxu0 %v3843
        %5731 = vmatprep.subr.bf16.mxu0 %v3848
        %5732 = vmatpush1.bf16.msra.mxu0 %v3847
        %5733 = vmatprep.subr.bf16.mxu0 %v3852
        %5734 = vmatpush1.bf16.msra.mxu0 %v3851
        %5735 = vmatprep.subr.bf16.mxu0 %v3856
        %5736 = vmatpush1.bf16.msra.mxu0 %v3855
        %5737 = vmatprep.subr.bf16.mxu0 %v3860
        %5738 = vmatpush1.bf16.msra.mxu0 %v3859
        %5739 = vmatprep.subr.bf16.mxu0 %v3864
        %5740 = vmatpush1.bf16.msra.mxu0 %v3863
        %5741 = vmatprep.subr.bf16.mxu0 %v3868
        %5742 = vmatpush1.bf16.msra.mxu0 %v3867
        %5743 = vmatprep.subr.bf16.mxu0 %v3872
        %5744 = vmatpush1.bf16.msra.mxu0 %v3871
        %5745 = vmatprep.subr.bf16.mxu0 %v3876
        %5746 = vmatpush1.bf16.msra.mxu0 %v3875
        %5747 = vmatprep.subr.bf16.mxu0 %v3880
        %5748 = vmatpush1.bf16.msra.mxu0 %v3879
        %5749 = vmatprep.subr.bf16.mxu0 %v3884
        %5750 = vmatpush1.bf16.msra.mxu0 %v3883
        %5751 = vmatprep.subr.bf16.mxu0 %v3888
        %5752 = vmatpush1.bf16.msra.mxu0 %v3887
        %5753 = vmatprep.subr.bf16.mxu0 %v3892
        %5754 = vmatpush1.bf16.msra.mxu0 %v3891
        %5755 = vmatprep.subr.bf16.mxu0 %v3896
        %5756 = vmatpush1.bf16.msra.mxu0 %v3895
        %5757 = vmatprep.subr.bf16.mxu0 %v3900
        %5758 = vmatpush1.bf16.msra.mxu0 %v3899
        %5759 = vmatprep.mubr.bf16.mxu0 %v348
        %5760 = vmatmul.mubr.bf16.gmra.mrb[0].mxu0 %v347
        %v5761 = vpop.f32.mrb[0].mxu0
        %v5762 = vadd.f32 %v5721, %v5761
        %v5763 = vpop.f32.mrb[0].mxu0
        %v5764 = vadd.f32 %v5723, %v5763
        %v5765 = vpop.f32.mrb[0].mxu0
        %v5766 = vpop.f32.mrb[0].mxu0
        %5767 = vdwg.mxu0
        %5768 = vmatprep.subr.bf16.mxu0 %v3904
        %5769 = vmatpush1.bf16.msra.mxu0 %v3903
        %5770 = vmatprep.subr.bf16.mxu0 %v3908
        %5771 = vmatpush1.bf16.msra.mxu0 %v3907
        %5772 = vmatprep.subr.bf16.mxu0 %v3912
        %5773 = vmatpush1.bf16.msra.mxu0 %v3911
        %5774 = vmatprep.subr.bf16.mxu0 %v3916
        %5775 = vmatpush1.bf16.msra.mxu0 %v3915
        %5776 = vmatprep.subr.bf16.mxu0 %v3920
        %5777 = vmatpush1.bf16.msra.mxu0 %v3919
        %5778 = vmatprep.subr.bf16.mxu0 %v3924
        %5779 = vmatpush1.bf16.msra.mxu0 %v3923
        %5780 = vmatprep.subr.bf16.mxu0 %v3928
        %5781 = vmatpush1.bf16.msra.mxu0 %v3927
        %5782 = vmatprep.subr.bf16.mxu0 %v3932
        %5783 = vmatpush1.bf16.msra.mxu0 %v3931
        %5784 = vmatprep.subr.bf16.mxu0 %v3936
        %5785 = vmatpush1.bf16.msra.mxu0 %v3935
        %5786 = vmatprep.subr.bf16.mxu0 %v3940
        %5787 = vmatpush1.bf16.msra.mxu0 %v3939
        %5788 = vmatprep.subr.bf16.mxu0 %v3944
        %5789 = vmatpush1.bf16.msra.mxu0 %v3943
        %5790 = vmatprep.subr.bf16.mxu0 %v3948
        %5791 = vmatpush1.bf16.msra.mxu0 %v3947
        %5792 = vmatprep.subr.bf16.mxu0 %v3952
        %5793 = vmatpush1.bf16.msra.mxu0 %v3951
        %5794 = vmatprep.subr.bf16.mxu0 %v3956
        %5795 = vmatpush1.bf16.msra.mxu0 %v3955
        %5796 = vmatprep.subr.bf16.mxu0 %v3960
        %5797 = vmatpush1.bf16.msra.mxu0 %v3959
        %5798 = vmatprep.subr.bf16.mxu0 %v3964
        %5799 = vmatpush1.bf16.msra.mxu0 %v3963
        %5800 = vmatprep.mubr.bf16.mxu0 %v350
        %5801 = vmatmul.mubr.bf16.gmra.mrb[0].mxu0 %v349
        %v5802 = vpop.f32.mrb[0].mxu0
        %v5803 = vadd.f32 %v5762, %v5802
        %v5804 = vpop.f32.mrb[0].mxu0
        %v5805 = vadd.f32 %v5764, %v5804
        %v5806 = vpop.f32.mrb[0].mxu0
        %v5807 = vpop.f32.mrb[0].mxu0
        %5808 = vdwg.mxu0
        %5809 = vmatprep.subr.bf16.mxu0 %v3968
        %5810 = vmatpush1.bf16.msra.mxu0 %v3967
        %5811 = vmatprep.subr.bf16.mxu0 %v3972
        %5812 = vmatpush1.bf16.msra.mxu0 %v3971
        %5813 = vmatprep.subr.bf16.mxu0 %v3976
        %5814 = vmatpush1.bf16.msra.mxu0 %v3975
        %5815 = vmatprep.subr.bf16.mxu0 %v3980
        %5816 = vmatpush1.bf16.msra.mxu0 %v3979
        %5817 = vmatprep.subr.bf16.mxu0 %v3984
        %5818 = vmatpush1.bf16.msra.mxu0 %v3983
        %5819 = vmatprep.subr.bf16.mxu0 %v3988
        %5820 = vmatpush1.bf16.msra.mxu0 %v3987
        %5821 = vmatprep.subr.bf16.mxu0 %v3992
        %5822 = vmatpush1.bf16.msra.mxu0 %v3991
        %5823 = vmatprep.subr.bf16.mxu0 %v3996
        %5824 = vmatpush1.bf16.msra.mxu0 %v3995
        %5825 = vmatprep.subr.bf16.mxu0 %v4000
        %5826 = vmatpush1.bf16.msra.mxu0 %v3999
        %5827 = vmatprep.subr.bf16.mxu0 %v4004
        %5828 = vmatpush1.bf16.msra.mxu0 %v4003
        %5829 = vmatprep.subr.bf16.mxu0 %v4008
        %5830 = vmatpush1.bf16.msra.mxu0 %v4007
        %5831 = vmatprep.subr.bf16.mxu0 %v4012
        %5832 = vmatpush1.bf16.msra.mxu0 %v4011
        %5833 = vmatprep.subr.bf16.mxu0 %v4016
        %5834 = vmatpush1.bf16.msra.mxu0 %v4015
        %5835 = vmatprep.subr.bf16.mxu0 %v4020
        %5836 = vmatpush1.bf16.msra.mxu0 %v4019
        %5837 = vmatprep.subr.bf16.mxu0 %v4024
        %5838 = vmatpush1.bf16.msra.mxu0 %v4023
        %5839 = vmatprep.subr.bf16.mxu0 %v4028
        %5840 = vmatpush1.bf16.msra.mxu0 %v4027
        %5841 = vmatprep.mubr.bf16.mxu0 %v352
        %5842 = vmatmul.mubr.bf16.gmra.mrb[0].mxu0 %v351
        %v5843 = vpop.f32.mrb[0].mxu0
        %v5844 = vadd.f32 %v5803, %v5843
        %v5845 = vpop.f32.mrb[0].mxu0
        %v5846 = vadd.f32 %v5805, %v5845
        %v5847 = vpop.f32.mrb[0].mxu0
        %v5848 = vpop.f32.mrb[0].mxu0
        %5849 = vdwg.mxu0
        %5850 = vmatprep.subr.bf16.mxu0 %v4032
        %5851 = vmatpush1.bf16.msra.mxu0 %v4031
        %5852 = vmatprep.subr.bf16.mxu0 %v4036
        %5853 = vmatpush1.bf16.msra.mxu0 %v4035
        %5854 = vmatprep.subr.bf16.mxu0 %v4040
        %5855 = vmatpush1.bf16.msra.mxu0 %v4039
        %5856 = vmatprep.subr.bf16.mxu0 %v4044
        %5857 = vmatpush1.bf16.msra.mxu0 %v4043
        %5858 = vmatprep.subr.bf16.mxu0 %v4048
        %5859 = vmatpush1.bf16.msra.mxu0 %v4047
        %5860 = vmatprep.subr.bf16.mxu0 %v4052
        %5861 = vmatpush1.bf16.msra.mxu0 %v4051
        %5862 = vmatprep.subr.bf16.mxu0 %v4056
        %5863 = vmatpush1.bf16.msra.mxu0 %v4055
        %5864 = vmatprep.subr.bf16.mxu0 %v4060
        %5865 = vmatpush1.bf16.msra.mxu0 %v4059
        %5866 = vmatprep.subr.bf16.mxu0 %v4064
        %5867 = vmatpush1.bf16.msra.mxu0 %v4063
        %5868 = vmatprep.subr.bf16.mxu0 %v4068
        %5869 = vmatpush1.bf16.msra.mxu0 %v4067
        %5870 = vmatprep.subr.bf16.mxu0 %v4072
        %5871 = vmatpush1.bf16.msra.mxu0 %v4071
        %5872 = vmatprep.subr.bf16.mxu0 %v4076
        %5873 = vmatpush1.bf16.msra.mxu0 %v4075
        %5874 = vmatprep.subr.bf16.mxu0 %v4080
        %5875 = vmatpush1.bf16.msra.mxu0 %v4079
        %5876 = vmatprep.subr.bf16.mxu0 %v4084
        %5877 = vmatpush1.bf16.msra.mxu0 %v4083
        %5878 = vmatprep.subr.bf16.mxu0 %v4088
        %5879 = vmatpush1.bf16.msra.mxu0 %v4087
        %5880 = vmatprep.subr.bf16.mxu0 %v4092
        %5881 = vmatpush1.bf16.msra.mxu0 %v4091
        %5882 = vmatprep.mubr.bf16.mxu0 %v354
        %5883 = vmatmul.mubr.bf16.gmra.mrb[0].mxu0 %v353
        %v5884 = vpop.f32.mrb[0].mxu0
        %v5885 = vadd.f32 %v5844, %v5884
        %v5886 = vpop.f32.mrb[0].mxu0
        %v5887 = vadd.f32 %v5846, %v5886
        %v5888 = vpop.f32.mrb[0].mxu0
        %v5889 = vpop.f32.mrb[0].mxu0
        %5890 = vdwg.mxu0
        %5891 = vmatprep.subr.bf16.mxu0 %v4096
        %5892 = vmatpush1.bf16.msra.mxu0 %v4095
        %5893 = vmatprep.subr.bf16.mxu0 %v4100
        %5894 = vmatpush1.bf16.msra.mxu0 %v4099
        %5895 = vmatprep.subr.bf16.mxu0 %v4104
        %5896 = vmatpush1.bf16.msra.mxu0 %v4103
        %5897 = vmatprep.subr.bf16.mxu0 %v4108
        %5898 = vmatpush1.bf16.msra.mxu0 %v4107
        %5899 = vmatprep.subr.bf16.mxu0 %v4112
        %5900 = vmatpush1.bf16.msra.mxu0 %v4111
        %5901 = vmatprep.subr.bf16.mxu0 %v4116
        %5902 = vmatpush1.bf16.msra.mxu0 %v4115
        %5903 = vmatprep.subr.bf16.mxu0 %v4120
        %5904 = vmatpush1.bf16.msra.mxu0 %v4119
        %5905 = vmatprep.subr.bf16.mxu0 %v4124
        %5906 = vmatpush1.bf16.msra.mxu0 %v4123
        %5907 = vmatprep.subr.bf16.mxu0 %v4128
        %5908 = vmatpush1.bf16.msra.mxu0 %v4127
        %5909 = vmatprep.subr.bf16.mxu0 %v4132
        %5910 = vmatpush1.bf16.msra.mxu0 %v4131
        %5911 = vmatprep.subr.bf16.mxu0 %v4136
        %5912 = vmatpush1.bf16.msra.mxu0 %v4135
        %5913 = vmatprep.subr.bf16.mxu0 %v4140
        %5914 = vmatpush1.bf16.msra.mxu0 %v4139
        %5915 = vmatprep.subr.bf16.mxu0 %v4144
        %5916 = vmatpush1.bf16.msra.mxu0 %v4143
        %5917 = vmatprep.subr.bf16.mxu0 %v4148
        %5918 = vmatpush1.bf16.msra.mxu0 %v4147
        %5919 = vmatprep.subr.bf16.mxu0 %v4152
        %5920 = vmatpush1.bf16.msra.mxu0 %v4151
        %5921 = vmatprep.subr.bf16.mxu0 %v4156
        %5922 = vmatpush1.bf16.msra.mxu0 %v4155
        %5923 = vmatprep.mubr.bf16.mxu0 %v356
        %5924 = vmatmul.mubr.bf16.gmra.mrb[0].mxu0 %v355
        %v5925 = vpop.f32.mrb[0].mxu0
        %v5926 = vadd.f32 %v5885, %v5925
        %v5927 = vpop.f32.mrb[0].mxu0
        %v5928 = vadd.f32 %v5887, %v5927
        %v5929 = vpop.f32.mrb[0].mxu0
        %v5930 = vpop.f32.mrb[0].mxu0
        %5931 = vdwg.mxu0
        %5932 = vmatprep.subr.bf16.mxu0 %v4160
        %5933 = vmatpush1.bf16.msra.mxu0 %v4159
        %5934 = vmatprep.subr.bf16.mxu0 %v4164
        %5935 = vmatpush1.bf16.msra.mxu0 %v4163
        %5936 = vmatprep.subr.bf16.mxu0 %v4168
        %5937 = vmatpush1.bf16.msra.mxu0 %v4167
        %5938 = vmatprep.subr.bf16.mxu0 %v4172
        %5939 = vmatpush1.bf16.msra.mxu0 %v4171
        %5940 = vmatprep.subr.bf16.mxu0 %v4176
        %5941 = vmatpush1.bf16.msra.mxu0 %v4175
        %5942 = vmatprep.subr.bf16.mxu0 %v4180
        %5943 = vmatpush1.bf16.msra.mxu0 %v4179
        %5944 = vmatprep.subr.bf16.mxu0 %v4184
        %5945 = vmatpush1.bf16.msra.mxu0 %v4183
        %5946 = vmatprep.subr.bf16.mxu0 %v4188
        %5947 = vmatpush1.bf16.msra.mxu0 %v4187
        %5948 = vmatprep.subr.bf16.mxu0 %v4192
        %5949 = vmatpush1.bf16.msra.mxu0 %v4191
        %5950 = vmatprep.subr.bf16.mxu0 %v4196
        %5951 = vmatpush1.bf16.msra.mxu0 %v4195
        %5952 = vmatprep.subr.bf16.mxu0 %v4200
        %5953 = vmatpush1.bf16.msra.mxu0 %v4199
        %5954 = vmatprep.subr.bf16.mxu0 %v4204
        %5955 = vmatpush1.bf16.msra.mxu0 %v4203
        %5956 = vmatprep.subr.bf16.mxu0 %v4208
        %5957 = vmatpush1.bf16.msra.mxu0 %v4207
        %5958 = vmatprep.subr.bf16.mxu0 %v4212
        %5959 = vmatpush1.bf16.msra.mxu0 %v4211
        %5960 = vmatprep.subr.bf16.mxu0 %v4216
        %5961 = vmatpush1.bf16.msra.mxu0 %v4215
        %5962 = vmatprep.subr.bf16.mxu0 %v4220
        %5963 = vmatpush1.bf16.msra.mxu0 %v4219
        %5964 = vmatprep.mubr.bf16.mxu0 %v358
        %5965 = vmatmul.mubr.bf16.gmra.mrb[0].mxu0 %v357
        %v5966 = vpop.f32.mrb[0].mxu0
        %v5967 = vadd.f32 %v5926, %v5966
        %v5968 = vpop.f32.mrb[0].mxu0
        %v5969 = vadd.f32 %v5928, %v5968
        %v5970 = vpop.f32.mrb[0].mxu0
        %v5971 = vpop.f32.mrb[0].mxu0
        %5972 = vdwg.mxu0
        %v5973 = vpack.c.bf16 %v5475, %v5475
        %v5974 = vpack.c.bf16 %v5477, %v5477
        %v5975 = vpack.c.bf16 %v5967, %v5967
        %v5976 = vpack.c.bf16 %v5969, %v5969
        %v5977 = vld [vmem:[%s267] sm:$0xff]
        %v5978 = vld [vmem:[%s267 + $0x8] sm:$0xff]
        %v5979 = vld [vmem:[%s267 + $0x10] sm:$0xf]
        %v5980 = vld [vmem:[%s267 + $0x14] sm:$0xff]
        %v5981 = vld [vmem:[%s267 + $0x1c] sm:$0xff]
        %v5982 = vld [vmem:[%s267 + $0x24] sm:$0xf]
        %v5983 = vld [vmem:[%s267 + $0x28] sm:$0xff]
        %v5984 = vld [vmem:[%s267 + $0x30] sm:$0xff]
        %v5985 = vld [vmem:[%s267 + $0x38] sm:$0xf]
        %v5986 = vld [vmem:[%s267 + $0x3c] sm:$0xff]
        %v5987 = vld [vmem:[%s267 + $0x44] sm:$0xff]
        %v5988 = vld [vmem:[%s267 + $0x4c] sm:$0xf]
        %v5989 = vld [vmem:[%s267 + $0x50] sm:$0xff]
        %v5990 = vld [vmem:[%s267 + $0x58] sm:$0xff]
        %v5991 = vld [vmem:[%s267 + $0x60] sm:$0xf]
        %v5992 = vld [vmem:[%s267 + $0x64] sm:$0xff]
        %v5993 = vld [vmem:[%s267 + $0x6c] sm:$0xff]
        %v5994 = vld [vmem:[%s267 + $0x74] sm:$0xf]
        %v5995 = vld [vmem:[%s267 + $0x78] sm:$0xff]
        %v5996 = vld [vmem:[%s267 + $0x80] sm:$0xff]
        %v5997 = vld [vmem:[%s267 + $0x88] sm:$0xf]
        %v5998 = vld [vmem:[%s267 + $0x8c] sm:$0xff]
        %v5999 = vld [vmem:[%s267 + $0x94] sm:$0xff]
        %v6000 = vld [vmem:[%s267 + $0x9c] sm:$0xf]
        %v6001 = vld [vmem:[%s267 + $0xa0] sm:$0xff]
        %v6002 = vld [vmem:[%s267 + $0xa8] sm:$0xff]
        %v6003 = vld [vmem:[%s267 + $0xb0] sm:$0xf]
        %v6004 = vld [vmem:[%s267 + $0xb4] sm:$0xff]
        %v6005 = vld [vmem:[%s267 + $0xbc] sm:$0xff]
        %v6006 = vld [vmem:[%s267 + $0xc4] sm:$0xf]
        %v6007 = vld [vmem:[%s267 + $0xc8] sm:$0xff]
        %v6008 = vld [vmem:[%s267 + $0xd0] sm:$0xff]
        %v6009 = vld [vmem:[%s267 + $0xd8] sm:$0xf]
        %v6010 = vld [vmem:[%s267 + $0xdc] sm:$0xff]
        %v6011 = vld [vmem:[%s267 + $0xe4] sm:$0xff]
        %v6012 = vld [vmem:[%s267 + $0xec] sm:$0xf]
        %v6013 = vld [vmem:[%s267 + $0xf0] sm:$0xff]
        %v6014 = vld [vmem:[%s267 + $0xf8] sm:$0xff]
        %v6015 = vld [vmem:[%s267 + $0x100] sm:$0xf]
        %v6016 = vld [vmem:[%s267 + $0x104] sm:$0xff]
        %v6017 = vld [vmem:[%s267 + $0x10c] sm:$0xff]
        %v6018 = vld [vmem:[%s267 + $0x114] sm:$0xf]
        %v6019 = vld [vmem:[%s267 + $0x118] sm:$0xff]
        %v6020 = vld [vmem:[%s267 + $0x120] sm:$0xff]
        %v6021 = vld [vmem:[%s267 + $0x128] sm:$0xf]
        %v6022 = vld [vmem:[%s267 + $0x12c] sm:$0xff]
        %v6023 = vld [vmem:[%s267 + $0x134] sm:$0xff]
        %v6024 = vld [vmem:[%s267 + $0x13c] sm:$0xf]
        %v6025 = vld [vmem:[%s267 + $0x140] sm:$0xff]
        %v6026 = vld [vmem:[%s267 + $0x148] sm:$0xff]
        %v6027 = vld [vmem:[%s267 + $0x150] sm:$0xf]
        %v6028 = vld [vmem:[%s267 + $0x154] sm:$0xff]
        %v6029 = vld [vmem:[%s267 + $0x15c] sm:$0xff]
        %v6030 = vld [vmem:[%s267 + $0x164] sm:$0xf]
        %v6031 = vld [vmem:[%s267 + $0x168] sm:$0xff]
        %v6032 = vld [vmem:[%s267 + $0x170] sm:$0xff]
        %v6033 = vld [vmem:[%s267 + $0x178] sm:$0xf]
        %v6034 = vld [vmem:[%s267 + $0x17c] sm:$0xff]
        %v6035 = vld [vmem:[%s267 + $0x184] sm:$0xff]
        %v6036 = vld [vmem:[%s267 + $0x18c] sm:$0xf]
        %v6037 = vld [vmem:[%s267 + $0x190] sm:$0xff]
        %v6038 = vld [vmem:[%s267 + $0x198] sm:$0xff]
        %v6039 = vld [vmem:[%s267 + $0x1a0] sm:$0xf]
        %v6040 = vld [vmem:[%s267 + $0x1a4] sm:$0xff]
        %v6041 = vld [vmem:[%s267 + $0x1ac] sm:$0xff]
        %v6042 = vld [vmem:[%s267 + $0x1b4] sm:$0xf]
        %v6043 = vld [vmem:[%s267 + $0x1b8] sm:$0xff]
        %v6044 = vld [vmem:[%s267 + $0x1c0] sm:$0xff]
        %v6045 = vld [vmem:[%s267 + $0x1c8] sm:$0xf]
        %v6046 = vld [vmem:[%s267 + $0x1cc] sm:$0xff]
        %v6047 = vld [vmem:[%s267 + $0x1d4] sm:$0xff]
        %v6048 = vld [vmem:[%s267 + $0x1dc] sm:$0xf]
        %v6049 = vld [vmem:[%s267 + $0x1e0] sm:$0xff]
        %v6050 = vld [vmem:[%s267 + $0x1e8] sm:$0xff]
        %v6051 = vld [vmem:[%s267 + $0x1f0] sm:$0xf]
        %v6052 = vld [vmem:[%s267 + $0x1f4] sm:$0xff]
        %v6053 = vld [vmem:[%s267 + $0x1fc] sm:$0xff]
        %v6054 = vld [vmem:[%s267 + $0x204] sm:$0xf]
        %v6055 = vld [vmem:[%s267 + $0x208] sm:$0xff]
        %v6056 = vld [vmem:[%s267 + $0x210] sm:$0xff]
        %v6057 = vld [vmem:[%s267 + $0x218] sm:$0xf]
        %v6058 = vld [vmem:[%s267 + $0x21c] sm:$0xff]
        %v6059 = vld [vmem:[%s267 + $0x224] sm:$0xff]
        %v6060 = vld [vmem:[%s267 + $0x22c] sm:$0xf]
        %v6061 = vld [vmem:[%s267 + $0x230] sm:$0xff]
        %v6062 = vld [vmem:[%s267 + $0x238] sm:$0xff]
        %v6063 = vld [vmem:[%s267 + $0x240] sm:$0xf]
        %v6064 = vld [vmem:[%s267 + $0x244] sm:$0xff]
        %v6065 = vld [vmem:[%s267 + $0x24c] sm:$0xff]
        %v6066 = vld [vmem:[%s267 + $0x254] sm:$0xf]
        %v6067 = vld [vmem:[%s267 + $0x258] sm:$0xff]
        %v6068 = vld [vmem:[%s267 + $0x260] sm:$0xff]
        %v6069 = vld [vmem:[%s267 + $0x268] sm:$0xf]
        %v6070 = vld [vmem:[%s267 + $0x26c] sm:$0xff]
        %v6071 = vld [vmem:[%s267 + $0x274] sm:$0xff]
        %v6072 = vld [vmem:[%s267 + $0x27c] sm:$0xf]
        %v6073 = vld [vmem:[%s267 + $0x280] sm:$0xff]
        %v6074 = vld [vmem:[%s267 + $0x288] sm:$0xff]
        %v6075 = vld [vmem:[%s267 + $0x290] sm:$0xf]
        %v6076 = vld [vmem:[%s267 + $0x294] sm:$0xff]
        %v6077 = vld [vmem:[%s267 + $0x29c] sm:$0xff]
        %v6078 = vld [vmem:[%s267 + $0x2a4] sm:$0xf]
        %v6079 = vld [vmem:[%s267 + $0x2a8] sm:$0xff]
        %v6080 = vld [vmem:[%s267 + $0x2b0] sm:$0xff]
        %v6081 = vld [vmem:[%s267 + $0x2b8] sm:$0xf]
        %v6082 = vld [vmem:[%s267 + $0x2bc] sm:$0xff]
        %v6083 = vld [vmem:[%s267 + $0x2c4] sm:$0xff]
        %v6084 = vld [vmem:[%s267 + $0x2cc] sm:$0xf]
        %v6085 = vld [vmem:[%s267 + $0x2d0] sm:$0xff]
        %v6086 = vld [vmem:[%s267 + $0x2d8] sm:$0xff]
        %v6087 = vld [vmem:[%s267 + $0x2e0] sm:$0xf]
        %v6088 = vld [vmem:[%s267 + $0x2e4] sm:$0xff]
        %v6089 = vld [vmem:[%s267 + $0x2ec] sm:$0xff]
        %v6090 = vld [vmem:[%s267 + $0x2f4] sm:$0xf]
        %v6091 = vld [vmem:[%s267 + $0x2f8] sm:$0xff]
        %v6092 = vld [vmem:[%s267 + $0x300] sm:$0xff]
        %v6093 = vld [vmem:[%s267 + $0x308] sm:$0xf]
        %v6094 = vld [vmem:[%s267 + $0x30c] sm:$0xff]
        %v6095 = vld [vmem:[%s267 + $0x314] sm:$0xff]
        %v6096 = vld [vmem:[%s267 + $0x31c] sm:$0xf]
        %v6097 = vld [vmem:[%s267 + $0x320] sm:$0xff]
        %v6098 = vld [vmem:[%s267 + $0x328] sm:$0xff]
        %v6099 = vld [vmem:[%s267 + $0x330] sm:$0xf]
        %v6100 = vld [vmem:[%s267 + $0x334] sm:$0xff]
        %v6101 = vld [vmem:[%s267 + $0x33c] sm:$0xff]
        %v6102 = vld [vmem:[%s267 + $0x344] sm:$0xf]
        %v6103 = vld [vmem:[%s267 + $0x348] sm:$0xff]
        %v6104 = vld [vmem:[%s267 + $0x350] sm:$0xff]
        %v6105 = vld [vmem:[%s267 + $0x358] sm:$0xf]
        %v6106 = vld [vmem:[%s267 + $0x35c] sm:$0xff]
        %v6107 = vld [vmem:[%s267 + $0x364] sm:$0xff]
        %v6108 = vld [vmem:[%s267 + $0x36c] sm:$0xf]
        %v6109 = vld [vmem:[%s267 + $0x370] sm:$0xff]
        %v6110 = vld [vmem:[%s267 + $0x378] sm:$0xff]
        %v6111 = vld [vmem:[%s267 + $0x380] sm:$0xf]
        %v6112 = vld [vmem:[%s267 + $0x384] sm:$0xff]
        %v6113 = vld [vmem:[%s267 + $0x38c] sm:$0xff]
        %v6114 = vld [vmem:[%s267 + $0x394] sm:$0xf]
        %v6115 = vld [vmem:[%s267 + $0x398] sm:$0xff]
        %v6116 = vld [vmem:[%s267 + $0x3a0] sm:$0xff]
        %v6117 = vld [vmem:[%s267 + $0x3a8] sm:$0xf]
        %v6118 = vld [vmem:[%s267 + $0x3ac] sm:$0xff]
        %v6119 = vld [vmem:[%s267 + $0x3b4] sm:$0xff]
        %v6120 = vld [vmem:[%s267 + $0x3bc] sm:$0xf]
        %v6121 = vld [vmem:[%s267 + $0x3c0] sm:$0xff]
        %v6122 = vld [vmem:[%s267 + $0x3c8] sm:$0xff]
        %v6123 = vld [vmem:[%s267 + $0x3d0] sm:$0xf]
        %v6124 = vld [vmem:[%s267 + $0x3d4] sm:$0xff]
        %v6125 = vld [vmem:[%s267 + $0x3dc] sm:$0xff]
        %v6126 = vld [vmem:[%s267 + $0x3e4] sm:$0xf]
        %v6127 = vld [vmem:[%s267 + $0x3e8] sm:$0xff]
        %v6128 = vld [vmem:[%s267 + $0x3f0] sm:$0xff]
        %v6129 = vld [vmem:[%s267 + $0x3f8] sm:$0xf]
        %v6130 = vld [vmem:[%s267 + $0x3fc] sm:$0xff]
        %v6131 = vld [vmem:[%s267 + $0x404] sm:$0xff]
        %v6132 = vld [vmem:[%s267 + $0x40c] sm:$0xf]
        %v6133 = vld [vmem:[%s267 + $0x410] sm:$0xff]
        %v6134 = vld [vmem:[%s267 + $0x418] sm:$0xff]
        %v6135 = vld [vmem:[%s267 + $0x420] sm:$0xf]
        %v6136 = vld [vmem:[%s267 + $0x424] sm:$0xff]
        %v6137 = vld [vmem:[%s267 + $0x42c] sm:$0xff]
        %v6138 = vld [vmem:[%s267 + $0x434] sm:$0xf]
        %v6139 = vld [vmem:[%s267 + $0x438] sm:$0xff]
        %v6140 = vld [vmem:[%s267 + $0x440] sm:$0xff]
        %v6141 = vld [vmem:[%s267 + $0x448] sm:$0xf]
        %v6142 = vld [vmem:[%s267 + $0x44c] sm:$0xff]
        %v6143 = vld [vmem:[%s267 + $0x454] sm:$0xff]
        %v6144 = vld [vmem:[%s267 + $0x45c] sm:$0xf]
        %v6145 = vld [vmem:[%s267 + $0x460] sm:$0xff]
        %v6146 = vld [vmem:[%s267 + $0x468] sm:$0xff]
        %v6147 = vld [vmem:[%s267 + $0x470] sm:$0xf]
        %v6148 = vld [vmem:[%s267 + $0x474] sm:$0xff]
        %v6149 = vld [vmem:[%s267 + $0x47c] sm:$0xff]
        %v6150 = vld [vmem:[%s267 + $0x484] sm:$0xf]
        %v6151 = vld [vmem:[%s267 + $0x488] sm:$0xff]
        %v6152 = vld [vmem:[%s267 + $0x490] sm:$0xff]
        %v6153 = vld [vmem:[%s267 + $0x498] sm:$0xf]
        %v6154 = vld [vmem:[%s267 + $0x49c] sm:$0xff]
        %v6155 = vld [vmem:[%s267 + $0x4a4] sm:$0xff]
        %v6156 = vld [vmem:[%s267 + $0x4ac] sm:$0xf]
        %v6157 = vld [vmem:[%s267 + $0x4b0] sm:$0xff]
        %v6158 = vld [vmem:[%s267 + $0x4b8] sm:$0xff]
        %v6159 = vld [vmem:[%s267 + $0x4c0] sm:$0xf]
        %v6160 = vld [vmem:[%s267 + $0x4c4] sm:$0xff]
        %v6161 = vld [vmem:[%s267 + $0x4cc] sm:$0xff]
        %v6162 = vld [vmem:[%s267 + $0x4d4] sm:$0xf]
        %v6163 = vld [vmem:[%s267 + $0x4d8] sm:$0xff]
        %v6164 = vld [vmem:[%s267 + $0x4e0] sm:$0xff]
        %v6165 = vld [vmem:[%s267 + $0x4e8] sm:$0xf]
        %v6166 = vld [vmem:[%s267 + $0x4ec] sm:$0xff]
        %v6167 = vld [vmem:[%s267 + $0x4f4] sm:$0xff]
        %v6168 = vld [vmem:[%s267 + $0x4fc] sm:$0xf]
        %v6361 = vunpack.c.l.b16 %v5977
        %v6362 = vunpack.c.h.b16 %v5977
        %v6363 = vunpack.c.l.b16 %v5978
        %v6364 = vunpack.c.h.b16 %v5978
        %v6365 = vunpack.c.l.b16 %v5979
        %v6366 = vunpack.c.l.b16 %v5980
        %v6367 = vunpack.c.h.b16 %v5980
        %v6368 = vunpack.c.l.b16 %v5981
        %v6369 = vunpack.c.h.b16 %v5981
        %v6370 = vunpack.c.l.b16 %v5982
        %v6371 = vunpack.c.l.b16 %v5983
        %v6372 = vunpack.c.h.b16 %v5983
        %v6373 = vunpack.c.l.b16 %v5984
        %v6374 = vunpack.c.h.b16 %v5984
        %v6375 = vunpack.c.l.b16 %v5985
        %v6376 = vunpack.c.l.b16 %v5986
        %v6377 = vunpack.c.h.b16 %v5986
        %v6378 = vunpack.c.l.b16 %v5987
        %v6379 = vunpack.c.h.b16 %v5987
        %v6380 = vunpack.c.l.b16 %v5988
        %v6381 = vunpack.c.l.b16 %v5989
        %v6382 = vunpack.c.h.b16 %v5989
        %v6383 = vunpack.c.l.b16 %v5990
        %v6384 = vunpack.c.h.b16 %v5990
        %v6385 = vunpack.c.l.b16 %v5991
        %v6386 = vunpack.c.l.b16 %v5992
        %v6387 = vunpack.c.h.b16 %v5992
        %v6388 = vunpack.c.l.b16 %v5993
        %v6389 = vunpack.c.h.b16 %v5993
        %v6390 = vunpack.c.l.b16 %v5994
        %v6391 = vunpack.c.l.b16 %v5995
        %v6392 = vunpack.c.h.b16 %v5995
        %v6393 = vunpack.c.l.b16 %v5996
        %v6394 = vunpack.c.h.b16 %v5996
        %v6395 = vunpack.c.l.b16 %v5997
        %v6396 = vunpack.c.l.b16 %v5998
        %v6397 = vunpack.c.h.b16 %v5998
        %v6398 = vunpack.c.l.b16 %v5999
        %v6399 = vunpack.c.h.b16 %v5999
        %v6400 = vunpack.c.l.b16 %v6000
        %v6401 = vunpack.c.l.b16 %v6001
        %v6402 = vunpack.c.h.b16 %v6001
        %v6403 = vunpack.c.l.b16 %v6002
        %v6404 = vunpack.c.h.b16 %v6002
        %v6405 = vunpack.c.l.b16 %v6003
        %v6406 = vunpack.c.l.b16 %v6004
        %v6407 = vunpack.c.h.b16 %v6004
        %v6408 = vunpack.c.l.b16 %v6005
        %v6409 = vunpack.c.h.b16 %v6005
        %v6410 = vunpack.c.l.b16 %v6006
        %v6411 = vunpack.c.l.b16 %v6007
        %v6412 = vunpack.c.h.b16 %v6007
        %v6413 = vunpack.c.l.b16 %v6008
        %v6414 = vunpack.c.h.b16 %v6008
        %v6415 = vunpack.c.l.b16 %v6009
        %v6416 = vunpack.c.l.b16 %v6010
        %v6417 = vunpack.c.h.b16 %v6010
        %v6418 = vunpack.c.l.b16 %v6011
        %v6419 = vunpack.c.h.b16 %v6011
        %v6420 = vunpack.c.l.b16 %v6012
        %v6421 = vunpack.c.l.b16 %v6013
        %v6422 = vunpack.c.h.b16 %v6013
        %v6423 = vunpack.c.l.b16 %v6014
        %v6424 = vunpack.c.h.b16 %v6014
        %v6425 = vunpack.c.l.b16 %v6015
        %v6426 = vunpack.c.l.b16 %v6016
        %v6427 = vunpack.c.h.b16 %v6016
        %v6428 = vunpack.c.l.b16 %v6017
        %v6429 = vunpack.c.h.b16 %v6017
        %v6430 = vunpack.c.l.b16 %v6018
        %v6431 = vunpack.c.l.b16 %v6019
        %v6432 = vunpack.c.h.b16 %v6019
        %v6433 = vunpack.c.l.b16 %v6020
        %v6434 = vunpack.c.h.b16 %v6020
        %v6435 = vunpack.c.l.b16 %v6021
        %v6436 = vunpack.c.l.b16 %v6022
        %v6437 = vunpack.c.h.b16 %v6022
        %v6438 = vunpack.c.l.b16 %v6023
        %v6439 = vunpack.c.h.b16 %v6023
        %v6440 = vunpack.c.l.b16 %v6024
        %v6441 = vunpack.c.l.b16 %v6025
        %v6442 = vunpack.c.h.b16 %v6025
        %v6443 = vunpack.c.l.b16 %v6026
        %v6444 = vunpack.c.h.b16 %v6026
        %v6445 = vunpack.c.l.b16 %v6027
        %v6446 = vunpack.c.l.b16 %v6028
        %v6447 = vunpack.c.h.b16 %v6028
        %v6448 = vunpack.c.l.b16 %v6029
        %v6449 = vunpack.c.h.b16 %v6029
        %v6450 = vunpack.c.l.b16 %v6030
        %v6451 = vunpack.c.l.b16 %v6031
        %v6452 = vunpack.c.h.b16 %v6031
        %v6453 = vunpack.c.l.b16 %v6032
        %v6454 = vunpack.c.h.b16 %v6032
        %v6455 = vunpack.c.l.b16 %v6033
        %v6456 = vunpack.c.l.b16 %v6034
        %v6457 = vunpack.c.h.b16 %v6034
        %v6458 = vunpack.c.l.b16 %v6035
        %v6459 = vunpack.c.h.b16 %v6035
        %v6460 = vunpack.c.l.b16 %v6036
        %v6461 = vunpack.c.l.b16 %v6037
        %v6462 = vunpack.c.h.b16 %v6037
        %v6463 = vunpack.c.l.b16 %v6038
        %v6464 = vunpack.c.h.b16 %v6038
        %v6465 = vunpack.c.l.b16 %v6039
        %v6466 = vunpack.c.l.b16 %v6040
        %v6467 = vunpack.c.h.b16 %v6040
        %v6468 = vunpack.c.l.b16 %v6041
        %v6469 = vunpack.c.h.b16 %v6041
        %v6470 = vunpack.c.l.b16 %v6042
        %v6471 = vunpack.c.l.b16 %v6043
        %v6472 = vunpack.c.h.b16 %v6043
        %v6473 = vunpack.c.l.b16 %v6044
        %v6474 = vunpack.c.h.b16 %v6044
        %v6475 = vunpack.c.l.b16 %v6045
        %v6476 = vunpack.c.l.b16 %v6046
        %v6477 = vunpack.c.h.b16 %v6046
        %v6478 = vunpack.c.l.b16 %v6047
        %v6479 = vunpack.c.h.b16 %v6047
        %v6480 = vunpack.c.l.b16 %v6048
        %v6481 = vunpack.c.l.b16 %v6049
        %v6482 = vunpack.c.h.b16 %v6049
        %v6483 = vunpack.c.l.b16 %v6050
        %v6484 = vunpack.c.h.b16 %v6050
        %v6485 = vunpack.c.l.b16 %v6051
        %v6486 = vunpack.c.l.b16 %v6052
        %v6487 = vunpack.c.h.b16 %v6052
        %v6488 = vunpack.c.l.b16 %v6053
        %v6489 = vunpack.c.h.b16 %v6053
        %v6490 = vunpack.c.l.b16 %v6054
        %v6491 = vunpack.c.l.b16 %v6055
        %v6492 = vunpack.c.h.b16 %v6055
        %v6493 = vunpack.c.l.b16 %v6056
        %v6494 = vunpack.c.h.b16 %v6056
        %v6495 = vunpack.c.l.b16 %v6057
        %v6496 = vunpack.c.l.b16 %v6058
        %v6497 = vunpack.c.h.b16 %v6058
        %v6498 = vunpack.c.l.b16 %v6059
        %v6499 = vunpack.c.h.b16 %v6059
        %v6500 = vunpack.c.l.b16 %v6060
        %v6501 = vunpack.c.l.b16 %v6061
        %v6502 = vunpack.c.h.b16 %v6061
        %v6503 = vunpack.c.l.b16 %v6062
        %v6504 = vunpack.c.h.b16 %v6062
        %v6505 = vunpack.c.l.b16 %v6063
        %v6506 = vunpack.c.l.b16 %v6064
        %v6507 = vunpack.c.h.b16 %v6064
        %v6508 = vunpack.c.l.b16 %v6065
        %v6509 = vunpack.c.h.b16 %v6065
        %v6510 = vunpack.c.l.b16 %v6066
        %v6511 = vunpack.c.l.b16 %v6067
        %v6512 = vunpack.c.h.b16 %v6067
        %v6513 = vunpack.c.l.b16 %v6068
        %v6514 = vunpack.c.h.b16 %v6068
        %v6515 = vunpack.c.l.b16 %v6069
        %v6516 = vunpack.c.l.b16 %v6070
        %v6517 = vunpack.c.h.b16 %v6070
        %v6518 = vunpack.c.l.b16 %v6071
        %v6519 = vunpack.c.h.b16 %v6071
        %v6520 = vunpack.c.l.b16 %v6072
        %v6521 = vunpack.c.l.b16 %v6073
        %v6522 = vunpack.c.h.b16 %v6073
        %v6523 = vunpack.c.l.b16 %v6074
        %v6524 = vunpack.c.h.b16 %v6074
        %v6525 = vunpack.c.l.b16 %v6075
        %v6526 = vunpack.c.l.b16 %v6076
        %v6527 = vunpack.c.h.b16 %v6076
        %v6528 = vunpack.c.l.b16 %v6077
        %v6529 = vunpack.c.h.b16 %v6077
        %v6530 = vunpack.c.l.b16 %v6078
        %v6531 = vunpack.c.l.b16 %v6079
        %v6532 = vunpack.c.h.b16 %v6079
        %v6533 = vunpack.c.l.b16 %v6080
        %v6534 = vunpack.c.h.b16 %v6080
        %v6535 = vunpack.c.l.b16 %v6081
        %v6536 = vunpack.c.l.b16 %v6082
        %v6537 = vunpack.c.h.b16 %v6082
        %v6538 = vunpack.c.l.b16 %v6083
        %v6539 = vunpack.c.h.b16 %v6083
        %v6540 = vunpack.c.l.b16 %v6084
        %v6541 = vunpack.c.l.b16 %v6085
        %v6542 = vunpack.c.h.b16 %v6085
        %v6543 = vunpack.c.l.b16 %v6086
        %v6544 = vunpack.c.h.b16 %v6086
        %v6545 = vunpack.c.l.b16 %v6087
        %v6546 = vunpack.c.l.b16 %v6088
        %v6547 = vunpack.c.h.b16 %v6088
        %v6548 = vunpack.c.l.b16 %v6089
        %v6549 = vunpack.c.h.b16 %v6089
        %v6550 = vunpack.c.l.b16 %v6090
        %v6551 = vunpack.c.l.b16 %v6091
        %v6552 = vunpack.c.h.b16 %v6091
        %v6553 = vunpack.c.l.b16 %v6092
        %v6554 = vunpack.c.h.b16 %v6092
        %v6555 = vunpack.c.l.b16 %v6093
        %v6556 = vunpack.c.l.b16 %v6094
        %v6557 = vunpack.c.h.b16 %v6094
        %v6558 = vunpack.c.l.b16 %v6095
        %v6559 = vunpack.c.h.b16 %v6095
        %v6560 = vunpack.c.l.b16 %v6096
        %v6561 = vunpack.c.l.b16 %v6097
        %v6562 = vunpack.c.h.b16 %v6097
        %v6563 = vunpack.c.l.b16 %v6098
        %v6564 = vunpack.c.h.b16 %v6098
        %v6565 = vunpack.c.l.b16 %v6099
        %v6566 = vunpack.c.l.b16 %v6100
        %v6567 = vunpack.c.h.b16 %v6100
        %v6568 = vunpack.c.l.b16 %v6101
        %v6569 = vunpack.c.h.b16 %v6101
        %v6570 = vunpack.c.l.b16 %v6102
        %v6571 = vunpack.c.l.b16 %v6103
        %v6572 = vunpack.c.h.b16 %v6103
        %v6573 = vunpack.c.l.b16 %v6104
        %v6574 = vunpack.c.h.b16 %v6104
        %v6575 = vunpack.c.l.b16 %v6105
        %v6576 = vunpack.c.l.b16 %v6106
        %v6577 = vunpack.c.h.b16 %v6106
        %v6578 = vunpack.c.l.b16 %v6107
        %v6579 = vunpack.c.h.b16 %v6107
        %v6580 = vunpack.c.l.b16 %v6108
        %v6581 = vunpack.c.l.b16 %v6109
        %v6582 = vunpack.c.h.b16 %v6109
        %v6583 = vunpack.c.l.b16 %v6110
        %v6584 = vunpack.c.h.b16 %v6110
        %v6585 = vunpack.c.l.b16 %v6111
        %v6586 = vunpack.c.l.b16 %v6112
        %v6587 = vunpack.c.h.b16 %v6112
        %v6588 = vunpack.c.l.b16 %v6113
        %v6589 = vunpack.c.h.b16 %v6113
        %v6590 = vunpack.c.l.b16 %v6114
        %v6591 = vunpack.c.l.b16 %v6115
        %v6592 = vunpack.c.h.b16 %v6115
        %v6593 = vunpack.c.l.b16 %v6116
        %v6594 = vunpack.c.h.b16 %v6116
        %v6595 = vunpack.c.l.b16 %v6117
        %v6596 = vunpack.c.l.b16 %v6118
        %v6597 = vunpack.c.h.b16 %v6118
        %v6598 = vunpack.c.l.b16 %v6119
        %v6599 = vunpack.c.h.b16 %v6119
        %v6600 = vunpack.c.l.b16 %v6120
        %v6601 = vunpack.c.l.b16 %v6121
        %v6602 = vunpack.c.h.b16 %v6121
        %v6603 = vunpack.c.l.b16 %v6122
        %v6604 = vunpack.c.h.b16 %v6122
        %v6605 = vunpack.c.l.b16 %v6123
        %v6606 = vunpack.c.l.b16 %v6124
        %v6607 = vunpack.c.h.b16 %v6124
        %v6608 = vunpack.c.l.b16 %v6125
        %v6609 = vunpack.c.h.b16 %v6125
        %v6610 = vunpack.c.l.b16 %v6126
        %v6611 = vunpack.c.l.b16 %v6127
        %v6612 = vunpack.c.h.b16 %v6127
        %v6613 = vunpack.c.l.b16 %v6128
        %v6614 = vunpack.c.h.b16 %v6128
        %v6615 = vunpack.c.l.b16 %v6129
        %v6616 = vunpack.c.l.b16 %v6130
        %v6617 = vunpack.c.h.b16 %v6130
        %v6618 = vunpack.c.l.b16 %v6131
        %v6619 = vunpack.c.h.b16 %v6131
        %v6620 = vunpack.c.l.b16 %v6132
        %v6621 = vunpack.c.l.b16 %v6133
        %v6622 = vunpack.c.h.b16 %v6133
        %v6623 = vunpack.c.l.b16 %v6134
        %v6624 = vunpack.c.h.b16 %v6134
        %v6625 = vunpack.c.l.b16 %v6135
        %v6626 = vunpack.c.l.b16 %v6136
        %v6627 = vunpack.c.h.b16 %v6136
        %v6628 = vunpack.c.l.b16 %v6137
        %v6629 = vunpack.c.h.b16 %v6137
        %v6630 = vunpack.c.l.b16 %v6138
        %v6631 = vunpack.c.l.b16 %v6139
        %v6632 = vunpack.c.h.b16 %v6139
        %v6633 = vunpack.c.l.b16 %v6140
        %v6634 = vunpack.c.h.b16 %v6140
        %v6635 = vunpack.c.l.b16 %v6141
        %v6636 = vunpack.c.l.b16 %v6142
        %v6637 = vunpack.c.h.b16 %v6142
        %v6638 = vunpack.c.l.b16 %v6143
        %v6639 = vunpack.c.h.b16 %v6143
        %v6640 = vunpack.c.l.b16 %v6144
        %v6641 = vunpack.c.l.b16 %v6145
        %v6642 = vunpack.c.h.b16 %v6145
        %v6643 = vunpack.c.l.b16 %v6146
        %v6644 = vunpack.c.h.b16 %v6146
        %v6645 = vunpack.c.l.b16 %v6147
        %v6646 = vunpack.c.l.b16 %v6148
        %v6647 = vunpack.c.h.b16 %v6148
        %v6648 = vunpack.c.l.b16 %v6149
        %v6649 = vunpack.c.h.b16 %v6149
        %v6650 = vunpack.c.l.b16 %v6150
        %v6651 = vunpack.c.l.b16 %v6151
        %v6652 = vunpack.c.h.b16 %v6151
        %v6653 = vunpack.c.l.b16 %v6152
        %v6654 = vunpack.c.h.b16 %v6152
        %v6655 = vunpack.c.l.b16 %v6153
        %v6656 = vunpack.c.l.b16 %v6154
        %v6657 = vunpack.c.h.b16 %v6154
        %v6658 = vunpack.c.l.b16 %v6155
        %v6659 = vunpack.c.h.b16 %v6155
        %v6660 = vunpack.c.l.b16 %v6156
        %v6661 = vunpack.c.l.b16 %v6157
        %v6662 = vunpack.c.h.b16 %v6157
        %v6663 = vunpack.c.l.b16 %v6158
        %v6664 = vunpack.c.h.b16 %v6158
        %v6665 = vunpack.c.l.b16 %v6159
        %v6666 = vunpack.c.l.b16 %v6160
        %v6667 = vunpack.c.h.b16 %v6160
        %v6668 = vunpack.c.l.b16 %v6161
        %v6669 = vunpack.c.h.b16 %v6161
        %v6670 = vunpack.c.l.b16 %v6162
        %v6671 = vunpack.c.l.b16 %v6163
        %v6672 = vunpack.c.h.b16 %v6163
        %v6673 = vunpack.c.l.b16 %v6164
        %v6674 = vunpack.c.h.b16 %v6164
        %v6675 = vunpack.c.l.b16 %v6165
        %v6676 = vunpack.c.l.b16 %v6166
        %v6677 = vunpack.c.h.b16 %v6166
        %v6678 = vunpack.c.l.b16 %v6167
        %v6679 = vunpack.c.h.b16 %v6167
        %v6680 = vunpack.c.l.b16 %v6168
        %v6681 = vpack.c.b16 %v6366, %v6361
        %v6682 = vpack.c.b16 %v6367, %v6362
        %v6683 = vpack.c.b16 %v6368, %v6363
        %v6684 = vpack.c.b16 %v6369, %v6364
        %v6685 = vpack.c.b16 %v6370, %v6365
        %v6686 = vpack.c.b16 %v6376, %v6371
        %v6687 = vpack.c.b16 %v6377, %v6372
        %v6688 = vpack.c.b16 %v6378, %v6373
        %v6689 = vpack.c.b16 %v6379, %v6374
        %v6690 = vpack.c.b16 %v6380, %v6375
        %v6691 = vpack.c.b16 %v6386, %v6381
        %v6692 = vpack.c.b16 %v6387, %v6382
        %v6693 = vpack.c.b16 %v6388, %v6383
        %v6694 = vpack.c.b16 %v6389, %v6384
        %v6695 = vpack.c.b16 %v6390, %v6385
        %v6696 = vpack.c.b16 %v6396, %v6391
        %v6697 = vpack.c.b16 %v6397, %v6392
        %v6698 = vpack.c.b16 %v6398, %v6393
        %v6699 = vpack.c.b16 %v6399, %v6394
        %v6700 = vpack.c.b16 %v6400, %v6395
        %v6701 = vpack.c.b16 %v6406, %v6401
        %v6702 = vpack.c.b16 %v6407, %v6402
        %v6703 = vpack.c.b16 %v6408, %v6403
        %v6704 = vpack.c.b16 %v6409, %v6404
        %v6705 = vpack.c.b16 %v6410, %v6405
        %v6706 = vpack.c.b16 %v6416, %v6411
        %v6707 = vpack.c.b16 %v6417, %v6412
        %v6708 = vpack.c.b16 %v6418, %v6413
        %v6709 = vpack.c.b16 %v6419, %v6414
        %v6710 = vpack.c.b16 %v6420, %v6415
        %v6711 = vpack.c.b16 %v6426, %v6421
        %v6712 = vpack.c.b16 %v6427, %v6422
        %v6713 = vpack.c.b16 %v6428, %v6423
        %v6714 = vpack.c.b16 %v6429, %v6424
        %v6715 = vpack.c.b16 %v6430, %v6425
        %v6716 = vpack.c.b16 %v6436, %v6431
        %v6717 = vpack.c.b16 %v6437, %v6432
        %v6718 = vpack.c.b16 %v6438, %v6433
        %v6719 = vpack.c.b16 %v6439, %v6434
        %v6720 = vpack.c.b16 %v6440, %v6435
        %v6721 = vpack.c.b16 %v6446, %v6441
        %v6722 = vpack.c.b16 %v6447, %v6442
        %v6723 = vpack.c.b16 %v6448, %v6443
        %v6724 = vpack.c.b16 %v6449, %v6444
        %v6725 = vpack.c.b16 %v6450, %v6445
        %v6726 = vpack.c.b16 %v6456, %v6451
        %v6727 = vpack.c.b16 %v6457, %v6452
        %v6728 = vpack.c.b16 %v6458, %v6453
        %v6729 = vpack.c.b16 %v6459, %v6454
        %v6730 = vpack.c.b16 %v6460, %v6455
        %v6731 = vpack.c.b16 %v6466, %v6461
        %v6732 = vpack.c.b16 %v6467, %v6462
        %v6733 = vpack.c.b16 %v6468, %v6463
        %v6734 = vpack.c.b16 %v6469, %v6464
        %v6735 = vpack.c.b16 %v6470, %v6465
        %v6736 = vpack.c.b16 %v6476, %v6471
        %v6737 = vpack.c.b16 %v6477, %v6472
        %v6738 = vpack.c.b16 %v6478, %v6473
        %v6739 = vpack.c.b16 %v6479, %v6474
        %v6740 = vpack.c.b16 %v6480, %v6475
        %v6741 = vpack.c.b16 %v6486, %v6481
        %v6742 = vpack.c.b16 %v6487, %v6482
        %v6743 = vpack.c.b16 %v6488, %v6483
        %v6744 = vpack.c.b16 %v6489, %v6484
        %v6745 = vpack.c.b16 %v6490, %v6485
        %v6746 = vpack.c.b16 %v6496, %v6491
        %v6747 = vpack.c.b16 %v6497, %v6492
        %v6748 = vpack.c.b16 %v6498, %v6493
        %v6749 = vpack.c.b16 %v6499, %v6494
        %v6750 = vpack.c.b16 %v6500, %v6495
        %v6751 = vpack.c.b16 %v6506, %v6501
        %v6752 = vpack.c.b16 %v6507, %v6502
        %v6753 = vpack.c.b16 %v6508, %v6503
        %v6754 = vpack.c.b16 %v6509, %v6504
        %v6755 = vpack.c.b16 %v6510, %v6505
        %v6756 = vpack.c.b16 %v6516, %v6511
        %v6757 = vpack.c.b16 %v6517, %v6512
        %v6758 = vpack.c.b16 %v6518, %v6513
        %v6759 = vpack.c.b16 %v6519, %v6514
        %v6760 = vpack.c.b16 %v6520, %v6515
        %v6761 = vpack.c.b16 %v6526, %v6521
        %v6762 = vpack.c.b16 %v6527, %v6522
        %v6763 = vpack.c.b16 %v6528, %v6523
        %v6764 = vpack.c.b16 %v6529, %v6524
        %v6765 = vpack.c.b16 %v6530, %v6525
        %v6766 = vpack.c.b16 %v6536, %v6531
        %v6767 = vpack.c.b16 %v6537, %v6532
        %v6768 = vpack.c.b16 %v6538, %v6533
        %v6769 = vpack.c.b16 %v6539, %v6534
        %v6770 = vpack.c.b16 %v6540, %v6535
        %v6771 = vpack.c.b16 %v6546, %v6541
        %v6772 = vpack.c.b16 %v6547, %v6542
        %v6773 = vpack.c.b16 %v6548, %v6543
        %v6774 = vpack.c.b16 %v6549, %v6544
        %v6775 = vpack.c.b16 %v6550, %v6545
        %v6776 = vpack.c.b16 %v6556, %v6551
        %v6777 = vpack.c.b16 %v6557, %v6552
        %v6778 = vpack.c.b16 %v6558, %v6553
        %v6779 = vpack.c.b16 %v6559, %v6554
        %v6780 = vpack.c.b16 %v6560, %v6555
        %v6781 = vpack.c.b16 %v6566, %v6561
        %v6782 = vpack.c.b16 %v6567, %v6562
        %v6783 = vpack.c.b16 %v6568, %v6563
        %v6784 = vpack.c.b16 %v6569, %v6564
        %v6785 = vpack.c.b16 %v6570, %v6565
        %v6786 = vpack.c.b16 %v6576, %v6571
        %v6787 = vpack.c.b16 %v6577, %v6572
        %v6788 = vpack.c.b16 %v6578, %v6573
        %v6789 = vpack.c.b16 %v6579, %v6574
        %v6790 = vpack.c.b16 %v6580, %v6575
        %v6791 = vpack.c.b16 %v6586, %v6581
        %v6792 = vpack.c.b16 %v6587, %v6582
        %v6793 = vpack.c.b16 %v6588, %v6583
        %v6794 = vpack.c.b16 %v6589, %v6584
        %v6795 = vpack.c.b16 %v6590, %v6585
        %v6796 = vpack.c.b16 %v6596, %v6591
        %v6797 = vpack.c.b16 %v6597, %v6592
        %v6798 = vpack.c.b16 %v6598, %v6593
        %v6799 = vpack.c.b16 %v6599, %v6594
        %v6800 = vpack.c.b16 %v6600, %v6595
        %v6801 = vpack.c.b16 %v6606, %v6601
        %v6802 = vpack.c.b16 %v6607, %v6602
        %v6803 = vpack.c.b16 %v6608, %v6603
        %v6804 = vpack.c.b16 %v6609, %v6604
        %v6805 = vpack.c.b16 %v6610, %v6605
        %v6806 = vpack.c.b16 %v6616, %v6611
        %v6807 = vpack.c.b16 %v6617, %v6612
        %v6808 = vpack.c.b16 %v6618, %v6613
        %v6809 = vpack.c.b16 %v6619, %v6614
        %v6810 = vpack.c.b16 %v6620, %v6615
        %v6811 = vpack.c.b16 %v6626, %v6621
        %v6812 = vpack.c.b16 %v6627, %v6622
        %v6813 = vpack.c.b16 %v6628, %v6623
        %v6814 = vpack.c.b16 %v6629, %v6624
        %v6815 = vpack.c.b16 %v6630, %v6625
        %v6816 = vpack.c.b16 %v6636, %v6631
        %v6817 = vpack.c.b16 %v6637, %v6632
        %v6818 = vpack.c.b16 %v6638, %v6633
        %v6819 = vpack.c.b16 %v6639, %v6634
        %v6820 = vpack.c.b16 %v6640, %v6635
        %v6821 = vpack.c.b16 %v6646, %v6641
        %v6822 = vpack.c.b16 %v6647, %v6642
        %v6823 = vpack.c.b16 %v6648, %v6643
        %v6824 = vpack.c.b16 %v6649, %v6644
        %v6825 = vpack.c.b16 %v6650, %v6645
        %v6826 = vpack.c.b16 %v6656, %v6651
        %v6827 = vpack.c.b16 %v6657, %v6652
        %v6828 = vpack.c.b16 %v6658, %v6653
        %v6829 = vpack.c.b16 %v6659, %v6654
        %v6830 = vpack.c.b16 %v6660, %v6655
        %v6831 = vpack.c.b16 %v6666, %v6661
        %v6832 = vpack.c.b16 %v6667, %v6662
        %v6833 = vpack.c.b16 %v6668, %v6663
        %v6834 = vpack.c.b16 %v6669, %v6664
        %v6835 = vpack.c.b16 %v6670, %v6665
        %v6836 = vpack.c.b16 %v6676, %v6671
        %v6837 = vpack.c.b16 %v6677, %v6672
        %v6838 = vpack.c.b16 %v6678, %v6673
        %v6839 = vpack.c.b16 %v6679, %v6674
        %v6840 = vpack.c.b16 %v6680, %v6675
        %7001 = vmatprep.subr.bf16.mxu0 %v6682
        %7002 = vmatpush1.bf16.msra.mxu0 %v6681
        %7003 = vmatprep.subr.bf16.mxu0 %v6687
        %7004 = vmatpush1.bf16.msra.mxu0 %v6686
        %7005 = vmatprep.subr.bf16.mxu0 %v6692
        %7006 = vmatpush1.bf16.msra.mxu0 %v6691
        %7007 = vmatprep.subr.bf16.mxu0 %v6697
        %7008 = vmatpush1.bf16.msra.mxu0 %v6696
        %7009 = vmatprep.subr.bf16.mxu0 %v6702
        %7010 = vmatpush1.bf16.msra.mxu0 %v6701
        %7011 = vmatprep.subr.bf16.mxu0 %v6707
        %7012 = vmatpush1.bf16.msra.mxu0 %v6706
        %7013 = vmatprep.subr.bf16.mxu0 %v6712
        %7014 = vmatpush1.bf16.msra.mxu0 %v6711
        %7015 = vmatprep.subr.bf16.mxu0 %v6717
        %7016 = vmatpush1.bf16.msra.mxu0 %v6716
        %7017 = vmatprep.subr.bf16.mxu0 %v6722
        %7018 = vmatpush1.bf16.msra.mxu0 %v6721
        %7019 = vmatprep.subr.bf16.mxu0 %v6727
        %7020 = vmatpush1.bf16.msra.mxu0 %v6726
        %7021 = vmatprep.subr.bf16.mxu0 %v6732
        %7022 = vmatpush1.bf16.msra.mxu0 %v6731
        %7023 = vmatprep.subr.bf16.mxu0 %v6737
        %7024 = vmatpush1.bf16.msra.mxu0 %v6736
        %7025 = vmatprep.subr.bf16.mxu0 %v6742
        %7026 = vmatpush1.bf16.msra.mxu0 %v6741
        %7027 = vmatprep.subr.bf16.mxu0 %v6747
        %7028 = vmatpush1.bf16.msra.mxu0 %v6746
        %7029 = vmatprep.subr.bf16.mxu0 %v6752
        %7030 = vmatpush1.bf16.msra.mxu0 %v6751
        %7031 = vmatprep.subr.bf16.mxu0 %v6757
        %7032 = vmatpush1.bf16.msra.mxu0 %v6756
        %7033 = vmatprep.mubr.bf16.mxu0 %v5974
        %7034 = vmatmul.mubr.bf16.gmra.mrb[0].mxu0 %v5973
        %v7035 = vpop.f32.mrb[0].mxu0
        %v7036 = vadd.f32 0.0, %v7035
        %v7037 = vpop.f32.mrb[0].mxu0
        %v7038 = vadd.f32 0.0, %v7037
        %v7039 = vpop.f32.mrb[0].mxu0
        %v7040 = vpop.f32.mrb[0].mxu0
        %7041 = vdwg.mxu0
        %7042 = vmatprep.subr.bf16.mxu0 %v6762
        %7043 = vmatpush1.bf16.msra.mxu0 %v6761
        %7044 = vmatprep.subr.bf16.mxu0 %v6767
        %7045 = vmatpush1.bf16.msra.mxu0 %v6766
        %7046 = vmatprep.subr.bf16.mxu0 %v6772
        %7047 = vmatpush1.bf16.msra.mxu0 %v6771
        %7048 = vmatprep.subr.bf16.mxu0 %v6777
        %7049 = vmatpush1.bf16.msra.mxu0 %v6776
        %7050 = vmatprep.subr.bf16.mxu0 %v6782
        %7051 = vmatpush1.bf16.msra.mxu0 %v6781
        %7052 = vmatprep.subr.bf16.mxu0 %v6787
        %7053 = vmatpush1.bf16.msra.mxu0 %v6786
        %7054 = vmatprep.subr.bf16.mxu0 %v6792
        %7055 = vmatpush1.bf16.msra.mxu0 %v6791
        %7056 = vmatprep.subr.bf16.mxu0 %v6797
        %7057 = vmatpush1.bf16.msra.mxu0 %v6796
        %7058 = vmatprep.subr.bf16.mxu0 %v6802
        %7059 = vmatpush1.bf16.msra.mxu0 %v6801
        %7060 = vmatprep.subr.bf16.mxu0 %v6807
        %7061 = vmatpush1.bf16.msra.mxu0 %v6806
        %7062 = vmatprep.subr.bf16.mxu0 %v6812
        %7063 = vmatpush1.bf16.msra.mxu0 %v6811
        %7064 = vmatprep.subr.bf16.mxu0 %v6817
        %7065 = vmatpush1.bf16.msra.mxu0 %v6816
        %7066 = vmatprep.subr.bf16.mxu0 %v6822
        %7067 = vmatpush1.bf16.msra.mxu0 %v6821
        %7068 = vmatprep.subr.bf16.mxu0 %v6827
        %7069 = vmatpush1.bf16.msra.mxu0 %v6826
        %7070 = vmatprep.subr.bf16.mxu0 %v6832
        %7071 = vmatpush1.bf16.msra.mxu0 %v6831
        %7072 = vmatprep.subr.bf16.mxu0 %v6837
        %7073 = vmatpush1.bf16.msra.mxu0 %v6836
        %7074 = vmatprep.mubr.bf16.mxu0 %v5976
        %7075 = vmatmul.mubr.bf16.gmra.mrb[0].mxu0 %v5975
        %v7076 = vpop.f32.mrb[0].mxu0
        %v7077 = vadd.f32 %v7036, %v7076
        %v7078 = vpop.f32.mrb[0].mxu0
        %v7079 = vadd.f32 %v7038, %v7078
        %v7080 = vpop.f32.mrb[0].mxu0
        %v7081 = vpop.f32.mrb[0].mxu0
        %7082 = vdwg.mxu0
        %7083 = vmatprep.subr.bf16.mxu0 %v6684
        %7084 = vmatpush1.bf16.msra.mxu0 %v6683
        %7085 = vmatprep.subr.bf16.mxu0 %v6689
        %7086 = vmatpush1.bf16.msra.mxu0 %v6688
        %7087 = vmatprep.subr.bf16.mxu0 %v6694
        %7088 = vmatpush1.bf16.msra.mxu0 %v6693
        %7089 = vmatprep.subr.bf16.mxu0 %v6699
        %7090 = vmatpush1.bf16.msra.mxu0 %v6698
        %7091 = vmatprep.subr.bf16.mxu0 %v6704
        %7092 = vmatpush1.bf16.msra.mxu0 %v6703
        %7093 = vmatprep.subr.bf16.mxu0 %v6709
        %7094 = vmatpush1.bf16.msra.mxu0 %v6708
        %7095 = vmatprep.subr.bf16.mxu0 %v6714
        %7096 = vmatpush1.bf16.msra.mxu0 %v6713
        %7097 = vmatprep.subr.bf16.mxu0 %v6719
        %7098 = vmatpush1.bf16.msra.mxu0 %v6718
        %7099 = vmatprep.subr.bf16.mxu0 %v6724
        %7100 = vmatpush1.bf16.msra.mxu0 %v6723
        %7101 = vmatprep.subr.bf16.mxu0 %v6729
        %7102 = vmatpush1.bf16.msra.mxu0 %v6728
        %7103 = vmatprep.subr.bf16.mxu0 %v6734
        %7104 = vmatpush1.bf16.msra.mxu0 %v6733
        %7105 = vmatprep.subr.bf16.mxu0 %v6739
        %7106 = vmatpush1.bf16.msra.mxu0 %v6738
        %7107 = vmatprep.subr.bf16.mxu0 %v6744
        %7108 = vmatpush1.bf16.msra.mxu0 %v6743
        %7109 = vmatprep.subr.bf16.mxu0 %v6749
        %7110 = vmatpush1.bf16.msra.mxu0 %v6748
        %7111 = vmatprep.subr.bf16.mxu0 %v6754
        %7112 = vmatpush1.bf16.msra.mxu0 %v6753
        %7113 = vmatprep.subr.bf16.mxu0 %v6759
        %7114 = vmatpush1.bf16.msra.mxu0 %v6758
        %7115 = vmatprep.mubr.bf16.mxu0 %v5974
        %7116 = vmatmul.mubr.bf16.gmra.mrb[0].mxu0 %v5973
        %v7117 = vpop.f32.mrb[0].mxu0
        %v7118 = vadd.f32 0.0, %v7117
        %v7119 = vpop.f32.mrb[0].mxu0
        %v7120 = vadd.f32 0.0, %v7119
        %v7121 = vpop.f32.mrb[0].mxu0
        %v7122 = vpop.f32.mrb[0].mxu0
        %7123 = vdwg.mxu0
        %7124 = vmatprep.subr.bf16.mxu0 %v6764
        %7125 = vmatpush1.bf16.msra.mxu0 %v6763
        %7126 = vmatprep.subr.bf16.mxu0 %v6769
        %7127 = vmatpush1.bf16.msra.mxu0 %v6768
        %7128 = vmatprep.subr.bf16.mxu0 %v6774
        %7129 = vmatpush1.bf16.msra.mxu0 %v6773
        %7130 = vmatprep.subr.bf16.mxu0 %v6779
        %7131 = vmatpush1.bf16.msra.mxu0 %v6778
        %7132 = vmatprep.subr.bf16.mxu0 %v6784
        %7133 = vmatpush1.bf16.msra.mxu0 %v6783
        %7134 = vmatprep.subr.bf16.mxu0 %v6789
        %7135 = vmatpush1.bf16.msra.mxu0 %v6788
        %7136 = vmatprep.subr.bf16.mxu0 %v6794
        %7137 = vmatpush1.bf16.msra.mxu0 %v6793
        %7138 = vmatprep.subr.bf16.mxu0 %v6799
        %7139 = vmatpush1.bf16.msra.mxu0 %v6798
        %7140 = vmatprep.subr.bf16.mxu0 %v6804
        %7141 = vmatpush1.bf16.msra.mxu0 %v6803
        %7142 = vmatprep.subr.bf16.mxu0 %v6809
        %7143 = vmatpush1.bf16.msra.mxu0 %v6808
        %7144 = vmatprep.subr.bf16.mxu0 %v6814
        %7145 = vmatpush1.bf16.msra.mxu0 %v6813
        %7146 = vmatprep.subr.bf16.mxu0 %v6819
        %7147 = vmatpush1.bf16.msra.mxu0 %v6818
        %7148 = vmatprep.subr.bf16.mxu0 %v6824
        %7149 = vmatpush1.bf16.msra.mxu0 %v6823
        %7150 = vmatprep.subr.bf16.mxu0 %v6829
        %7151 = vmatpush1.bf16.msra.mxu0 %v6828
        %7152 = vmatprep.subr.bf16.mxu0 %v6834
        %7153 = vmatpush1.bf16.msra.mxu0 %v6833
        %7154 = vmatprep.subr.bf16.mxu0 %v6839
        %7155 = vmatpush1.bf16.msra.mxu0 %v6838
        %7156 = vmatprep.mubr.bf16.mxu0 %v5976
        %7157 = vmatmul.mubr.bf16.gmra.mrb[0].mxu0 %v5975
        %v7158 = vpop.f32.mrb[0].mxu0
        %v7159 = vadd.f32 %v7118, %v7158
        %v7160 = vpop.f32.mrb[0].mxu0
        %v7161 = vadd.f32 %v7120, %v7160
        %v7162 = vpop.f32.mrb[0].mxu0
        %v7163 = vpop.f32.mrb[0].mxu0
        %7164 = vdwg.mxu0
        %7165 = vmatprep.subr.bf16.mxu0 0
        %7166 = vmatpush1.bf16.msra.mxu0 %v6685
        %7167 = vmatprep.subr.bf16.mxu0 0
        %7168 = vmatpush1.bf16.msra.mxu0 %v6690
        %7169 = vmatprep.subr.bf16.mxu0 0
        %7170 = vmatpush1.bf16.msra.mxu0 %v6695
        %7171 = vmatprep.subr.bf16.mxu0 0
        %7172 = vmatpush1.bf16.msra.mxu0 %v6700
        %7173 = vmatprep.subr.bf16.mxu0 0
        %7174 = vmatpush1.bf16.msra.mxu0 %v6705
        %7175 = vmatprep.subr.bf16.mxu0 0
        %7176 = vmatpush1.bf16.msra.mxu0 %v6710
        %7177 = vmatprep.subr.bf16.mxu0 0
        %7178 = vmatpush1.bf16.msra.mxu0 %v6715
        %7179 = vmatprep.subr.bf16.mxu0 0
        %7180 = vmatpush1.bf16.msra.mxu0 %v6720
        %7181 = vmatprep.subr.bf16.mxu0 0
        %7182 = vmatpush1.bf16.msra.mxu0 %v6725
        %7183 = vmatprep.subr.bf16.mxu0 0
        %7184 = vmatpush1.bf16.msra.mxu0 %v6730
        %7185 = vmatprep.subr.bf16.mxu0 0
        %7186 = vmatpush1.bf16.msra.mxu0 %v6735
        %7187 = vmatprep.subr.bf16.mxu0 0
        %7188 = vmatpush1.bf16.msra.mxu0 %v6740
        %7189 = vmatprep.subr.bf16.mxu0 0
        %7190 = vmatpush1.bf16.msra.mxu0 %v6745
        %7191 = vmatprep.subr.bf16.mxu0 0
        %7192 = vmatpush1.bf16.msra.mxu0 %v6750
        %7193 = vmatprep.subr.bf16.mxu0 0
        %7194 = vmatpush1.bf16.msra.mxu0 %v6755
        %7195 = vmatprep.subr.bf16.mxu0 0
        %7196 = vmatpush1.bf16.msra.mxu0 %v6760
        %7197 = vmatprep.mubr.bf16.mxu0 %v5974
        %7198 = vmatmul.mubr.bf16.gmra.mrb[0].mxu0 %v5973
        %v7199 = vpop.f32.mrb[0].mxu0
        %v7200 = vadd.f32 0.0, %v7199
        %v7201 = vpop.f32.mrb[0].mxu0
        %v7202 = vpop.f32.mrb[0].mxu0
        %v7203 = vpop.f32.mrb[0].mxu0
        %7204 = vdwg.mxu0
        %7205 = vmatprep.subr.bf16.mxu0 0
        %7206 = vmatpush1.bf16.msra.mxu0 %v6765
        %7207 = vmatprep.subr.bf16.mxu0 0
        %7208 = vmatpush1.bf16.msra.mxu0 %v6770
        %7209 = vmatprep.subr.bf16.mxu0 0
        %7210 = vmatpush1.bf16.msra.mxu0 %v6775
        %7211 = vmatprep.subr.bf16.mxu0 0
        %7212 = vmatpush1.bf16.msra.mxu0 %v6780
        %7213 = vmatprep.subr.bf16.mxu0 0
        %7214 = vmatpush1.bf16.msra.mxu0 %v6785
        %7215 = vmatprep.subr.bf16.mxu0 0
        %7216 = vmatpush1.bf16.msra.mxu0 %v6790
        %7217 = vmatprep.subr.bf16.mxu0 0
        %7218 = vmatpush1.bf16.msra.mxu0 %v6795
        %7219 = vmatprep.subr.bf16.mxu0 0
        %7220 = vmatpush1.bf16.msra.mxu0 %v6800
        %7221 = vmatprep.subr.bf16.mxu0 0
        %7222 = vmatpush1.bf16.msra.mxu0 %v6805
        %7223 = vmatprep.subr.bf16.mxu0 0
        %7224 = vmatpush1.bf16.msra.mxu0 %v6810
        %7225 = vmatprep.subr.bf16.mxu0 0
        %7226 = vmatpush1.bf16.msra.mxu0 %v6815
        %7227 = vmatprep.subr.bf16.mxu0 0
        %7228 = vmatpush1.bf16.msra.mxu0 %v6820
        %7229 = vmatprep.subr.bf16.mxu0 0
        %7230 = vmatpush1.bf16.msra.mxu0 %v6825
        %7231 = vmatprep.subr.bf16.mxu0 0
        %7232 = vmatpush1.bf16.msra.mxu0 %v6830
        %7233 = vmatprep.subr.bf16.mxu0 0
        %7234 = vmatpush1.bf16.msra.mxu0 %v6835
        %7235 = vmatprep.subr.bf16.mxu0 0
        %7236 = vmatpush1.bf16.msra.mxu0 %v6840
        %7237 = vmatprep.mubr.bf16.mxu0 %v5976
        %7238 = vmatmul.mubr.bf16.gmra.mrb[0].mxu0 %v5975
        %v7239 = vpop.f32.mrb[0].mxu0
        %v7240 = vadd.f32 %v7200, %v7239
        %v7241 = vpop.f32.mrb[0].mxu0
        %v7242 = vpop.f32.mrb[0].mxu0
        %v7243 = vpop.f32.mrb[0].mxu0
        %7244 = vdwg.mxu0
        %7245 = vst [vmem:[%s309] sm:$0xff] %v7077
        %7246 = vst [vmem:[%s309 + $0x8] sm:$0xff] %v7079
        %7247 = vst [vmem:[%s309 + $0x10] sm:$0xff] %v7159
        %7248 = vst [vmem:[%s309 + $0x18] sm:$0xff] %v7161
        %7249 = vst [vmem:[%s309 + $0x20] sm:$0xff] %v7240
        %p7250 = scmp.lt.s32.totalorder %s22, 1
        %s7251 = scalar_select %p7250, %s22, 1
        %s7252 = smul.addr %s7251, 5
        %s7253 = smul.addr %s7252, 8
        %s7254 = scalar_lea.vmem %s4, %s7253
        // Predicated region
        $region53: #{light_paramter_forward.1} parent=35 // pred_check
          %p7255 = pneg %p139
        $region54: #{light_paramter_forward.1} parent=35 // pred_check_branch
          %7257 = sbr.rel (%p7255) target = $region56
        $region55: #{light_paramter_forward.1} parent=35 // pred_region
          _
        $region56: #{light_paramter_forward.1} parent=35 // pred_fallthru
          _
      $region36: #{light_paramter_forward.1} parent=5 // pred_fallthru
        _
      %p7258 = scmp.le.s32.totalorder 2, %s17
      // Predicated region
      $region57: #{light_paramter_forward.1} parent=5 // pred_check
        %p7259 = pneg %p7258
      $region58: #{light_paramter_forward.1} parent=5 // pred_check_branch
        %7261 = sbr.rel (%p7259) target = $region60
      $region59: #{light_paramter_forward.1} parent=5 // pred_region
        %s7262 = ssub.s32 %s17, 2
        // Predicated region
        $region61: #{light_paramter_forward.1} parent=59 // pred_check
          %p7263 = pneg %p145
        $region62: #{light_paramter_forward.1} parent=59 // pred_check_branch
          %7265 = sbr.rel (%p7263) target = $region64
        $region63: #{light_paramter_forward.1} parent=59 // pred_region
          %p7266 = scmp.lt.s32.totalorder %s23, 1
          %s7267 = scalar_select %p7266, %s23, 1
          %s7268 = smul.addr %s7267, 5
          %s7269 = smul.addr %s7268, 8
          %s7270 = scalar_lea.vmem %s4, %s7269
        $region64: #{light_paramter_forward.1} parent=59 // pred_fallthru
          _
      $region60: #{light_paramter_forward.1} parent=5 // pred_fallthru
        _
    $region6: #{light_paramter_forward.1} parent=1 // loop_footer
      %s21 = sadd.s32 1, %s17
    $region7: #{light_paramter_forward.1} parent=1 // loop_footer_branch
      %16 = sbr.rel target = $region3
    $region8: #{light_paramter_forward.1} parent=1 // loop_exit
      _
    %7271 = vsyncpa [#allocation3], 1
    %s7272 = scalar_lea.sflag [#allocation3], 1
    %7273 = vsyncpa %s7272, 1
    %7274 = vsyncpa [#allocation5], 1
    %s7275 = scalar_lea.sflag [#allocation5], 1
    %7276 = vsyncpa %s7275, 1
    %7277 = vsyncpa [#allocation8], 1
    %s7278 = scalar_lea.sflag [#allocation8], 1
    %7279 = vsyncpa %s7278, 1

</llo_original>
